<compile_context>
chip_gen: v7x
topology: tpu7x:2x2x1
jax: 0.10.0
libtpu: 0.0.40
codegen_flags: <defaults>
</compile_context>

<pallas_src>
import numpy as np
import jax
import jax.numpy as jnp
from jax.experimental import pallas as pl
from jax.experimental.pallas import tpu as pltpu


_TB = 8  # samples per grid step (multiple of 8; keeps grid >= 2 for N >= 16)


# ----------------------------------------------------------------------------
# The single fused, batched Pallas kernel (one grid step == TB samples).
#
# Flat activation layouts (batch stacked on sublanes, fixed per-sample stride):
#   x  : (TB*32+8, 32)    rows b*32+h  = padded 32x32 image, +8 zero tail rows
#   z1 : (TB*32, 168)     rows b*32+h  (h<=27 valid), cols co*28+wo
#   a2 : (TB*16+8, 168)   rows b*16+h2 (h2<=13 valid), cols co*28+2*w2 (uncompacted)
#   z3 : (TB*16, 160)     rows b*16+h3 (h3<=9 valid),  cols co*10+wo
#   a4 : (TB*8+8, 160)    rows b*8+h4  (h4<=4 valid),  cols co*10+2*w4
# ----------------------------------------------------------------------------
def _lenet_batched_kernel(x_ref, b1w_ref, b1b_ref, pe2_ref, po2_ref,
                          b3w_ref, b3b_ref, pe4_ref, po4_ref, sel5_ref,
                          w5_ref, b5_ref, w6_ref, b6_ref, w7_ref, b7_ref,
                          o_ref):
    f32 = jnp.float32
    x = x_ref[...]                                           # (TB*32+8, 32)

    # ---- c1 + ReLU: single K-concat banded matmul (M=TB*32, K=160) ---------
    x1p = jnp.concatenate([x[dh:dh + _TB * 32, :] for dh in range(5)], axis=1)
    z1 = jnp.dot(x1p, b1w_ref[...], preferred_element_type=f32)
    z1 = jnp.maximum(z1 + b1b_ref[...], 0.0)                 # (TB*32, 168)

    # ---- s2: 2x2/stride-2 max pool ------------------------------------------
    # lane (W) direction: max with the next column (wrapped col never consumed)
    zshift = jnp.concatenate([z1[:, 1:], z1[:, -1:]], axis=1)
    zw = jnp.maximum(z1, zshift)                             # (TB*32, 168)
    # row (H) direction: even/odd row selection (block-diag over batch) + max
    a2 = jnp.maximum(jnp.dot(pe2_ref[...], zw, preferred_element_type=f32),
                     jnp.dot(po2_ref[...], zw, preferred_element_type=f32))

    # ---- c3 + ReLU (S1 lane-compaction folded into the banded weight) ------
    x3p = jnp.concatenate([a2[dh:dh + _TB * 16, :] for dh in range(5)], axis=1)
    z3 = jnp.dot(x3p, b3w_ref[...], preferred_element_type=f32)
    z3 = jnp.maximum(z3 + b3b_ref[...], 0.0)                 # (TB*16, 160)

    # ---- s4: 2x2/stride-2 max pool ------------------------------------------
    zshift3 = jnp.concatenate([z3[:, 1:], z3[:, -1:]], axis=1)
    zw3 = jnp.maximum(z3, zshift3)                           # (TB*16, 160)
    a4 = jnp.maximum(jnp.dot(pe4_ref[...], zw3, preferred_element_type=f32),
                     jnp.dot(po4_ref[...], zw3, preferred_element_type=f32))

    # ---- c5 + ReLU (5x5 -> 1x1, S3 folded into W5) ---------------------------
    x5p = jnp.concatenate([a4[dh:dh + _TB * 8, :] for dh in range(5)], axis=1)
    x5p = jnp.dot(sel5_ref[...], x5p, preferred_element_type=f32)   # (TB, 800)
    z5 = jnp.dot(x5p, w5_ref[...], preferred_element_type=f32)
    z5 = jnp.maximum(z5 + b5_ref[...], 0.0)                  # (TB, 120)

    # ---- f6 + ReLU, f7 --------------------------------------------------------
    z6 = jnp.maximum(jnp.dot(z5, w6_ref[...], preferred_element_type=f32)
                     + b6_ref[...], 0.0)                     # (TB, 84)
    z7 = jnp.dot(z6, w7_ref[...], preferred_element_type=f32) + b7_ref[...]

    # ---- log-softmax over the 10 classes -------------------------------------
    m = jnp.max(z7, axis=-1, keepdims=True)
    s = z7 - m
    lse = jnp.log(jnp.sum(jnp.exp(s), axis=-1, keepdims=True))
    o_ref[...] = (s - lse).astype(o_ref.dtype)               # (TB, 10)


# ----------------------------------------------------------------------------
# One-time parameter re-layout:
#   * banded, K-concatenated conv weights (pool compaction folded in),
#   * pre-transposed linear weights, pre-broadcast biases,
#   * constant block-diagonal pool / sample selection matrices (per TB).
# ----------------------------------------------------------------------------
def prepare_lenet_params(params, tb=_TB):
    w1, b1 = params["c1"]   # (6,1,5,5), (6,)
    w3, b3 = params["c3"]   # (16,6,5,5), (16,)
    w5, b5 = params["c5"]   # (120,16,5,5), (120,)
    w6, b6 = params["f6"]   # (84,120), (84,)
    w7, b7 = params["f7"]   # (10,84), (10,)
    f32 = jnp.float32

    # c1 banded weight, K-concatenated over dh:
    #   B1[dh*32+wi, co*28+wo] = w1[co,0,dh,wi-wo]  (0 <= wi-wo < 5)
    e1 = (np.arange(32)[None, :, None] - np.arange(28)[None, None, :]
          == np.arange(5)[:, None, None]).astype(np.float32)        # (5,32,28)
    B1 = jnp.einsum("chd,dxw->hxcw", w1[:, 0], jnp.asarray(e1)).reshape(5 * 32, 6 * 28)
    b1r = jnp.repeat(b1, 28).reshape(1, 6 * 28)

    # c3 banded weight with the s2 lane-compaction (S1) folded in:
    #   B3p[dh][28*ci+2*wi, co*10+wo] = w3[co,ci,dh,wi-wo]
    e3 = (np.arange(14)[None, :, None] - np.arange(10)[None, None, :]
          == np.arange(5)[:, None, None]).astype(np.float32)        # (5,14,10)
    B3 = jnp.einsum("ochd,dxw->hcxow", w3, jnp.asarray(e3)).reshape(5, 6 * 14, 16 * 10)
    cols = np.arange(6 * 14)
    S1 = np.zeros((168, 6 * 14), np.float32)
    S1[28 * (cols // 14) + 2 * (cols % 14), cols] = 1.0
    B3p = jnp.einsum("yk,hkn->hyn", jnp.asarray(S1), B3).reshape(5 * 168, 16 * 10)
    b3r = jnp.repeat(b3, 10).reshape(1, 16 * 10)

    # c5 weight with the s4 lane-compaction (S3) folded in:
    #   W5p[dh][10*ci+2*dw, co] = w5[co,ci,dh,dw]
    W5 = jnp.transpose(w5, (2, 1, 3, 0)).reshape(5, 16 * 5, 120)
    cols = np.arange(16 * 5)
    S3 = np.zeros((160, 16 * 5), np.float32)
    S3[10 * (cols // 5) + 2 * (cols % 5), cols] = 1.0
    W5p = jnp.einsum("yk,hkn->hyn", jnp.asarray(S3), W5).reshape(5 * 160, 120)
    b5r = b5.reshape(1, 120)

    # f6 / f7 pre-transposed to (in, out)
    W6, b6r = w6.T, b6.reshape(1, 84)
    W7, b7r = w7.T, b7.reshape(1, 10)

    # Pool row-selection matrices (block-diagonal over the TB batch tile).
    PE2 = np.zeros((tb * 16 + 8, tb * 32), np.float32)
    PO2 = np.zeros((tb * 16 + 8, tb * 32), np.float32)
    PE4 = np.zeros((tb * 8 + 8, tb * 16), np.float32)
    PO4 = np.zeros((tb * 8 + 8, tb * 16), np.float32)
    for b in range(tb):
        for h in range(14):
            PE2[b * 16 + h, b * 32 + 2 * h] = 1.0
            PO2[b * 16 + h, b * 32 + 2 * h + 1] = 1.0
        for h in range(5):
            PE4[b * 8 + h, b * 16 + 2 * h] = 1.0
            PO4[b * 8 + h, b * 16 + 2 * h + 1] = 1.0
    SEL5 = np.zeros((tb, tb * 8), np.float32)
    SEL5[np.arange(tb), np.arange(tb) * 8] = 1.0

    return {
        "B1": B1.astype(f32), "b1": b1r.astype(f32),
        "PE2": jnp.asarray(PE2), "PO2": jnp.asarray(PO2),
        "B3": B3p.astype(f32), "b3": b3r.astype(f32),
        "PE4": jnp.asarray(PE4), "PO4": jnp.asarray(PO4),
        "SEL5": jnp.asarray(SEL5),
        "W5": W5p.astype(f32), "b5": b5r.astype(f32),
        "W6": W6.astype(f32), "b6": b6r.astype(f32),
        "W7": W7.astype(f32), "b7": b7r.astype(f32),
    }


# ----------------------------------------------------------------------------
# Classifier (lenet / mnist) forward: one pallas_call, TB samples per step.
# ----------------------------------------------------------------------------
@jax.jit
def classifier_forward(prepped, img_nchw):
    n = img_nchw.shape[0]
    g = (n + _TB - 1) // _TB
    npad = g * _TB

    x = img_nchw.astype(jnp.float32).reshape(n, 28, 28)
    x = jnp.pad(x, ((0, npad - n), (2, 2), (2, 2)))           # (npad, 32, 32)
    x = x.reshape(g, _TB * 32, 32)
    x = jnp.pad(x, ((0, 0), (0, 8), (0, 0)))                  # 8 zero tail rows / block
    x = x.reshape(g * (_TB * 32 + 8), 32)

    wspec2 = lambda shape: pl.BlockSpec(shape, lambda i: (0, 0))

    out = pl.pallas_call(
        _lenet_batched_kernel,
        out_shape=jax.ShapeDtypeStruct((npad, 10), jnp.float32),
        grid=(g,),
        in_specs=[
            pl.BlockSpec((_TB * 32 + 8, 32), lambda i: (i, 0)),   # images
            wspec2((5 * 32, 168)),                                # B1
            wspec2((1, 168)),                                     # b1
            wspec2((_TB * 16 + 8, _TB * 32)),                     # PE2
            wspec2((_TB * 16 + 8, _TB * 32)),                     # PO2
            wspec2((5 * 168, 160)),                               # B3
            wspec2((1, 160)),                                     # b3
            wspec2((_TB * 8 + 8, _TB * 16)),                      # PE4
            wspec2((_TB * 8 + 8, _TB * 16)),                      # PO4
            wspec2((_TB, _TB * 8)),                               # SEL5
            wspec2((5 * 160, 120)),                               # W5
            wspec2((1, 120)),                                     # b5
            wspec2((120, 84)),                                    # W6
            wspec2((1, 84)),                                      # b6
            wspec2((84, 10)),                                     # W7
            wspec2((1, 10)),                                      # b7
        ],
        out_specs=pl.BlockSpec((_TB, 10), lambda i: (i, 0)),
        compiler_params=pltpu.CompilerParams(
            dimension_semantics=("parallel",)),
    )(x, prepped["B1"], prepped["b1"], prepped["PE2"], prepped["PO2"],
      prepped["B3"], prepped["b3"], prepped["PE4"], prepped["PO4"],
      prepped["SEL5"], prepped["W5"], prepped["b5"], prepped["W6"],
      prepped["b6"], prepped["W7"], prepped["b7"])
    return out[:n]                                            # (N,10) log-probs


# ----------------------------------------------------------------------------
# PyTorch-style parameter init (same distributions as nn.Conv2d / nn.Linear)
# ----------------------------------------------------------------------------
def init_lenet_params(key):
    def conv_p(k, cout, cin, ksz):
        k1, k2 = jax.random.split(k)
        bound = 1.0 / jnp.sqrt(cin * ksz * ksz)
        w = jax.random.uniform(k1, (cout, cin, ksz, ksz), jnp.float32, -bound, bound)
        b = jax.random.uniform(k2, (cout,), jnp.float32, -bound, bound)
        return w, b

    def lin_p(k, cout, cin):
        k1, k2 = jax.random.split(k)
        bound = 1.0 / jnp.sqrt(cin)
        w = jax.random.uniform(k1, (cout, cin), jnp.float32, -bound, bound)
        b = jax.random.uniform(k2, (cout,), jnp.float32, -bound, bound)
        return w, b

    ks = jax.random.split(key, 5)
    return {
        "c1": conv_p(ks[0], 6, 1, 5),
        "c3": conv_p(ks[1], 16, 6, 5),
        "c5": conv_p(ks[2], 120, 16, 5),
        "f6": lin_p(ks[3], 84, 120),
        "f7": lin_p(ks[4], 10, 84),
    }


# ----------------------------------------------------------------------------
# Plain-JAX (XLA) reference of the same module, used only for validation.
# ----------------------------------------------------------------------------
def _reference_forward(params, img):
    w1, b1 = params["c1"]; w3, b3 = params["c3"]; w5, b5 = params["c5"]
    w6, b6 = params["f6"]; w7, b7 = params["f7"]
    dn = ("NCHW", "OIHW", "NCHW")
    hi = jax.lax.Precision.HIGHEST

    def pool(v):
        n, c, h, w = v.shape
        return v.reshape(n, c, h // 2, 2, w // 2, 2).max(axis=(3, 5))

    x = jax.lax.conv_general_dilated(img, w1, (1, 1), ((2, 2), (2, 2)),
                                     dimension_numbers=dn, precision=hi)
    x = pool(jax.nn.relu(x + b1.reshape(1, -1, 1, 1)))
    x = jax.lax.conv_general_dilated(x, w3, (1, 1), "VALID",
                                     dimension_numbers=dn, precision=hi)
    x = pool(jax.nn.relu(x + b3.reshape(1, -1, 1, 1)))
    x = jax.lax.conv_general_dilated(x, w5, (1, 1), "VALID",
                                     dimension_numbers=dn, precision=hi)
    x = jax.nn.relu(x + b5.reshape(1, -1, 1, 1)).reshape(img.shape[0], -1)
    x = jax.nn.relu(jnp.dot(x, w6.T, precision=hi) + b6)
    x = jnp.dot(x, w7.T, precision=hi) + b7
    return jax.nn.log_softmax(x, axis=-1)


if __name__ == "__main__":
    key = jax.random.PRNGKey(0)
    pkey, xkey1, xkey2 = jax.random.split(key, 3)
    params = init_lenet_params(pkey)
    prepped = prepare_lenet_params(params)        # one-time weight re-layout

    # Small MNIST-shaped batch (LeNet requires 28x28).
    img = jax.random.uniform(xkey1, (2, 1, 28, 28), jnp.float32)
    out = jax.block_until_ready(classifier_forward(prepped, img))
    assert out.shape == (2, 10)
    assert jnp.allclose(jnp.sum(jnp.exp(out), axis=-1), 1.0, atol=1e-4)
    ref = _reference_forward(params, img)
    assert jnp.allclose(out, ref, atol=2e-2, rtol=2e-2), (
        "mismatch vs reference", float(jnp.max(jnp.abs(out - ref))))

    # Also exercise multiple grid steps + batch padding (cross-sample dead-row
    # absorption inside a TB tile, and the parallel grid axis).
    img2 = jax.random.uniform(xkey2, (20, 1, 28, 28), jnp.float32)
    out2 = jax.block_until_ready(classifier_forward(prepped, img2))
    ref2 = _reference_forward(params, img2)
    assert out2.shape == (20, 10)
    assert jnp.allclose(out2, ref2, atol=2e-2, rtol=2e-2), (
        "mismatch vs reference (batched)", float(jnp.max(jnp.abs(out2 - ref2))))

    print("KERNEL_OK")
</pallas_src>

<mosaic_0001>
module attributes {stable_mosaic.version = 11 : i64} {
  func.func @_lenet_batched_kernel(%arg0: i32, %arg1: memref<264x32xf32, #tpu.memory_space<vmem>>, %arg2: memref<160x168xf32, #tpu.memory_space<vmem>>, %arg3: memref<1x168xf32, #tpu.memory_space<vmem>>, %arg4: memref<136x256xf32, #tpu.memory_space<vmem>>, %arg5: memref<136x256xf32, #tpu.memory_space<vmem>>, %arg6: memref<840x160xf32, #tpu.memory_space<vmem>>, %arg7: memref<1x160xf32, #tpu.memory_space<vmem>>, %arg8: memref<72x128xf32, #tpu.memory_space<vmem>>, %arg9: memref<72x128xf32, #tpu.memory_space<vmem>>, %arg10: memref<8x64xf32, #tpu.memory_space<vmem>>, %arg11: memref<800x120xf32, #tpu.memory_space<vmem>>, %arg12: memref<1x120xf32, #tpu.memory_space<vmem>>, %arg13: memref<120x84xf32, #tpu.memory_space<vmem>>, %arg14: memref<1x84xf32, #tpu.memory_space<vmem>>, %arg15: memref<84x10xf32, #tpu.memory_space<vmem>>, %arg16: memref<1x10xf32, #tpu.memory_space<vmem>>, %arg17: memref<8x10xf32, #tpu.memory_space<vmem>>) attributes {dimension_semantics = [#tpu.dimension_semantics<parallel>], iteration_bounds = array<i64: 1>, scalar_prefetch = 0 : i64, scratch_operands = 0 : i64, tpu.core_type = #tpu.core_type<tc>, window_params = [{transform_indices = @transform_0, window_bounds = array<i64: 264, 32>}, {pipeline_mode = #tpu.pipeline_mode<synchronous>, transform_indices = @transform_1, window_bounds = array<i64: 160, 168>}, {pipeline_mode = #tpu.pipeline_mode<synchronous>, transform_indices = @transform_2, window_bounds = array<i64: 1, 168>}, {pipeline_mode = #tpu.pipeline_mode<synchronous>, transform_indices = @transform_3, window_bounds = array<i64: 136, 256>}, {pipeline_mode = #tpu.pipeline_mode<synchronous>, transform_indices = @transform_4, window_bounds = array<i64: 136, 256>}, {pipeline_mode = #tpu.pipeline_mode<synchronous>, transform_indices = @transform_5, window_bounds = array<i64: 840, 160>}, {pipeline_mode = #tpu.pipeline_mode<synchronous>, transform_indices = @transform_6, window_bounds = array<i64: 1, 160>}, {pipeline_mode = #tpu.pipeline_mode<synchronous>, transform_indices = @transform_7, window_bounds = array<i64: 72, 128>}, {pipeline_mode = #tpu.pipeline_mode<synchronous>, transform_indices = @transform_8, window_bounds = array<i64: 72, 128>}, {pipeline_mode = #tpu.pipeline_mode<synchronous>, transform_indices = @transform_9, window_bounds = array<i64: 8, 64>}, {pipeline_mode = #tpu.pipeline_mode<synchronous>, transform_indices = @transform_10, window_bounds = array<i64: 800, 120>}, {pipeline_mode = #tpu.pipeline_mode<synchronous>, transform_indices = @transform_11, window_bounds = array<i64: 1, 120>}, {pipeline_mode = #tpu.pipeline_mode<synchronous>, transform_indices = @transform_12, window_bounds = array<i64: 120, 84>}, {pipeline_mode = #tpu.pipeline_mode<synchronous>, transform_indices = @transform_13, window_bounds = array<i64: 1, 84>}, {pipeline_mode = #tpu.pipeline_mode<synchronous>, transform_indices = @transform_14, window_bounds = array<i64: 84, 10>}, {pipeline_mode = #tpu.pipeline_mode<synchronous>, transform_indices = @transform_15, window_bounds = array<i64: 1, 10>}, {transform_indices = @transform_16, window_bounds = array<i64: 8, 10>}]} {
    %c0 = arith.constant 0 : index
    %c0_0 = arith.constant 0 : index
    %0 = vector.load %arg1[%c0, %c0_0] : memref<264x32xf32, #tpu.memory_space<vmem>>, vector<264x32xf32>
    %1 = vector.extract_strided_slice %0 {offsets = [0, 0], sizes = [256, 32], strides = [1, 1]} : vector<264x32xf32> to vector<256x32xf32>
    %2 = vector.extract_strided_slice %0 {offsets = [1, 0], sizes = [256, 32], strides = [1, 1]} : vector<264x32xf32> to vector<256x32xf32>
    %3 = vector.extract_strided_slice %0 {offsets = [2, 0], sizes = [256, 32], strides = [1, 1]} : vector<264x32xf32> to vector<256x32xf32>
    %4 = vector.extract_strided_slice %0 {offsets = [3, 0], sizes = [256, 32], strides = [1, 1]} : vector<264x32xf32> to vector<256x32xf32>
    %5 = vector.extract_strided_slice %0 {offsets = [4, 0], sizes = [256, 32], strides = [1, 1]} : vector<264x32xf32> to vector<256x32xf32>
    %6 = tpu.concatenate %1, %2, %3, %4, %5 in 1 : vector<256x32xf32>, vector<256x32xf32>, vector<256x32xf32>, vector<256x32xf32>, vector<256x32xf32> -> vector<256x160xf32>
    %c0_1 = arith.constant 0 : index
    %c0_2 = arith.constant 0 : index
    %7 = vector.load %arg2[%c0_1, %c0_2] : memref<160x168xf32, #tpu.memory_space<vmem>>, vector<160x168xf32>
    %cst = arith.constant dense<0.000000e+00> : vector<256x168xf32>
    %8 = tpu.matmul %6, %7, %cst {dimension_numbers = #tpu.dot_dimension_numbers<[1], [0], [0], [1], [0, 0, 1, 1], [], []>} : vector<256x160xf32>, vector<160x168xf32>, vector<256x168xf32> -> vector<256x168xf32>
    %c0_3 = arith.constant 0 : index
    %c0_4 = arith.constant 0 : index
    %9 = vector.load %arg3[%c0_3, %c0_4] : memref<1x168xf32, #tpu.memory_space<vmem>>, vector<1x168xf32>
    %10 = vector.broadcast %9 : vector<1x168xf32> to vector<256x168xf32>
    %11 = arith.addf %8, %10 : vector<256x168xf32>
    %cst_5 = arith.constant 0.000000e+00 : f32
    %12 = vector.broadcast %cst_5 : f32 to vector<256x168xf32>
    %13 = arith.maximumf %11, %12 : vector<256x168xf32>
    %14 = vector.extract_strided_slice %13 {offsets = [0, 1], sizes = [256, 167], strides = [1, 1]} : vector<256x168xf32> to vector<256x167xf32>
    %15 = vector.extract_strided_slice %13 {offsets = [0, 167], sizes = [256, 1], strides = [1, 1]} : vector<256x168xf32> to vector<256x1xf32>
    %16 = tpu.concatenate %14, %15 in 1 : vector<256x167xf32>, vector<256x1xf32> -> vector<256x168xf32>
    %17 = arith.maximumf %13, %16 : vector<256x168xf32>
    %c0_6 = arith.constant 0 : index
    %c0_7 = arith.constant 0 : index
    %18 = vector.load %arg4[%c0_6, %c0_7] : memref<136x256xf32, #tpu.memory_space<vmem>>, vector<136x256xf32>
    %cst_8 = arith.constant dense<0.000000e+00> : vector<136x168xf32>
    %19 = tpu.matmul %18, %17, %cst_8 {dimension_numbers = #tpu.dot_dimension_numbers<[1], [0], [0], [1], [0, 0, 1, 1], [], []>} : vector<136x256xf32>, vector<256x168xf32>, vector<136x168xf32> -> vector<136x168xf32>
    %c0_9 = arith.constant 0 : index
    %c0_10 = arith.constant 0 : index
    %20 = vector.load %arg5[%c0_9, %c0_10] : memref<136x256xf32, #tpu.memory_space<vmem>>, vector<136x256xf32>
    %cst_11 = arith.constant dense<0.000000e+00> : vector<136x168xf32>
    %21 = tpu.matmul %20, %17, %cst_11 {dimension_numbers = #tpu.dot_dimension_numbers<[1], [0], [0], [1], [0, 0, 1, 1], [], []>} : vector<136x256xf32>, vector<256x168xf32>, vector<136x168xf32> -> vector<136x168xf32>
    %22 = arith.maximumf %19, %21 : vector<136x168xf32>
    %23 = vector.extract_strided_slice %22 {offsets = [0, 0], sizes = [128, 168], strides = [1, 1]} : vector<136x168xf32> to vector<128x168xf32>
    %24 = vector.extract_strided_slice %22 {offsets = [1, 0], sizes = [128, 168], strides = [1, 1]} : vector<136x168xf32> to vector<128x168xf32>
    %25 = vector.extract_strided_slice %22 {offsets = [2, 0], sizes = [128, 168], strides = [1, 1]} : vector<136x168xf32> to vector<128x168xf32>
    %26 = vector.extract_strided_slice %22 {offsets = [3, 0], sizes = [128, 168], strides = [1, 1]} : vector<136x168xf32> to vector<128x168xf32>
    %27 = vector.extract_strided_slice %22 {offsets = [4, 0], sizes = [128, 168], strides = [1, 1]} : vector<136x168xf32> to vector<128x168xf32>
    %28 = tpu.concatenate %23, %24, %25, %26, %27 in 1 : vector<128x168xf32>, vector<128x168xf32>, vector<128x168xf32>, vector<128x168xf32>, vector<128x168xf32> -> vector<128x840xf32>
    %c0_12 = arith.constant 0 : index
    %c0_13 = arith.constant 0 : index
    %29 = vector.load %arg6[%c0_12, %c0_13] : memref<840x160xf32, #tpu.memory_space<vmem>>, vector<840x160xf32>
    %cst_14 = arith.constant dense<0.000000e+00> : vector<128x160xf32>
    %30 = tpu.matmul %28, %29, %cst_14 {dimension_numbers = #tpu.dot_dimension_numbers<[1], [0], [0], [1], [0, 0, 1, 1], [], []>} : vector<128x840xf32>, vector<840x160xf32>, vector<128x160xf32> -> vector<128x160xf32>
    %c0_15 = arith.constant 0 : index
    %c0_16 = arith.constant 0 : index
    %31 = vector.load %arg7[%c0_15, %c0_16] : memref<1x160xf32, #tpu.memory_space<vmem>>, vector<1x160xf32>
    %32 = vector.broadcast %31 : vector<1x160xf32> to vector<128x160xf32>
    %33 = arith.addf %30, %32 : vector<128x160xf32>
    %cst_17 = arith.constant 0.000000e+00 : f32
    %34 = vector.broadcast %cst_17 : f32 to vector<128x160xf32>
    %35 = arith.maximumf %33, %34 : vector<128x160xf32>
    %36 = vector.extract_strided_slice %35 {offsets = [0, 1], sizes = [128, 159], strides = [1, 1]} : vector<128x160xf32> to vector<128x159xf32>
    %37 = vector.extract_strided_slice %35 {offsets = [0, 159], sizes = [128, 1], strides = [1, 1]} : vector<128x160xf32> to vector<128x1xf32>
    %38 = tpu.concatenate %36, %37 in 1 : vector<128x159xf32>, vector<128x1xf32> -> vector<128x160xf32>
    %39 = arith.maximumf %35, %38 : vector<128x160xf32>
    %c0_18 = arith.constant 0 : index
    %c0_19 = arith.constant 0 : index
    %40 = vector.load %arg8[%c0_18, %c0_19] : memref<72x128xf32, #tpu.memory_space<vmem>>, vector<72x128xf32>
    %cst_20 = arith.constant dense<0.000000e+00> : vector<72x160xf32>
    %41 = tpu.matmul %40, %39, %cst_20 {dimension_numbers = #tpu.dot_dimension_numbers<[1], [0], [0], [1], [0, 0, 1, 1], [], []>} : vector<72x128xf32>, vector<128x160xf32>, vector<72x160xf32> -> vector<72x160xf32>
    %c0_21 = arith.constant 0 : index
    %c0_22 = arith.constant 0 : index
    %42 = vector.load %arg9[%c0_21, %c0_22] : memref<72x128xf32, #tpu.memory_space<vmem>>, vector<72x128xf32>
    %cst_23 = arith.constant dense<0.000000e+00> : vector<72x160xf32>
    %43 = tpu.matmul %42, %39, %cst_23 {dimension_numbers = #tpu.dot_dimension_numbers<[1], [0], [0], [1], [0, 0, 1, 1], [], []>} : vector<72x128xf32>, vector<128x160xf32>, vector<72x160xf32> -> vector<72x160xf32>
    %44 = arith.maximumf %41, %43 : vector<72x160xf32>
    %45 = vector.extract_strided_slice %44 {offsets = [0, 0], sizes = [64, 160], strides = [1, 1]} : vector<72x160xf32> to vector<64x160xf32>
    %46 = vector.extract_strided_slice %44 {offsets = [1, 0], sizes = [64, 160], strides = [1, 1]} : vector<72x160xf32> to vector<64x160xf32>
    %47 = vector.extract_strided_slice %44 {offsets = [2, 0], sizes = [64, 160], strides = [1, 1]} : vector<72x160xf32> to vector<64x160xf32>
    %48 = vector.extract_strided_slice %44 {offsets = [3, 0], sizes = [64, 160], strides = [1, 1]} : vector<72x160xf32> to vector<64x160xf32>
    %49 = vector.extract_strided_slice %44 {offsets = [4, 0], sizes = [64, 160], strides = [1, 1]} : vector<72x160xf32> to vector<64x160xf32>
    %50 = tpu.concatenate %45, %46, %47, %48, %49 in 1 : vector<64x160xf32>, vector<64x160xf32>, vector<64x160xf32>, vector<64x160xf32>, vector<64x160xf32> -> vector<64x800xf32>
    %c0_24 = arith.constant 0 : index
    %c0_25 = arith.constant 0 : index
    %51 = vector.load %arg10[%c0_24, %c0_25] : memref<8x64xf32, #tpu.memory_space<vmem>>, vector<8x64xf32>
    %cst_26 = arith.constant dense<0.000000e+00> : vector<8x800xf32>
    %52 = tpu.matmul %51, %50, %cst_26 {dimension_numbers = #tpu.dot_dimension_numbers<[1], [0], [0], [1], [0, 0, 1, 1], [], []>} : vector<8x64xf32>, vector<64x800xf32>, vector<8x800xf32> -> vector<8x800xf32>
    %c0_27 = arith.constant 0 : index
    %c0_28 = arith.constant 0 : index
    %53 = vector.load %arg11[%c0_27, %c0_28] : memref<800x120xf32, #tpu.memory_space<vmem>>, vector<800x120xf32>
    %cst_29 = arith.constant dense<0.000000e+00> : vector<8x120xf32>
    %54 = tpu.matmul %52, %53, %cst_29 {dimension_numbers = #tpu.dot_dimension_numbers<[1], [0], [0], [1], [0, 0, 1, 1], [], []>} : vector<8x800xf32>, vector<800x120xf32>, vector<8x120xf32> -> vector<8x120xf32>
    %c0_30 = arith.constant 0 : index
    %c0_31 = arith.constant 0 : index
    %55 = vector.load %arg12[%c0_30, %c0_31] : memref<1x120xf32, #tpu.memory_space<vmem>>, vector<1x120xf32>
    %56 = vector.broadcast %55 : vector<1x120xf32> to vector<8x120xf32>
    %57 = arith.addf %54, %56 : vector<8x120xf32>
    %cst_32 = arith.constant 0.000000e+00 : f32
    %58 = vector.broadcast %cst_32 : f32 to vector<8x120xf32>
    %59 = arith.maximumf %57, %58 : vector<8x120xf32>
    %c0_33 = arith.constant 0 : index
    %c0_34 = arith.constant 0 : index
    %60 = vector.load %arg13[%c0_33, %c0_34] : memref<120x84xf32, #tpu.memory_space<vmem>>, vector<120x84xf32>
    %cst_35 = arith.constant dense<0.000000e+00> : vector<8x84xf32>
    %61 = tpu.matmul %59, %60, %cst_35 {dimension_numbers = #tpu.dot_dimension_numbers<[1], [0], [0], [1], [0, 0, 1, 1], [], []>} : vector<8x120xf32>, vector<120x84xf32>, vector<8x84xf32> -> vector<8x84xf32>
    %c0_36 = arith.constant 0 : index
    %c0_37 = arith.constant 0 : index
    %62 = vector.load %arg14[%c0_36, %c0_37] : memref<1x84xf32, #tpu.memory_space<vmem>>, vector<1x84xf32>
    %63 = vector.broadcast %62 : vector<1x84xf32> to vector<8x84xf32>
    %64 = arith.addf %61, %63 : vector<8x84xf32>
    %cst_38 = arith.constant 0.000000e+00 : f32
    %65 = vector.broadcast %cst_38 : f32 to vector<8x84xf32>
    %66 = arith.maximumf %64, %65 : vector<8x84xf32>
    %c0_39 = arith.constant 0 : index
    %c0_40 = arith.constant 0 : index
    %67 = vector.load %arg15[%c0_39, %c0_40] : memref<84x10xf32, #tpu.memory_space<vmem>>, vector<84x10xf32>
    %cst_41 = arith.constant dense<0.000000e+00> : vector<8x10xf32>
    %68 = tpu.matmul %66, %67, %cst_41 {dimension_numbers = #tpu.dot_dimension_numbers<[1], [0], [0], [1], [0, 0, 1, 1], [], []>} : vector<8x84xf32>, vector<84x10xf32>, vector<8x10xf32> -> vector<8x10xf32>
    %c0_42 = arith.constant 0 : index
    %c0_43 = arith.constant 0 : index
    %69 = vector.load %arg16[%c0_42, %c0_43] : memref<1x10xf32, #tpu.memory_space<vmem>>, vector<1x10xf32>
    %70 = vector.broadcast %69 : vector<1x10xf32> to vector<8x10xf32>
    %71 = arith.addf %68, %70 : vector<8x10xf32>
    %cst_44 = arith.constant dense<0xFF800000> : vector<8xf32>
    %72 = vector.multi_reduction <maximumf>, %71, %cst_44 [1] : vector<8x10xf32> to vector<8xf32>
    %73 = vector.shape_cast %72 : vector<8xf32> to vector<8x1xf32>
    %74 = vector.broadcast %73 : vector<8x1xf32> to vector<8x10xf32>
    %75 = arith.subf %71, %74 : vector<8x10xf32>
    %76 = math.exp %75 : vector<8x10xf32>
    %cst_45 = arith.constant dense<0.000000e+00> : vector<8xf32>
    %77 = vector.multi_reduction <add>, %76, %cst_45 [1] : vector<8x10xf32> to vector<8xf32>
    %78 = vector.shape_cast %77 : vector<8xf32> to vector<8x1xf32>
    %79 = math.log %78 : vector<8x1xf32>
    %80 = vector.broadcast %79 : vector<8x1xf32> to vector<8x10xf32>
    %81 = arith.subf %75, %80 : vector<8x10xf32>
    %c0_46 = arith.constant 0 : index
    %c0_47 = arith.constant 0 : index
    %82 = vector.load %arg17[%c0_46, %c0_47] : memref<8x10xf32, #tpu.memory_space<vmem>>, vector<8x10xf32>
    tpu.vector_store %arg17[%c0_46, %c0_47], %81 {strides = array<i32>} : memref<8x10xf32, #tpu.memory_space<vmem>>, vector<8x10xf32>,
    return
  }
  func.func @transform_0(%arg0: i32) -> (i32, i32) {
    %c0_i32 = arith.constant 0 : i32
    %c0_i32_0 = arith.constant 0 : i32
    return %arg0, %c0_i32 : i32, i32
  }
  func.func @transform_1(%arg0: i32) -> (i32, i32) {
    %c0_i32 = arith.constant 0 : i32
    %c0_i32_0 = arith.constant 0 : i32
    %c0_i32_1 = arith.constant 0 : i32
    return %c0_i32, %c0_i32_0 : i32, i32
  }
  func.func @transform_2(%arg0: i32) -> (i32, i32) {
    %c0_i32 = arith.constant 0 : i32
    %c0_i32_0 = arith.constant 0 : i32
    %c0_i32_1 = arith.constant 0 : i32
    return %c0_i32, %c0_i32_0 : i32, i32
  }
  func.func @transform_3(%arg0: i32) -> (i32, i32) {
    %c0_i32 = arith.constant 0 : i32
    %c0_i32_0 = arith.constant 0 : i32
    %c0_i32_1 = arith.constant 0 : i32
    return %c0_i32, %c0_i32_0 : i32, i32
  }
  func.func @transform_4(%arg0: i32) -> (i32, i32) {
    %c0_i32 = arith.constant 0 : i32
    %c0_i32_0 = arith.constant 0 : i32
    %c0_i32_1 = arith.constant 0 : i32
    return %c0_i32, %c0_i32_0 : i32, i32
  }
  func.func @transform_5(%arg0: i32) -> (i32, i32) {
    %c0_i32 = arith.constant 0 : i32
    %c0_i32_0 = arith.constant 0 : i32
    %c0_i32_1 = arith.constant 0 : i32
    return %c0_i32, %c0_i32_0 : i32, i32
  }
  func.func @transform_6(%arg0: i32) -> (i32, i32) {
    %c0_i32 = arith.constant 0 : i32
    %c0_i32_0 = arith.constant 0 : i32
    %c0_i32_1 = arith.constant 0 : i32
    return %c0_i32, %c0_i32_0 : i32, i32
  }
  func.func @transform_7(%arg0: i32) -> (i32, i32) {
    %c0_i32 = arith.constant 0 : i32
    %c0_i32_0 = arith.constant 0 : i32
    %c0_i32_1 = arith.constant 0 : i32
    return %c0_i32, %c0_i32_0 : i32, i32
  }
  func.func @transform_8(%arg0: i32) -> (i32, i32) {
    %c0_i32 = arith.constant 0 : i32
    %c0_i32_0 = arith.constant 0 : i32
    %c0_i32_1 = arith.constant 0 : i32
    return %c0_i32, %c0_i32_0 : i32, i32
  }
  func.func @transform_9(%arg0: i32) -> (i32, i32) {
    %c0_i32 = arith.constant 0 : i32
    %c0_i32_0 = arith.constant 0 : i32
    %c0_i32_1 = arith.constant 0 : i32
    return %c0_i32, %c0_i32_0 : i32, i32
  }
  func.func @transform_10(%arg0: i32) -> (i32, i32) {
    %c0_i32 = arith.constant 0 : i32
    %c0_i32_0 = arith.constant 0 : i32
    %c0_i32_1 = arith.constant 0 : i32
    return %c0_i32, %c0_i32_0 : i32, i32
  }
  func.func @transform_11(%arg0: i32) -> (i32, i32) {
    %c0_i32 = arith.constant 0 : i32
    %c0_i32_0 = arith.constant 0 : i32
    %c0_i32_1 = arith.constant 0 : i32
    return %c0_i32, %c0_i32_0 : i32, i32
  }
  func.func @transform_12(%arg0: i32) -> (i32, i32) {
    %c0_i32 = arith.constant 0 : i32
    %c0_i32_0 = arith.constant 0 : i32
    %c0_i32_1 = arith.constant 0 : i32
    return %c0_i32, %c0_i32_0 : i32, i32
  }
  func.func @transform_13(%arg0: i32) -> (i32, i32) {
    %c0_i32 = arith.constant 0 : i32
    %c0_i32_0 = arith.constant 0 : i32
    %c0_i32_1 = arith.constant 0 : i32
    return %c0_i32, %c0_i32_0 : i32, i32
  }
  func.func @transform_14(%arg0: i32) -> (i32, i32) {
    %c0_i32 = arith.constant 0 : i32
    %c0_i32_0 = arith.constant 0 : i32
    %c0_i32_1 = arith.constant 0 : i32
    return %c0_i32, %c0_i32_0 : i32, i32
  }
  func.func @transform_15(%arg0: i32) -> (i32, i32) {
    %c0_i32 = arith.constant 0 : i32
    %c0_i32_0 = arith.constant 0 : i32
    %c0_i32_1 = arith.constant 0 : i32
    return %c0_i32, %c0_i32_0 : i32, i32
  }
  func.func @transform_16(%arg0: i32) -> (i32, i32) {
    %c0_i32 = arith.constant 0 : i32
    %c0_i32_0 = arith.constant 0 : i32
    return %arg0, %c0_i32 : i32, i32
  }
}

</mosaic_0001>

<llo_original>
// kernel: classifier_forward.1
$region0: #{classifier_forward.1}
  #allocation0 [shape = 'u32[]', space=smem, size = 0x4, offset = 0x4, fixed_abs, tag = 'smem constant byte address 0x4 - core index']
  #allocation1 [shape = 'u32[144,128]{1,0:T(1,128)}', space=vmem, size = 0x12000, scoped, tag = 'internal scratch']
  %s0 = inlined_call_operand.vmem [shape: f32[264,32], index: 0, kind: input, shape index: {}]
  %s1 = inlined_call_operand.vmem [shape: f32[160,168], index: 1, kind: input, shape index: {}]
  %s2 = inlined_call_operand.vmem [shape: f32[1,168], index: 2, kind: input, shape index: {}]
  %s3 = inlined_call_operand.vmem [shape: f32[136,256], index: 3, kind: input, shape index: {}]
  %s4 = inlined_call_operand.vmem [shape: f32[136,256], index: 4, kind: input, shape index: {}]
  %s5 = inlined_call_operand.vmem [shape: f32[840,160], index: 5, kind: input, shape index: {}]
  %s6 = inlined_call_operand.vmem [shape: f32[1,160], index: 6, kind: input, shape index: {}]
  %s7 = inlined_call_operand.vmem [shape: f32[72,128], index: 7, kind: input, shape index: {}]
  %s8 = inlined_call_operand.vmem [shape: f32[72,128], index: 8, kind: input, shape index: {}]
  %s9 = inlined_call_operand.vmem [shape: f32[8,64], index: 9, kind: input, shape index: {}]
  %s10 = inlined_call_operand.vmem [shape: f32[800,120], index: 10, kind: input, shape index: {}]
  %s11 = inlined_call_operand.vmem [shape: f32[1,120], index: 11, kind: input, shape index: {}]
  %s12 = inlined_call_operand.vmem [shape: f32[120,84], index: 12, kind: input, shape index: {}]
  %s13 = inlined_call_operand.vmem [shape: f32[1,84], index: 13, kind: input, shape index: {}]
  %s14 = inlined_call_operand.vmem [shape: f32[84,10], index: 14, kind: input, shape index: {}]
  %s15 = inlined_call_operand.vmem [shape: f32[1,10], index: 15, kind: input, shape index: {}]
  %s16 = inlined_call_operand.vmem [shape: f32[8,10], index: 16, kind: output, shape index: {}]
  %s17 = sld [smem:[#allocation0]]
  $region74: #{classifier_forward.1} parent=0
    _
  %s19 = ssub.s32 1, %s17
  %s20 = scalar_select 0, %s19, %s17
  // Predicated region
  $region2: #{classifier_forward.1} parent=0 // pred_check
    _
  $region3: #{classifier_forward.1} parent=0 // pred_check_branch
    %22 = sbr.rel (0) target = $region5
  $region4: #{classifier_forward.1} parent=0 // pred_region
    _
  $region5: #{classifier_forward.1} parent=0 // pred_fallthru
    _
  // Predicated region
  $region6: #{classifier_forward.1} parent=0 // pred_check
    _
  $region7: #{classifier_forward.1} parent=0 // pred_check_branch
    %24 = sbr.rel (0) target = $region9
  $region8: #{classifier_forward.1} parent=0 // pred_region
    _
  $region9: #{classifier_forward.1} parent=0 // pred_fallthru
    _
  // Predicated region
  $region10: #{classifier_forward.1} parent=0 // pred_check
    _
  $region11: #{classifier_forward.1} parent=0 // pred_check_branch
    %26 = sbr.rel (0) target = $region13
  $region12: #{classifier_forward.1} parent=0 // pred_region
    _
  $region13: #{classifier_forward.1} parent=0 // pred_fallthru
    _
  // Predicated region
  $region14: #{classifier_forward.1} parent=0 // pred_check
    _
  $region15: #{classifier_forward.1} parent=0 // pred_check_branch
    %28 = sbr.rel (0) target = $region17
  $region16: #{classifier_forward.1} parent=0 // pred_region
    _
  $region17: #{classifier_forward.1} parent=0 // pred_fallthru
    _
  // Predicated region
  $region18: #{classifier_forward.1} parent=0 // pred_check
    _
  $region19: #{classifier_forward.1} parent=0 // pred_check_branch
    %30 = sbr.rel (0) target = $region21
  $region20: #{classifier_forward.1} parent=0 // pred_region
    _
  $region21: #{classifier_forward.1} parent=0 // pred_fallthru
    _
  // Predicated region
  $region22: #{classifier_forward.1} parent=0 // pred_check
    _
  $region23: #{classifier_forward.1} parent=0 // pred_check_branch
    %32 = sbr.rel (0) target = $region25
  $region24: #{classifier_forward.1} parent=0 // pred_region
    _
  $region25: #{classifier_forward.1} parent=0 // pred_fallthru
    _
  // Predicated region
  $region26: #{classifier_forward.1} parent=0 // pred_check
    _
  $region27: #{classifier_forward.1} parent=0 // pred_check_branch
    %34 = sbr.rel (0) target = $region29
  $region28: #{classifier_forward.1} parent=0 // pred_region
    _
  $region29: #{classifier_forward.1} parent=0 // pred_fallthru
    _
  // Predicated region
  $region30: #{classifier_forward.1} parent=0 // pred_check
    _
  $region31: #{classifier_forward.1} parent=0 // pred_check_branch
    %36 = sbr.rel (0) target = $region33
  $region32: #{classifier_forward.1} parent=0 // pred_region
    _
  $region33: #{classifier_forward.1} parent=0 // pred_fallthru
    _
  // Predicated region
  $region34: #{classifier_forward.1} parent=0 // pred_check
    _
  $region35: #{classifier_forward.1} parent=0 // pred_check_branch
    %38 = sbr.rel (0) target = $region37
  $region36: #{classifier_forward.1} parent=0 // pred_region
    _
  $region37: #{classifier_forward.1} parent=0 // pred_fallthru
    _
  // Predicated region
  $region38: #{classifier_forward.1} parent=0 // pred_check
    _
  $region39: #{classifier_forward.1} parent=0 // pred_check_branch
    %40 = sbr.rel (0) target = $region41
  $region40: #{classifier_forward.1} parent=0 // pred_region
    _
  $region41: #{classifier_forward.1} parent=0 // pred_fallthru
    _
  // Predicated region
  $region42: #{classifier_forward.1} parent=0 // pred_check
    _
  $region43: #{classifier_forward.1} parent=0 // pred_check_branch
    %42 = sbr.rel (0) target = $region45
  $region44: #{classifier_forward.1} parent=0 // pred_region
    _
  $region45: #{classifier_forward.1} parent=0 // pred_fallthru
    _
  // Predicated region
  $region46: #{classifier_forward.1} parent=0 // pred_check
    _
  $region47: #{classifier_forward.1} parent=0 // pred_check_branch
    %44 = sbr.rel (0) target = $region49
  $region48: #{classifier_forward.1} parent=0 // pred_region
    _
  $region49: #{classifier_forward.1} parent=0 // pred_fallthru
    _
  // Predicated region
  $region50: #{classifier_forward.1} parent=0 // pred_check
    _
  $region51: #{classifier_forward.1} parent=0 // pred_check_branch
    %46 = sbr.rel (0) target = $region53
  $region52: #{classifier_forward.1} parent=0 // pred_region
    _
  $region53: #{classifier_forward.1} parent=0 // pred_fallthru
    _
  // Predicated region
  $region54: #{classifier_forward.1} parent=0 // pred_check
    _
  $region55: #{classifier_forward.1} parent=0 // pred_check_branch
    %48 = sbr.rel (0) target = $region57
  $region56: #{classifier_forward.1} parent=0 // pred_region
    _
  $region57: #{classifier_forward.1} parent=0 // pred_fallthru
    _
  // Predicated region
  $region58: #{classifier_forward.1} parent=0 // pred_check
    _
  $region59: #{classifier_forward.1} parent=0 // pred_check_branch
    %50 = sbr.rel (0) target = $region61
  $region60: #{classifier_forward.1} parent=0 // pred_region
    _
  $region61: #{classifier_forward.1} parent=0 // pred_fallthru
    _
  // Predicated region
  $region62: #{classifier_forward.1} parent=0 // pred_check
    _
  $region63: #{classifier_forward.1} parent=0 // pred_check_branch
    %52 = sbr.rel (0) target = $region65
  $region64: #{classifier_forward.1} parent=0 // pred_region
    _
  $region65: #{classifier_forward.1} parent=0 // pred_fallthru
    _
  %v53 = vld [vmem:[%s0] sm:$0xff]
  %v54 = vld [vmem:[%s0 + $0x8] sm:$0xff]
  %v55 = vld [vmem:[%s0 + $0x10] sm:$0xff]
  %v56 = vld [vmem:[%s0 + $0x18] sm:$0xff]
  %v57 = vld [vmem:[%s0 + $0x20] sm:$0xff]
  %v58 = vld [vmem:[%s0 + $0x28] sm:$0xff]
  %v59 = vld [vmem:[%s0 + $0x30] sm:$0xff]
  %v60 = vld [vmem:[%s0 + $0x38] sm:$0xff]
  %v61 = vld [vmem:[%s0 + $0x40] sm:$0xff]
  %v62 = vld [vmem:[%s0 + $0x48] sm:$0xff]
  %v63 = vld [vmem:[%s0 + $0x50] sm:$0xff]
  %v64 = vld [vmem:[%s0 + $0x58] sm:$0xff]
  %v65 = vld [vmem:[%s0 + $0x60] sm:$0xff]
  %v66 = vld [vmem:[%s0 + $0x68] sm:$0xff]
  %v67 = vld [vmem:[%s0 + $0x70] sm:$0xff]
  %v68 = vld [vmem:[%s0 + $0x78] sm:$0xff]
  %v69 = vld [vmem:[%s0 + $0x80] sm:$0xff]
  %v70 = vld [vmem:[%s0 + $0x88] sm:$0xff]
  %v71 = vld [vmem:[%s0 + $0x90] sm:$0xff]
  %v72 = vld [vmem:[%s0 + $0x98] sm:$0xff]
  %v73 = vld [vmem:[%s0 + $0xa0] sm:$0xff]
  %v74 = vld [vmem:[%s0 + $0xa8] sm:$0xff]
  %v75 = vld [vmem:[%s0 + $0xb0] sm:$0xff]
  %v76 = vld [vmem:[%s0 + $0xb8] sm:$0xff]
  %v77 = vld [vmem:[%s0 + $0xc0] sm:$0xff]
  %v78 = vld [vmem:[%s0 + $0xc8] sm:$0xff]
  %v79 = vld [vmem:[%s0 + $0xd0] sm:$0xff]
  %v80 = vld [vmem:[%s0 + $0xd8] sm:$0xff]
  %v81 = vld [vmem:[%s0 + $0xe0] sm:$0xff]
  %v82 = vld [vmem:[%s0 + $0xe8] sm:$0xff]
  %v83 = vld [vmem:[%s0 + $0xf0] sm:$0xff]
  %v84 = vld [vmem:[%s0 + $0xf8] sm:$0xff]
  %v85 = vld [vmem:[%s0 + $0x100] sm:$0xff]
  %vm119 = vcmask 1046528
  %v120 = vrot.slane %v53, 1
  %v121 = vrot.slane %v54, 1
  %v122 = vsel %vm119, %v120, %v121
  %v123 = vrot.slane %v55, 1
  %v124 = vsel %vm119, %v121, %v123
  %v125 = vrot.slane %v56, 1
  %v126 = vsel %vm119, %v123, %v125
  %v127 = vrot.slane %v57, 1
  %v128 = vsel %vm119, %v125, %v127
  %v129 = vrot.slane %v58, 1
  %v130 = vsel %vm119, %v127, %v129
  %v131 = vrot.slane %v59, 1
  %v132 = vsel %vm119, %v129, %v131
  %v133 = vrot.slane %v60, 1
  %v134 = vsel %vm119, %v131, %v133
  %v135 = vrot.slane %v61, 1
  %v136 = vsel %vm119, %v133, %v135
  %v137 = vrot.slane %v62, 1
  %v138 = vsel %vm119, %v135, %v137
  %v139 = vrot.slane %v63, 1
  %v140 = vsel %vm119, %v137, %v139
  %v141 = vrot.slane %v64, 1
  %v142 = vsel %vm119, %v139, %v141
  %v143 = vrot.slane %v65, 1
  %v144 = vsel %vm119, %v141, %v143
  %v145 = vrot.slane %v66, 1
  %v146 = vsel %vm119, %v143, %v145
  %v147 = vrot.slane %v67, 1
  %v148 = vsel %vm119, %v145, %v147
  %v149 = vrot.slane %v68, 1
  %v150 = vsel %vm119, %v147, %v149
  %v151 = vrot.slane %v69, 1
  %v152 = vsel %vm119, %v149, %v151
  %v153 = vrot.slane %v70, 1
  %v154 = vsel %vm119, %v151, %v153
  %v155 = vrot.slane %v71, 1
  %v156 = vsel %vm119, %v153, %v155
  %v157 = vrot.slane %v72, 1
  %v158 = vsel %vm119, %v155, %v157
  %v159 = vrot.slane %v73, 1
  %v160 = vsel %vm119, %v157, %v159
  %v161 = vrot.slane %v74, 1
  %v162 = vsel %vm119, %v159, %v161
  %v163 = vrot.slane %v75, 1
  %v164 = vsel %vm119, %v161, %v163
  %v165 = vrot.slane %v76, 1
  %v166 = vsel %vm119, %v163, %v165
  %v167 = vrot.slane %v77, 1
  %v168 = vsel %vm119, %v165, %v167
  %v169 = vrot.slane %v78, 1
  %v170 = vsel %vm119, %v167, %v169
  %v171 = vrot.slane %v79, 1
  %v172 = vsel %vm119, %v169, %v171
  %v173 = vrot.slane %v80, 1
  %v174 = vsel %vm119, %v171, %v173
  %v175 = vrot.slane %v81, 1
  %v176 = vsel %vm119, %v173, %v175
  %v177 = vrot.slane %v82, 1
  %v178 = vsel %vm119, %v175, %v177
  %v179 = vrot.slane %v83, 1
  %v180 = vsel %vm119, %v177, %v179
  %v181 = vrot.slane %v84, 1
  %v182 = vsel %vm119, %v179, %v181
  %v183 = vrot.slane %v85, 1
  %v184 = vsel %vm119, %v181, %v183
  %185 = vrot.lane.b32.xlu0 %v122, 32
  %v186 = vpop.permute.xlu0 %185
  %187 = vrot.lane.b32.xlu0 %v124, 32
  %v188 = vpop.permute.xlu0 %187
  %189 = vrot.lane.b32.xlu0 %v126, 32
  %v190 = vpop.permute.xlu0 %189
  %191 = vrot.lane.b32.xlu0 %v128, 32
  %v192 = vpop.permute.xlu0 %191
  %193 = vrot.lane.b32.xlu0 %v130, 32
  %v194 = vpop.permute.xlu0 %193
  %195 = vrot.lane.b32.xlu0 %v132, 32
  %v196 = vpop.permute.xlu0 %195
  %197 = vrot.lane.b32.xlu0 %v134, 32
  %v198 = vpop.permute.xlu0 %197
  %199 = vrot.lane.b32.xlu0 %v136, 32
  %v200 = vpop.permute.xlu0 %199
  %201 = vrot.lane.b32.xlu0 %v138, 32
  %v202 = vpop.permute.xlu0 %201
  %203 = vrot.lane.b32.xlu0 %v140, 32
  %v204 = vpop.permute.xlu0 %203
  %205 = vrot.lane.b32.xlu0 %v142, 32
  %v206 = vpop.permute.xlu0 %205
  %207 = vrot.lane.b32.xlu0 %v144, 32
  %v208 = vpop.permute.xlu0 %207
  %209 = vrot.lane.b32.xlu0 %v146, 32
  %v210 = vpop.permute.xlu0 %209
  %211 = vrot.lane.b32.xlu0 %v148, 32
  %v212 = vpop.permute.xlu0 %211
  %213 = vrot.lane.b32.xlu0 %v150, 32
  %v214 = vpop.permute.xlu0 %213
  %215 = vrot.lane.b32.xlu0 %v152, 32
  %v216 = vpop.permute.xlu0 %215
  %217 = vrot.lane.b32.xlu0 %v154, 32
  %v218 = vpop.permute.xlu0 %217
  %219 = vrot.lane.b32.xlu0 %v156, 32
  %v220 = vpop.permute.xlu0 %219
  %221 = vrot.lane.b32.xlu0 %v158, 32
  %v222 = vpop.permute.xlu0 %221
  %223 = vrot.lane.b32.xlu0 %v160, 32
  %v224 = vpop.permute.xlu0 %223
  %225 = vrot.lane.b32.xlu0 %v162, 32
  %v226 = vpop.permute.xlu0 %225
  %227 = vrot.lane.b32.xlu0 %v164, 32
  %v228 = vpop.permute.xlu0 %227
  %229 = vrot.lane.b32.xlu0 %v166, 32
  %v230 = vpop.permute.xlu0 %229
  %231 = vrot.lane.b32.xlu0 %v168, 32
  %v232 = vpop.permute.xlu0 %231
  %233 = vrot.lane.b32.xlu0 %v170, 32
  %v234 = vpop.permute.xlu0 %233
  %235 = vrot.lane.b32.xlu0 %v172, 32
  %v236 = vpop.permute.xlu0 %235
  %237 = vrot.lane.b32.xlu0 %v174, 32
  %v238 = vpop.permute.xlu0 %237
  %239 = vrot.lane.b32.xlu0 %v176, 32
  %v240 = vpop.permute.xlu0 %239
  %241 = vrot.lane.b32.xlu0 %v178, 32
  %v242 = vpop.permute.xlu0 %241
  %243 = vrot.lane.b32.xlu0 %v180, 32
  %v244 = vpop.permute.xlu0 %243
  %245 = vrot.lane.b32.xlu0 %v182, 32
  %v246 = vpop.permute.xlu0 %245
  %247 = vrot.lane.b32.xlu0 %v184, 32
  %v248 = vpop.permute.xlu0 %247
  %vm281 = vcmask 1045504
  %v282 = vrot.slane %v53, 2
  %v283 = vrot.slane %v54, 2
  %v284 = vsel %vm281, %v282, %v283
  %v285 = vrot.slane %v55, 2
  %v286 = vsel %vm281, %v283, %v285
  %v287 = vrot.slane %v56, 2
  %v288 = vsel %vm281, %v285, %v287
  %v289 = vrot.slane %v57, 2
  %v290 = vsel %vm281, %v287, %v289
  %v291 = vrot.slane %v58, 2
  %v292 = vsel %vm281, %v289, %v291
  %v293 = vrot.slane %v59, 2
  %v294 = vsel %vm281, %v291, %v293
  %v295 = vrot.slane %v60, 2
  %v296 = vsel %vm281, %v293, %v295
  %v297 = vrot.slane %v61, 2
  %v298 = vsel %vm281, %v295, %v297
  %v299 = vrot.slane %v62, 2
  %v300 = vsel %vm281, %v297, %v299
  %v301 = vrot.slane %v63, 2
  %v302 = vsel %vm281, %v299, %v301
  %v303 = vrot.slane %v64, 2
  %v304 = vsel %vm281, %v301, %v303
  %v305 = vrot.slane %v65, 2
  %v306 = vsel %vm281, %v303, %v305
  %v307 = vrot.slane %v66, 2
  %v308 = vsel %vm281, %v305, %v307
  %v309 = vrot.slane %v67, 2
  %v310 = vsel %vm281, %v307, %v309
  %v311 = vrot.slane %v68, 2
  %v312 = vsel %vm281, %v309, %v311
  %v313 = vrot.slane %v69, 2
  %v314 = vsel %vm281, %v311, %v313
  %v315 = vrot.slane %v70, 2
  %v316 = vsel %vm281, %v313, %v315
  %v317 = vrot.slane %v71, 2
  %v318 = vsel %vm281, %v315, %v317
  %v319 = vrot.slane %v72, 2
  %v320 = vsel %vm281, %v317, %v319
  %v321 = vrot.slane %v73, 2
  %v322 = vsel %vm281, %v319, %v321
  %v323 = vrot.slane %v74, 2
  %v324 = vsel %vm281, %v321, %v323
  %v325 = vrot.slane %v75, 2
  %v326 = vsel %vm281, %v323, %v325
  %v327 = vrot.slane %v76, 2
  %v328 = vsel %vm281, %v325, %v327
  %v329 = vrot.slane %v77, 2
  %v330 = vsel %vm281, %v327, %v329
  %v331 = vrot.slane %v78, 2
  %v332 = vsel %vm281, %v329, %v331
  %v333 = vrot.slane %v79, 2
  %v334 = vsel %vm281, %v331, %v333
  %v335 = vrot.slane %v80, 2
  %v336 = vsel %vm281, %v333, %v335
  %v337 = vrot.slane %v81, 2
  %v338 = vsel %vm281, %v335, %v337
  %v339 = vrot.slane %v82, 2
  %v340 = vsel %vm281, %v337, %v339
  %v341 = vrot.slane %v83, 2
  %v342 = vsel %vm281, %v339, %v341
  %v343 = vrot.slane %v84, 2
  %v344 = vsel %vm281, %v341, %v343
  %v345 = vrot.slane %v85, 2
  %v346 = vsel %vm281, %v343, %v345
  %347 = vrot.lane.b32.xlu0 %v284, 64
  %v348 = vpop.permute.xlu0 %347
  %349 = vrot.lane.b32.xlu0 %v286, 64
  %v350 = vpop.permute.xlu0 %349
  %351 = vrot.lane.b32.xlu0 %v288, 64
  %v352 = vpop.permute.xlu0 %351
  %353 = vrot.lane.b32.xlu0 %v290, 64
  %v354 = vpop.permute.xlu0 %353
  %355 = vrot.lane.b32.xlu0 %v292, 64
  %v356 = vpop.permute.xlu0 %355
  %357 = vrot.lane.b32.xlu0 %v294, 64
  %v358 = vpop.permute.xlu0 %357
  %359 = vrot.lane.b32.xlu0 %v296, 64
  %v360 = vpop.permute.xlu0 %359
  %361 = vrot.lane.b32.xlu0 %v298, 64
  %v362 = vpop.permute.xlu0 %361
  %363 = vrot.lane.b32.xlu0 %v300, 64
  %v364 = vpop.permute.xlu0 %363
  %365 = vrot.lane.b32.xlu0 %v302, 64
  %v366 = vpop.permute.xlu0 %365
  %367 = vrot.lane.b32.xlu0 %v304, 64
  %v368 = vpop.permute.xlu0 %367
  %369 = vrot.lane.b32.xlu0 %v306, 64
  %v370 = vpop.permute.xlu0 %369
  %371 = vrot.lane.b32.xlu0 %v308, 64
  %v372 = vpop.permute.xlu0 %371
  %373 = vrot.lane.b32.xlu0 %v310, 64
  %v374 = vpop.permute.xlu0 %373
  %375 = vrot.lane.b32.xlu0 %v312, 64
  %v376 = vpop.permute.xlu0 %375
  %377 = vrot.lane.b32.xlu0 %v314, 64
  %v378 = vpop.permute.xlu0 %377
  %379 = vrot.lane.b32.xlu0 %v316, 64
  %v380 = vpop.permute.xlu0 %379
  %381 = vrot.lane.b32.xlu0 %v318, 64
  %v382 = vpop.permute.xlu0 %381
  %383 = vrot.lane.b32.xlu0 %v320, 64
  %v384 = vpop.permute.xlu0 %383
  %385 = vrot.lane.b32.xlu0 %v322, 64
  %v386 = vpop.permute.xlu0 %385
  %387 = vrot.lane.b32.xlu0 %v324, 64
  %v388 = vpop.permute.xlu0 %387
  %389 = vrot.lane.b32.xlu0 %v326, 64
  %v390 = vpop.permute.xlu0 %389
  %391 = vrot.lane.b32.xlu0 %v328, 64
  %v392 = vpop.permute.xlu0 %391
  %393 = vrot.lane.b32.xlu0 %v330, 64
  %v394 = vpop.permute.xlu0 %393
  %395 = vrot.lane.b32.xlu0 %v332, 64
  %v396 = vpop.permute.xlu0 %395
  %397 = vrot.lane.b32.xlu0 %v334, 64
  %v398 = vpop.permute.xlu0 %397
  %399 = vrot.lane.b32.xlu0 %v336, 64
  %v400 = vpop.permute.xlu0 %399
  %401 = vrot.lane.b32.xlu0 %v338, 64
  %v402 = vpop.permute.xlu0 %401
  %403 = vrot.lane.b32.xlu0 %v340, 64
  %v404 = vpop.permute.xlu0 %403
  %405 = vrot.lane.b32.xlu0 %v342, 64
  %v406 = vpop.permute.xlu0 %405
  %407 = vrot.lane.b32.xlu0 %v344, 64
  %v408 = vpop.permute.xlu0 %407
  %409 = vrot.lane.b32.xlu0 %v346, 64
  %v410 = vpop.permute.xlu0 %409
  %vm443 = vcmask 1044480
  %v444 = vrot.slane %v53, 3
  %v445 = vrot.slane %v54, 3
  %v446 = vsel %vm443, %v444, %v445
  %v447 = vrot.slane %v55, 3
  %v448 = vsel %vm443, %v445, %v447
  %v449 = vrot.slane %v56, 3
  %v450 = vsel %vm443, %v447, %v449
  %v451 = vrot.slane %v57, 3
  %v452 = vsel %vm443, %v449, %v451
  %v453 = vrot.slane %v58, 3
  %v454 = vsel %vm443, %v451, %v453
  %v455 = vrot.slane %v59, 3
  %v456 = vsel %vm443, %v453, %v455
  %v457 = vrot.slane %v60, 3
  %v458 = vsel %vm443, %v455, %v457
  %v459 = vrot.slane %v61, 3
  %v460 = vsel %vm443, %v457, %v459
  %v461 = vrot.slane %v62, 3
  %v462 = vsel %vm443, %v459, %v461
  %v463 = vrot.slane %v63, 3
  %v464 = vsel %vm443, %v461, %v463
  %v465 = vrot.slane %v64, 3
  %v466 = vsel %vm443, %v463, %v465
  %v467 = vrot.slane %v65, 3
  %v468 = vsel %vm443, %v465, %v467
  %v469 = vrot.slane %v66, 3
  %v470 = vsel %vm443, %v467, %v469
  %v471 = vrot.slane %v67, 3
  %v472 = vsel %vm443, %v469, %v471
  %v473 = vrot.slane %v68, 3
  %v474 = vsel %vm443, %v471, %v473
  %v475 = vrot.slane %v69, 3
  %v476 = vsel %vm443, %v473, %v475
  %v477 = vrot.slane %v70, 3
  %v478 = vsel %vm443, %v475, %v477
  %v479 = vrot.slane %v71, 3
  %v480 = vsel %vm443, %v477, %v479
  %v481 = vrot.slane %v72, 3
  %v482 = vsel %vm443, %v479, %v481
  %v483 = vrot.slane %v73, 3
  %v484 = vsel %vm443, %v481, %v483
  %v485 = vrot.slane %v74, 3
  %v486 = vsel %vm443, %v483, %v485
  %v487 = vrot.slane %v75, 3
  %v488 = vsel %vm443, %v485, %v487
  %v489 = vrot.slane %v76, 3
  %v490 = vsel %vm443, %v487, %v489
  %v491 = vrot.slane %v77, 3
  %v492 = vsel %vm443, %v489, %v491
  %v493 = vrot.slane %v78, 3
  %v494 = vsel %vm443, %v491, %v493
  %v495 = vrot.slane %v79, 3
  %v496 = vsel %vm443, %v493, %v495
  %v497 = vrot.slane %v80, 3
  %v498 = vsel %vm443, %v495, %v497
  %v499 = vrot.slane %v81, 3
  %v500 = vsel %vm443, %v497, %v499
  %v501 = vrot.slane %v82, 3
  %v502 = vsel %vm443, %v499, %v501
  %v503 = vrot.slane %v83, 3
  %v504 = vsel %vm443, %v501, %v503
  %v505 = vrot.slane %v84, 3
  %v506 = vsel %vm443, %v503, %v505
  %v507 = vrot.slane %v85, 3
  %v508 = vsel %vm443, %v505, %v507
  %509 = vrot.lane.b32.xlu0 %v446, 96
  %v510 = vpop.permute.xlu0 %509
  %511 = vrot.lane.b32.xlu0 %v448, 96
  %v512 = vpop.permute.xlu0 %511
  %513 = vrot.lane.b32.xlu0 %v450, 96
  %v514 = vpop.permute.xlu0 %513
  %515 = vrot.lane.b32.xlu0 %v452, 96
  %v516 = vpop.permute.xlu0 %515
  %517 = vrot.lane.b32.xlu0 %v454, 96
  %v518 = vpop.permute.xlu0 %517
  %519 = vrot.lane.b32.xlu0 %v456, 96
  %v520 = vpop.permute.xlu0 %519
  %521 = vrot.lane.b32.xlu0 %v458, 96
  %v522 = vpop.permute.xlu0 %521
  %523 = vrot.lane.b32.xlu0 %v460, 96
  %v524 = vpop.permute.xlu0 %523
  %525 = vrot.lane.b32.xlu0 %v462, 96
  %v526 = vpop.permute.xlu0 %525
  %527 = vrot.lane.b32.xlu0 %v464, 96
  %v528 = vpop.permute.xlu0 %527
  %529 = vrot.lane.b32.xlu0 %v466, 96
  %v530 = vpop.permute.xlu0 %529
  %531 = vrot.lane.b32.xlu0 %v468, 96
  %v532 = vpop.permute.xlu0 %531
  %533 = vrot.lane.b32.xlu0 %v470, 96
  %v534 = vpop.permute.xlu0 %533
  %535 = vrot.lane.b32.xlu0 %v472, 96
  %v536 = vpop.permute.xlu0 %535
  %537 = vrot.lane.b32.xlu0 %v474, 96
  %v538 = vpop.permute.xlu0 %537
  %539 = vrot.lane.b32.xlu0 %v476, 96
  %v540 = vpop.permute.xlu0 %539
  %541 = vrot.lane.b32.xlu0 %v478, 96
  %v542 = vpop.permute.xlu0 %541
  %543 = vrot.lane.b32.xlu0 %v480, 96
  %v544 = vpop.permute.xlu0 %543
  %545 = vrot.lane.b32.xlu0 %v482, 96
  %v546 = vpop.permute.xlu0 %545
  %547 = vrot.lane.b32.xlu0 %v484, 96
  %v548 = vpop.permute.xlu0 %547
  %549 = vrot.lane.b32.xlu0 %v486, 96
  %v550 = vpop.permute.xlu0 %549
  %551 = vrot.lane.b32.xlu0 %v488, 96
  %v552 = vpop.permute.xlu0 %551
  %553 = vrot.lane.b32.xlu0 %v490, 96
  %v554 = vpop.permute.xlu0 %553
  %555 = vrot.lane.b32.xlu0 %v492, 96
  %v556 = vpop.permute.xlu0 %555
  %557 = vrot.lane.b32.xlu0 %v494, 96
  %v558 = vpop.permute.xlu0 %557
  %559 = vrot.lane.b32.xlu0 %v496, 96
  %v560 = vpop.permute.xlu0 %559
  %561 = vrot.lane.b32.xlu0 %v498, 96
  %v562 = vpop.permute.xlu0 %561
  %563 = vrot.lane.b32.xlu0 %v500, 96
  %v564 = vpop.permute.xlu0 %563
  %565 = vrot.lane.b32.xlu0 %v502, 96
  %v566 = vpop.permute.xlu0 %565
  %567 = vrot.lane.b32.xlu0 %v504, 96
  %v568 = vpop.permute.xlu0 %567
  %569 = vrot.lane.b32.xlu0 %v506, 96
  %v570 = vpop.permute.xlu0 %569
  %571 = vrot.lane.b32.xlu0 %v508, 96
  %v572 = vpop.permute.xlu0 %571
  %vm605 = vcmask 1043456
  %v606 = vrot.slane %v53, 4
  %v607 = vrot.slane %v54, 4
  %v608 = vsel %vm605, %v606, %v607
  %v609 = vrot.slane %v55, 4
  %v610 = vsel %vm605, %v607, %v609
  %v611 = vrot.slane %v56, 4
  %v612 = vsel %vm605, %v609, %v611
  %v613 = vrot.slane %v57, 4
  %v614 = vsel %vm605, %v611, %v613
  %v615 = vrot.slane %v58, 4
  %v616 = vsel %vm605, %v613, %v615
  %v617 = vrot.slane %v59, 4
  %v618 = vsel %vm605, %v615, %v617
  %v619 = vrot.slane %v60, 4
  %v620 = vsel %vm605, %v617, %v619
  %v621 = vrot.slane %v61, 4
  %v622 = vsel %vm605, %v619, %v621
  %v623 = vrot.slane %v62, 4
  %v624 = vsel %vm605, %v621, %v623
  %v625 = vrot.slane %v63, 4
  %v626 = vsel %vm605, %v623, %v625
  %v627 = vrot.slane %v64, 4
  %v628 = vsel %vm605, %v625, %v627
  %v629 = vrot.slane %v65, 4
  %v630 = vsel %vm605, %v627, %v629
  %v631 = vrot.slane %v66, 4
  %v632 = vsel %vm605, %v629, %v631
  %v633 = vrot.slane %v67, 4
  %v634 = vsel %vm605, %v631, %v633
  %v635 = vrot.slane %v68, 4
  %v636 = vsel %vm605, %v633, %v635
  %v637 = vrot.slane %v69, 4
  %v638 = vsel %vm605, %v635, %v637
  %v639 = vrot.slane %v70, 4
  %v640 = vsel %vm605, %v637, %v639
  %v641 = vrot.slane %v71, 4
  %v642 = vsel %vm605, %v639, %v641
  %v643 = vrot.slane %v72, 4
  %v644 = vsel %vm605, %v641, %v643
  %v645 = vrot.slane %v73, 4
  %v646 = vsel %vm605, %v643, %v645
  %v647 = vrot.slane %v74, 4
  %v648 = vsel %vm605, %v645, %v647
  %v649 = vrot.slane %v75, 4
  %v650 = vsel %vm605, %v647, %v649
  %v651 = vrot.slane %v76, 4
  %v652 = vsel %vm605, %v649, %v651
  %v653 = vrot.slane %v77, 4
  %v654 = vsel %vm605, %v651, %v653
  %v655 = vrot.slane %v78, 4
  %v656 = vsel %vm605, %v653, %v655
  %v657 = vrot.slane %v79, 4
  %v658 = vsel %vm605, %v655, %v657
  %v659 = vrot.slane %v80, 4
  %v660 = vsel %vm605, %v657, %v659
  %v661 = vrot.slane %v81, 4
  %v662 = vsel %vm605, %v659, %v661
  %v663 = vrot.slane %v82, 4
  %v664 = vsel %vm605, %v661, %v663
  %v665 = vrot.slane %v83, 4
  %v666 = vsel %vm605, %v663, %v665
  %v667 = vrot.slane %v84, 4
  %v668 = vsel %vm605, %v665, %v667
  %v669 = vrot.slane %v85, 4
  %v670 = vsel %vm605, %v667, %v669
  %vm671 = vcmask 261120
  %v672 = vsel %vm671, %v53, %v186
  %v673 = vsel %vm671, %v54, %v188
  %v674 = vsel %vm671, %v55, %v190
  %v675 = vsel %vm671, %v56, %v192
  %v676 = vsel %vm671, %v57, %v194
  %v677 = vsel %vm671, %v58, %v196
  %v678 = vsel %vm671, %v59, %v198
  %v679 = vsel %vm671, %v60, %v200
  %v680 = vsel %vm671, %v61, %v202
  %v681 = vsel %vm671, %v62, %v204
  %v682 = vsel %vm671, %v63, %v206
  %v683 = vsel %vm671, %v64, %v208
  %v684 = vsel %vm671, %v65, %v210
  %v685 = vsel %vm671, %v66, %v212
  %v686 = vsel %vm671, %v67, %v214
  %v687 = vsel %vm671, %v68, %v216
  %v688 = vsel %vm671, %v69, %v218
  %v689 = vsel %vm671, %v70, %v220
  %v690 = vsel %vm671, %v71, %v222
  %v691 = vsel %vm671, %v72, %v224
  %v692 = vsel %vm671, %v73, %v226
  %v693 = vsel %vm671, %v74, %v228
  %v694 = vsel %vm671, %v75, %v230
  %v695 = vsel %vm671, %v76, %v232
  %v696 = vsel %vm671, %v77, %v234
  %v697 = vsel %vm671, %v78, %v236
  %v698 = vsel %vm671, %v79, %v238
  %v699 = vsel %vm671, %v80, %v240
  %v700 = vsel %vm671, %v81, %v242
  %v701 = vsel %vm671, %v82, %v244
  %v702 = vsel %vm671, %v83, %v246
  %v703 = vsel %vm671, %v84, %v248
  %vm704 = vcmask 523264
  %v705 = vsel %vm704, %v672, %v348
  %v706 = vsel %vm704, %v673, %v350
  %v707 = vsel %vm704, %v674, %v352
  %v708 = vsel %vm704, %v675, %v354
  %v709 = vsel %vm704, %v676, %v356
  %v710 = vsel %vm704, %v677, %v358
  %v711 = vsel %vm704, %v678, %v360
  %v712 = vsel %vm704, %v679, %v362
  %v713 = vsel %vm704, %v680, %v364
  %v714 = vsel %vm704, %v681, %v366
  %v715 = vsel %vm704, %v682, %v368
  %v716 = vsel %vm704, %v683, %v370
  %v717 = vsel %vm704, %v684, %v372
  %v718 = vsel %vm704, %v685, %v374
  %v719 = vsel %vm704, %v686, %v376
  %v720 = vsel %vm704, %v687, %v378
  %v721 = vsel %vm704, %v688, %v380
  %v722 = vsel %vm704, %v689, %v382
  %v723 = vsel %vm704, %v690, %v384
  %v724 = vsel %vm704, %v691, %v386
  %v725 = vsel %vm704, %v692, %v388
  %v726 = vsel %vm704, %v693, %v390
  %v727 = vsel %vm704, %v694, %v392
  %v728 = vsel %vm704, %v695, %v394
  %v729 = vsel %vm704, %v696, %v396
  %v730 = vsel %vm704, %v697, %v398
  %v731 = vsel %vm704, %v698, %v400
  %v732 = vsel %vm704, %v699, %v402
  %v733 = vsel %vm704, %v700, %v404
  %v734 = vsel %vm704, %v701, %v406
  %v735 = vsel %vm704, %v702, %v408
  %v736 = vsel %vm704, %v703, %v410
  %vm737 = vcmask 785408
  %v738 = vsel %vm737, %v705, %v510
  %v739 = vsel %vm737, %v706, %v512
  %v740 = vsel %vm737, %v707, %v514
  %v741 = vsel %vm737, %v708, %v516
  %v742 = vsel %vm737, %v709, %v518
  %v743 = vsel %vm737, %v710, %v520
  %v744 = vsel %vm737, %v711, %v522
  %v745 = vsel %vm737, %v712, %v524
  %v746 = vsel %vm737, %v713, %v526
  %v747 = vsel %vm737, %v714, %v528
  %v748 = vsel %vm737, %v715, %v530
  %v749 = vsel %vm737, %v716, %v532
  %v750 = vsel %vm737, %v717, %v534
  %v751 = vsel %vm737, %v718, %v536
  %v752 = vsel %vm737, %v719, %v538
  %v753 = vsel %vm737, %v720, %v540
  %v754 = vsel %vm737, %v721, %v542
  %v755 = vsel %vm737, %v722, %v544
  %v756 = vsel %vm737, %v723, %v546
  %v757 = vsel %vm737, %v724, %v548
  %v758 = vsel %vm737, %v725, %v550
  %v759 = vsel %vm737, %v726, %v552
  %v760 = vsel %vm737, %v727, %v554
  %v761 = vsel %vm737, %v728, %v556
  %v762 = vsel %vm737, %v729, %v558
  %v763 = vsel %vm737, %v730, %v560
  %v764 = vsel %vm737, %v731, %v562
  %v765 = vsel %vm737, %v732, %v564
  %v766 = vsel %vm737, %v733, %v566
  %v767 = vsel %vm737, %v734, %v568
  %v768 = vsel %vm737, %v735, %v570
  %v769 = vsel %vm737, %v736, %v572
  %v770 = vld [vmem:[%s1] sm:$0xff]
  %v771 = vld [vmem:[%s1 + $0x8] sm:$0xff]
  %v772 = vld [vmem:[%s1 + $0x10] sm:$0xff]
  %v773 = vld [vmem:[%s1 + $0x18] sm:$0xff]
  %v774 = vld [vmem:[%s1 + $0x20] sm:$0xff]
  %v775 = vld [vmem:[%s1 + $0x28] sm:$0xff]
  %v776 = vld [vmem:[%s1 + $0x30] sm:$0xff]
  %v777 = vld [vmem:[%s1 + $0x38] sm:$0xff]
  %v778 = vld [vmem:[%s1 + $0x40] sm:$0xff]
  %v779 = vld [vmem:[%s1 + $0x48] sm:$0xff]
  %v780 = vld [vmem:[%s1 + $0x50] sm:$0xff]
  %v781 = vld [vmem:[%s1 + $0x58] sm:$0xff]
  %v782 = vld [vmem:[%s1 + $0x60] sm:$0xff]
  %v783 = vld [vmem:[%s1 + $0x68] sm:$0xff]
  %v784 = vld [vmem:[%s1 + $0x70] sm:$0xff]
  %v785 = vld [vmem:[%s1 + $0x78] sm:$0xff]
  %v786 = vld [vmem:[%s1 + $0x80] sm:$0xff]
  %v787 = vld [vmem:[%s1 + $0x88] sm:$0xff]
  %v788 = vld [vmem:[%s1 + $0x90] sm:$0xff]
  %v789 = vld [vmem:[%s1 + $0x98] sm:$0xff]
  %v790 = vld [vmem:[%s1 + $0xa0] sm:$0xff]
  %v791 = vld [vmem:[%s1 + $0xa8] sm:$0xff]
  %v792 = vld [vmem:[%s1 + $0xb0] sm:$0xff]
  %v793 = vld [vmem:[%s1 + $0xb8] sm:$0xff]
  %v794 = vld [vmem:[%s1 + $0xc0] sm:$0xff]
  %v795 = vld [vmem:[%s1 + $0xc8] sm:$0xff]
  %v796 = vld [vmem:[%s1 + $0xd0] sm:$0xff]
  %v797 = vld [vmem:[%s1 + $0xd8] sm:$0xff]
  %v798 = vld [vmem:[%s1 + $0xe0] sm:$0xff]
  %v799 = vld [vmem:[%s1 + $0xe8] sm:$0xff]
  %v800 = vld [vmem:[%s1 + $0xf0] sm:$0xff]
  %v801 = vld [vmem:[%s1 + $0xf8] sm:$0xff]
  %v802 = vld [vmem:[%s1 + $0x100] sm:$0xff]
  %v803 = vld [vmem:[%s1 + $0x108] sm:$0xff]
  %v804 = vld [vmem:[%s1 + $0x110] sm:$0xff]
  %v805 = vld [vmem:[%s1 + $0x118] sm:$0xff]
  %v806 = vld [vmem:[%s1 + $0x120] sm:$0xff]
  %v807 = vld [vmem:[%s1 + $0x128] sm:$0xff]
  %v808 = vld [vmem:[%s1 + $0x130] sm:$0xff]
  %v809 = vld [vmem:[%s1 + $0x138] sm:$0xff]
  %v810 = vld [vmem:[%s2] sm:$0x3]
  %v812 = vlaneseq
  %v813 = vshrl.u32 %v812, 7
  %v814 = vsub.s32 0, %v813
  %v815 = vrot.slane %v810, %v814
  %v816 = vlaneseq
  %v817 = vshrl.u32 %v816, 7
  %v818 = vsub.s32 1, %v817
  %v819 = vrot.slane %v810, %v818
  %v822 = vsel %vm671, %v608, 0
  %v824 = vsel %vm671, %v610, 0
  %v826 = vsel %vm671, %v612, 0
  %v828 = vsel %vm671, %v614, 0
  %v830 = vsel %vm671, %v616, 0
  %v832 = vsel %vm671, %v618, 0
  %v834 = vsel %vm671, %v620, 0
  %v836 = vsel %vm671, %v622, 0
  %v838 = vsel %vm671, %v624, 0
  %v840 = vsel %vm671, %v626, 0
  %v842 = vsel %vm671, %v628, 0
  %v844 = vsel %vm671, %v630, 0
  %v846 = vsel %vm671, %v632, 0
  %v848 = vsel %vm671, %v634, 0
  %v850 = vsel %vm671, %v636, 0
  %v852 = vsel %vm671, %v638, 0
  %v854 = vsel %vm671, %v640, 0
  %v856 = vsel %vm671, %v642, 0
  %v858 = vsel %vm671, %v644, 0
  %v860 = vsel %vm671, %v646, 0
  %v862 = vsel %vm671, %v648, 0
  %v864 = vsel %vm671, %v650, 0
  %v866 = vsel %vm671, %v652, 0
  %v868 = vsel %vm671, %v654, 0
  %v870 = vsel %vm671, %v656, 0
  %v872 = vsel %vm671, %v658, 0
  %v874 = vsel %vm671, %v660, 0
  %v876 = vsel %vm671, %v662, 0
  %v878 = vsel %vm671, %v664, 0
  %v880 = vsel %vm671, %v666, 0
  %v882 = vsel %vm671, %v668, 0
  %v884 = vsel %vm671, %v670, 0
  %886 = vmatprep.subr.mxu0 %v771
  %887 = vmatpush1.msra.mxu0 %v770
  %888 = vmatprep.subr.mxu0 %v773
  %889 = vmatpush1.msra.mxu0 %v772
  %890 = vmatprep.subr.mxu0 %v775
  %891 = vmatpush1.msra.mxu0 %v774
  %892 = vmatprep.subr.mxu0 %v777
  %893 = vmatpush1.msra.mxu0 %v776
  %894 = vmatprep.subr.mxu0 %v779
  %895 = vmatpush1.msra.mxu0 %v778
  %896 = vmatprep.subr.mxu0 %v781
  %897 = vmatpush1.msra.mxu0 %v780
  %898 = vmatprep.subr.mxu0 %v783
  %899 = vmatpush1.msra.mxu0 %v782
  %900 = vmatprep.subr.mxu0 %v785
  %901 = vmatpush1.msra.mxu0 %v784
  %902 = vmatprep.subr.mxu0 %v787
  %903 = vmatpush1.msra.mxu0 %v786
  %904 = vmatprep.subr.mxu0 %v789
  %905 = vmatpush1.msra.mxu0 %v788
  %906 = vmatprep.subr.mxu0 %v791
  %907 = vmatpush1.msra.mxu0 %v790
  %908 = vmatprep.subr.mxu0 %v793
  %909 = vmatpush1.msra.mxu0 %v792
  %910 = vmatprep.subr.mxu0 %v795
  %911 = vmatpush1.msra.mxu0 %v794
  %912 = vmatprep.subr.mxu0 %v797
  %913 = vmatpush1.msra.mxu0 %v796
  %914 = vmatprep.subr.mxu0 %v799
  %915 = vmatpush1.msra.mxu0 %v798
  %916 = vmatprep.subr.mxu0 %v801
  %917 = vmatpush1.msra.mxu0 %v800
  %918 = vmatprep.subr.mxu0 %v803
  %919 = vmatpush1.msra.mxu0 %v802
  %920 = vmatprep.subr.mxu0 %v805
  %921 = vmatpush1.msra.mxu0 %v804
  %922 = vmatprep.subr.mxu0 %v807
  %923 = vmatpush1.msra.mxu0 %v806
  %924 = vmatprep.subr.mxu0 %v809
  %925 = vmatpush1.msra.mxu0 %v808
  %926 = vmatprep.subr.mxu0 0.0
  %927 = vmatpush1.msra.mxu0 0.0
  %928 = vmatprep.subr.mxu0 0.0
  %929 = vmatpush1.msra.mxu0 0.0
  %930 = vmatprep.subr.mxu0 0.0
  %931 = vmatpush1.msra.mxu0 0.0
  %932 = vmatprep.subr.mxu0 0.0
  %933 = vmatpush1.msra.mxu0 0.0
  %934 = vmatprep.subr.mxu0 0.0
  %935 = vmatpush1.msra.mxu0 0.0
  %936 = vmatprep.subr.mxu0 0.0
  %937 = vmatpush1.msra.mxu0 0.0
  %938 = vmatprep.subr.mxu0 0.0
  %939 = vmatpush1.msra.mxu0 0.0
  %940 = vmatprep.subr.mxu0 0.0
  %941 = vmatpush1.msra.mxu0 0.0
  %942 = vmatprep.subr.mxu0 0.0
  %943 = vmatpush1.msra.mxu0 0.0
  %944 = vmatprep.subr.mxu0 0.0
  %945 = vmatpush1.msra.mxu0 0.0
  %946 = vmatprep.subr.mxu0 0.0
  %947 = vmatpush1.msra.mxu0 0.0
  %948 = vmatprep.subr.mxu0 0.0
  %949 = vmatpush1.msra.mxu0 0.0
  %950 = vmatprep.mubr.f32.mxu0 %v822
  %951 = vmatmul.mubr.f32.gmra.mrb[0].mxu0 %v738
  %v952 = vpop.f32.mrb[0].mxu0
  %v953 = vadd.f32 %v815, %v952
  %v954 = vpop.f32.mrb[0].mxu0
  %v955 = vadd.f32 %v819, %v954
  %956 = vmatprep.mubr.f32.mxu0 %v824
  %957 = vmatmul.mubr.f32.gmra.mrb[0].mxu0 %v739
  %v958 = vpop.f32.mrb[0].mxu0
  %v959 = vadd.f32 %v815, %v958
  %v960 = vpop.f32.mrb[0].mxu0
  %v961 = vadd.f32 %v819, %v960
  %962 = vmatprep.mubr.f32.mxu0 %v826
  %963 = vmatmul.mubr.f32.gmra.mrb[0].mxu0 %v740
  %v964 = vpop.f32.mrb[0].mxu0
  %v965 = vadd.f32 %v815, %v964
  %v966 = vpop.f32.mrb[0].mxu0
  %v967 = vadd.f32 %v819, %v966
  %968 = vmatprep.mubr.f32.mxu0 %v828
  %969 = vmatmul.mubr.f32.gmra.mrb[0].mxu0 %v741
  %v970 = vpop.f32.mrb[0].mxu0
  %v971 = vadd.f32 %v815, %v970
  %v972 = vpop.f32.mrb[0].mxu0
  %v973 = vadd.f32 %v819, %v972
  %974 = vmatprep.mubr.f32.mxu0 %v830
  %975 = vmatmul.mubr.f32.gmra.mrb[0].mxu0 %v742
  %v976 = vpop.f32.mrb[0].mxu0
  %v977 = vadd.f32 %v815, %v976
  %v978 = vpop.f32.mrb[0].mxu0
  %v979 = vadd.f32 %v819, %v978
  %980 = vmatprep.mubr.f32.mxu0 %v832
  %981 = vmatmul.mubr.f32.gmra.mrb[0].mxu0 %v743
  %v982 = vpop.f32.mrb[0].mxu0
  %v983 = vadd.f32 %v815, %v982
  %v984 = vpop.f32.mrb[0].mxu0
  %v985 = vadd.f32 %v819, %v984
  %986 = vmatprep.mubr.f32.mxu0 %v834
  %987 = vmatmul.mubr.f32.gmra.mrb[0].mxu0 %v744
  %v988 = vpop.f32.mrb[0].mxu0
  %v989 = vadd.f32 %v815, %v988
  %v990 = vpop.f32.mrb[0].mxu0
  %v991 = vadd.f32 %v819, %v990
  %992 = vmatprep.mubr.f32.mxu0 %v836
  %993 = vmatmul.mubr.f32.gmra.mrb[0].mxu0 %v745
  %v994 = vpop.f32.mrb[0].mxu0
  %v995 = vadd.f32 %v815, %v994
  %v996 = vpop.f32.mrb[0].mxu0
  %v997 = vadd.f32 %v819, %v996
  %998 = vmatprep.mubr.f32.mxu0 %v838
  %999 = vmatmul.mubr.f32.gmra.mrb[0].mxu0 %v746
  %v1000 = vpop.f32.mrb[0].mxu0
  %v1001 = vadd.f32 %v815, %v1000
  %v1002 = vpop.f32.mrb[0].mxu0
  %v1003 = vadd.f32 %v819, %v1002
  %1004 = vmatprep.mubr.f32.mxu0 %v840
  %1005 = vmatmul.mubr.f32.gmra.mrb[0].mxu0 %v747
  %v1006 = vpop.f32.mrb[0].mxu0
  %v1007 = vadd.f32 %v815, %v1006
  %v1008 = vpop.f32.mrb[0].mxu0
  %v1009 = vadd.f32 %v819, %v1008
  %1010 = vmatprep.mubr.f32.mxu0 %v842
  %1011 = vmatmul.mubr.f32.gmra.mrb[0].mxu0 %v748
  %v1012 = vpop.f32.mrb[0].mxu0
  %v1013 = vadd.f32 %v815, %v1012
  %v1014 = vpop.f32.mrb[0].mxu0
  %v1015 = vadd.f32 %v819, %v1014
  %1016 = vmatprep.mubr.f32.mxu0 %v844
  %1017 = vmatmul.mubr.f32.gmra.mrb[0].mxu0 %v749
  %v1018 = vpop.f32.mrb[0].mxu0
  %v1019 = vadd.f32 %v815, %v1018
  %v1020 = vpop.f32.mrb[0].mxu0
  %v1021 = vadd.f32 %v819, %v1020
  %1022 = vmatprep.mubr.f32.mxu0 %v846
  %1023 = vmatmul.mubr.f32.gmra.mrb[0].mxu0 %v750
  %v1024 = vpop.f32.mrb[0].mxu0
  %v1025 = vadd.f32 %v815, %v1024
  %v1026 = vpop.f32.mrb[0].mxu0
  %v1027 = vadd.f32 %v819, %v1026
  %1028 = vmatprep.mubr.f32.mxu0 %v848
  %1029 = vmatmul.mubr.f32.gmra.mrb[0].mxu0 %v751
  %v1030 = vpop.f32.mrb[0].mxu0
  %v1031 = vadd.f32 %v815, %v1030
  %v1032 = vpop.f32.mrb[0].mxu0
  %v1033 = vadd.f32 %v819, %v1032
  %1034 = vmatprep.mubr.f32.mxu0 %v850
  %1035 = vmatmul.mubr.f32.gmra.mrb[0].mxu0 %v752
  %v1036 = vpop.f32.mrb[0].mxu0
  %v1037 = vadd.f32 %v815, %v1036
  %v1038 = vpop.f32.mrb[0].mxu0
  %v1039 = vadd.f32 %v819, %v1038
  %1040 = vmatprep.mubr.f32.mxu0 %v852
  %1041 = vmatmul.mubr.f32.gmra.mrb[0].mxu0 %v753
  %v1042 = vpop.f32.mrb[0].mxu0
  %v1043 = vadd.f32 %v815, %v1042
  %v1044 = vpop.f32.mrb[0].mxu0
  %v1045 = vadd.f32 %v819, %v1044
  %1046 = vmatprep.mubr.f32.mxu0 %v854
  %1047 = vmatmul.mubr.f32.gmra.mrb[0].mxu0 %v754
  %v1048 = vpop.f32.mrb[0].mxu0
  %v1049 = vadd.f32 %v815, %v1048
  %v1050 = vpop.f32.mrb[0].mxu0
  %v1051 = vadd.f32 %v819, %v1050
  %1052 = vmatprep.mubr.f32.mxu0 %v856
  %1053 = vmatmul.mubr.f32.gmra.mrb[0].mxu0 %v755
  %v1054 = vpop.f32.mrb[0].mxu0
  %v1055 = vadd.f32 %v815, %v1054
  %v1056 = vpop.f32.mrb[0].mxu0
  %v1057 = vadd.f32 %v819, %v1056
  %1058 = vmatprep.mubr.f32.mxu0 %v858
  %1059 = vmatmul.mubr.f32.gmra.mrb[0].mxu0 %v756
  %v1060 = vpop.f32.mrb[0].mxu0
  %v1061 = vadd.f32 %v815, %v1060
  %v1062 = vpop.f32.mrb[0].mxu0
  %v1063 = vadd.f32 %v819, %v1062
  %1064 = vmatprep.mubr.f32.mxu0 %v860
  %1065 = vmatmul.mubr.f32.gmra.mrb[0].mxu0 %v757
  %v1066 = vpop.f32.mrb[0].mxu0
  %v1067 = vadd.f32 %v815, %v1066
  %v1068 = vpop.f32.mrb[0].mxu0
  %v1069 = vadd.f32 %v819, %v1068
  %1070 = vmatprep.mubr.f32.mxu0 %v862
  %1071 = vmatmul.mubr.f32.gmra.mrb[0].mxu0 %v758
  %v1072 = vpop.f32.mrb[0].mxu0
  %v1073 = vadd.f32 %v815, %v1072
  %v1074 = vpop.f32.mrb[0].mxu0
  %v1075 = vadd.f32 %v819, %v1074
  %1076 = vmatprep.mubr.f32.mxu0 %v864
  %1077 = vmatmul.mubr.f32.gmra.mrb[0].mxu0 %v759
  %v1078 = vpop.f32.mrb[0].mxu0
  %v1079 = vadd.f32 %v815, %v1078
  %v1080 = vpop.f32.mrb[0].mxu0
  %v1081 = vadd.f32 %v819, %v1080
  %1082 = vmatprep.mubr.f32.mxu0 %v866
  %1083 = vmatmul.mubr.f32.gmra.mrb[0].mxu0 %v760
  %v1084 = vpop.f32.mrb[0].mxu0
  %v1085 = vadd.f32 %v815, %v1084
  %v1086 = vpop.f32.mrb[0].mxu0
  %v1087 = vadd.f32 %v819, %v1086
  %1088 = vmatprep.mubr.f32.mxu0 %v868
  %1089 = vmatmul.mubr.f32.gmra.mrb[0].mxu0 %v761
  %v1090 = vpop.f32.mrb[0].mxu0
  %v1091 = vadd.f32 %v815, %v1090
  %v1092 = vpop.f32.mrb[0].mxu0
  %v1093 = vadd.f32 %v819, %v1092
  %1094 = vmatprep.mubr.f32.mxu0 %v870
  %1095 = vmatmul.mubr.f32.gmra.mrb[0].mxu0 %v762
  %v1096 = vpop.f32.mrb[0].mxu0
  %v1097 = vadd.f32 %v815, %v1096
  %v1098 = vpop.f32.mrb[0].mxu0
  %v1099 = vadd.f32 %v819, %v1098
  %1100 = vmatprep.mubr.f32.mxu0 %v872
  %1101 = vmatmul.mubr.f32.gmra.mrb[0].mxu0 %v763
  %v1102 = vpop.f32.mrb[0].mxu0
  %v1103 = vadd.f32 %v815, %v1102
  %v1104 = vpop.f32.mrb[0].mxu0
  %v1105 = vadd.f32 %v819, %v1104
  %1106 = vmatprep.mubr.f32.mxu0 %v874
  %1107 = vmatmul.mubr.f32.gmra.mrb[0].mxu0 %v764
  %v1108 = vpop.f32.mrb[0].mxu0
  %v1109 = vadd.f32 %v815, %v1108
  %v1110 = vpop.f32.mrb[0].mxu0
  %v1111 = vadd.f32 %v819, %v1110
  %1112 = vmatprep.mubr.f32.mxu0 %v876
  %1113 = vmatmul.mubr.f32.gmra.mrb[0].mxu0 %v765
  %v1114 = vpop.f32.mrb[0].mxu0
  %v1115 = vadd.f32 %v815, %v1114
  %v1116 = vpop.f32.mrb[0].mxu0
  %v1117 = vadd.f32 %v819, %v1116
  %1118 = vmatprep.mubr.f32.mxu0 %v878
  %1119 = vmatmul.mubr.f32.gmra.mrb[0].mxu0 %v766
  %v1120 = vpop.f32.mrb[0].mxu0
  %v1121 = vadd.f32 %v815, %v1120
  %v1122 = vpop.f32.mrb[0].mxu0
  %v1123 = vadd.f32 %v819, %v1122
  %1124 = vmatprep.mubr.f32.mxu0 %v880
  %1125 = vmatmul.mubr.f32.gmra.mrb[0].mxu0 %v767
  %v1126 = vpop.f32.mrb[0].mxu0
  %v1127 = vadd.f32 %v815, %v1126
  %v1128 = vpop.f32.mrb[0].mxu0
  %v1129 = vadd.f32 %v819, %v1128
  %1130 = vmatprep.mubr.f32.mxu0 %v882
  %1131 = vmatmul.mubr.f32.gmra.mrb[0].mxu0 %v768
  %v1132 = vpop.f32.mrb[0].mxu0
  %v1133 = vadd.f32 %v815, %v1132
  %v1134 = vpop.f32.mrb[0].mxu0
  %v1135 = vadd.f32 %v819, %v1134
  %1136 = vmatprep.mubr.f32.mxu0 %v884
  %1137 = vmatmul.mubr.f32.gmra.mrb[0].mxu0 %v769
  %v1138 = vpop.f32.mrb[0].mxu0
  %v1139 = vadd.f32 %v815, %v1138
  %v1140 = vpop.f32.mrb[0].mxu0
  %v1141 = vadd.f32 %v819, %v1140
  %1142 = vdwg.mxu0
  %v1143 = vmax.f32 %v953, 0.0
  %v1144 = vmax.f32 %v955, 0.0
  %v1145 = vmax.f32 %v959, 0.0
  %v1146 = vmax.f32 %v961, 0.0
  %v1147 = vmax.f32 %v965, 0.0
  %v1148 = vmax.f32 %v967, 0.0
  %v1149 = vmax.f32 %v971, 0.0
  %v1150 = vmax.f32 %v973, 0.0
  %v1151 = vmax.f32 %v977, 0.0
  %v1152 = vmax.f32 %v979, 0.0
  %v1153 = vmax.f32 %v983, 0.0
  %v1154 = vmax.f32 %v985, 0.0
  %v1155 = vmax.f32 %v989, 0.0
  %v1156 = vmax.f32 %v991, 0.0
  %v1157 = vmax.f32 %v995, 0.0
  %v1158 = vmax.f32 %v997, 0.0
  %v1159 = vmax.f32 %v1001, 0.0
  %v1160 = vmax.f32 %v1003, 0.0
  %v1161 = vmax.f32 %v1007, 0.0
  %v1162 = vmax.f32 %v1009, 0.0
  %v1163 = vmax.f32 %v1013, 0.0
  %v1164 = vmax.f32 %v1015, 0.0
  %v1165 = vmax.f32 %v1019, 0.0
  %v1166 = vmax.f32 %v1021, 0.0
  %v1167 = vmax.f32 %v1025, 0.0
  %v1168 = vmax.f32 %v1027, 0.0
  %v1169 = vmax.f32 %v1031, 0.0
  %v1170 = vmax.f32 %v1033, 0.0
  %v1171 = vmax.f32 %v1037, 0.0
  %v1172 = vmax.f32 %v1039, 0.0
  %v1173 = vmax.f32 %v1043, 0.0
  %v1174 = vmax.f32 %v1045, 0.0
  %v1175 = vmax.f32 %v1049, 0.0
  %v1176 = vmax.f32 %v1051, 0.0
  %v1177 = vmax.f32 %v1055, 0.0
  %v1178 = vmax.f32 %v1057, 0.0
  %v1179 = vmax.f32 %v1061, 0.0
  %v1180 = vmax.f32 %v1063, 0.0
  %v1181 = vmax.f32 %v1067, 0.0
  %v1182 = vmax.f32 %v1069, 0.0
  %v1183 = vmax.f32 %v1073, 0.0
  %v1184 = vmax.f32 %v1075, 0.0
  %v1185 = vmax.f32 %v1079, 0.0
  %v1186 = vmax.f32 %v1081, 0.0
  %v1187 = vmax.f32 %v1085, 0.0
  %v1188 = vmax.f32 %v1087, 0.0
  %v1189 = vmax.f32 %v1091, 0.0
  %v1190 = vmax.f32 %v1093, 0.0
  %v1191 = vmax.f32 %v1097, 0.0
  %v1192 = vmax.f32 %v1099, 0.0
  %v1193 = vmax.f32 %v1103, 0.0
  %v1194 = vmax.f32 %v1105, 0.0
  %v1195 = vmax.f32 %v1109, 0.0
  %v1196 = vmax.f32 %v1111, 0.0
  %v1197 = vmax.f32 %v1115, 0.0
  %v1198 = vmax.f32 %v1117, 0.0
  %v1199 = vmax.f32 %v1121, 0.0
  %v1200 = vmax.f32 %v1123, 0.0
  %v1201 = vmax.f32 %v1127, 0.0
  %v1202 = vmax.f32 %v1129, 0.0
  %v1203 = vmax.f32 %v1133, 0.0
  %v1204 = vmax.f32 %v1135, 0.0
  %v1205 = vmax.f32 %v1139, 0.0
  %v1206 = vmax.f32 %v1141, 0.0
  %1271 = vrot.lane.b32.xlu0 %v1143, 127
  %v1272 = vpop.permute.xlu0 %1271
  %1273 = vrot.lane.b32.xlu0 %v1144, 127
  %v1274 = vpop.permute.xlu0 %1273
  %1275 = vrot.lane.b32.xlu0 %v1145, 127
  %v1276 = vpop.permute.xlu0 %1275
  %1277 = vrot.lane.b32.xlu0 %v1146, 127
  %v1278 = vpop.permute.xlu0 %1277
  %1279 = vrot.lane.b32.xlu0 %v1147, 127
  %v1280 = vpop.permute.xlu0 %1279
  %1281 = vrot.lane.b32.xlu0 %v1148, 127
  %v1282 = vpop.permute.xlu0 %1281
  %1283 = vrot.lane.b32.xlu0 %v1149, 127
  %v1284 = vpop.permute.xlu0 %1283
  %1285 = vrot.lane.b32.xlu0 %v1150, 127
  %v1286 = vpop.permute.xlu0 %1285
  %1287 = vrot.lane.b32.xlu0 %v1151, 127
  %v1288 = vpop.permute.xlu0 %1287
  %1289 = vrot.lane.b32.xlu0 %v1152, 127
  %v1290 = vpop.permute.xlu0 %1289
  %1291 = vrot.lane.b32.xlu0 %v1153, 127
  %v1292 = vpop.permute.xlu0 %1291
  %1293 = vrot.lane.b32.xlu0 %v1154, 127
  %v1294 = vpop.permute.xlu0 %1293
  %1295 = vrot.lane.b32.xlu0 %v1155, 127
  %v1296 = vpop.permute.xlu0 %1295
  %1297 = vrot.lane.b32.xlu0 %v1156, 127
  %v1298 = vpop.permute.xlu0 %1297
  %1299 = vrot.lane.b32.xlu0 %v1157, 127
  %v1300 = vpop.permute.xlu0 %1299
  %1301 = vrot.lane.b32.xlu0 %v1158, 127
  %v1302 = vpop.permute.xlu0 %1301
  %1303 = vrot.lane.b32.xlu0 %v1159, 127
  %v1304 = vpop.permute.xlu0 %1303
  %1305 = vrot.lane.b32.xlu0 %v1160, 127
  %v1306 = vpop.permute.xlu0 %1305
  %1307 = vrot.lane.b32.xlu0 %v1161, 127
  %v1308 = vpop.permute.xlu0 %1307
  %1309 = vrot.lane.b32.xlu0 %v1162, 127
  %v1310 = vpop.permute.xlu0 %1309
  %1311 = vrot.lane.b32.xlu0 %v1163, 127
  %v1312 = vpop.permute.xlu0 %1311
  %1313 = vrot.lane.b32.xlu0 %v1164, 127
  %v1314 = vpop.permute.xlu0 %1313
  %1315 = vrot.lane.b32.xlu0 %v1165, 127
  %v1316 = vpop.permute.xlu0 %1315
  %1317 = vrot.lane.b32.xlu0 %v1166, 127
  %v1318 = vpop.permute.xlu0 %1317
  %1319 = vrot.lane.b32.xlu0 %v1167, 127
  %v1320 = vpop.permute.xlu0 %1319
  %1321 = vrot.lane.b32.xlu0 %v1168, 127
  %v1322 = vpop.permute.xlu0 %1321
  %1323 = vrot.lane.b32.xlu0 %v1169, 127
  %v1324 = vpop.permute.xlu0 %1323
  %1325 = vrot.lane.b32.xlu0 %v1170, 127
  %v1326 = vpop.permute.xlu0 %1325
  %1327 = vrot.lane.b32.xlu0 %v1171, 127
  %v1328 = vpop.permute.xlu0 %1327
  %1329 = vrot.lane.b32.xlu0 %v1172, 127
  %v1330 = vpop.permute.xlu0 %1329
  %1331 = vrot.lane.b32.xlu0 %v1173, 127
  %v1332 = vpop.permute.xlu0 %1331
  %1333 = vrot.lane.b32.xlu0 %v1174, 127
  %v1334 = vpop.permute.xlu0 %1333
  %1335 = vrot.lane.b32.xlu0 %v1175, 127
  %v1336 = vpop.permute.xlu0 %1335
  %1337 = vrot.lane.b32.xlu0 %v1176, 127
  %v1338 = vpop.permute.xlu0 %1337
  %1339 = vrot.lane.b32.xlu0 %v1177, 127
  %v1340 = vpop.permute.xlu0 %1339
  %1341 = vrot.lane.b32.xlu0 %v1178, 127
  %v1342 = vpop.permute.xlu0 %1341
  %1343 = vrot.lane.b32.xlu0 %v1179, 127
  %v1344 = vpop.permute.xlu0 %1343
  %1345 = vrot.lane.b32.xlu0 %v1180, 127
  %v1346 = vpop.permute.xlu0 %1345
  %1347 = vrot.lane.b32.xlu0 %v1181, 127
  %v1348 = vpop.permute.xlu0 %1347
  %1349 = vrot.lane.b32.xlu0 %v1182, 127
  %v1350 = vpop.permute.xlu0 %1349
  %1351 = vrot.lane.b32.xlu0 %v1183, 127
  %v1352 = vpop.permute.xlu0 %1351
  %1353 = vrot.lane.b32.xlu0 %v1184, 127
  %v1354 = vpop.permute.xlu0 %1353
  %1355 = vrot.lane.b32.xlu0 %v1185, 127
  %v1356 = vpop.permute.xlu0 %1355
  %1357 = vrot.lane.b32.xlu0 %v1186, 127
  %v1358 = vpop.permute.xlu0 %1357
  %1359 = vrot.lane.b32.xlu0 %v1187, 127
  %v1360 = vpop.permute.xlu0 %1359
  %1361 = vrot.lane.b32.xlu0 %v1188, 127
  %v1362 = vpop.permute.xlu0 %1361
  %1363 = vrot.lane.b32.xlu0 %v1189, 127
  %v1364 = vpop.permute.xlu0 %1363
  %1365 = vrot.lane.b32.xlu0 %v1190, 127
  %v1366 = vpop.permute.xlu0 %1365
  %1367 = vrot.lane.b32.xlu0 %v1191, 127
  %v1368 = vpop.permute.xlu0 %1367
  %1369 = vrot.lane.b32.xlu0 %v1192, 127
  %v1370 = vpop.permute.xlu0 %1369
  %1371 = vrot.lane.b32.xlu0 %v1193, 127
  %v1372 = vpop.permute.xlu0 %1371
  %1373 = vrot.lane.b32.xlu0 %v1194, 127
  %v1374 = vpop.permute.xlu0 %1373
  %1375 = vrot.lane.b32.xlu0 %v1195, 127
  %v1376 = vpop.permute.xlu0 %1375
  %1377 = vrot.lane.b32.xlu0 %v1196, 127
  %v1378 = vpop.permute.xlu0 %1377
  %1379 = vrot.lane.b32.xlu0 %v1197, 127
  %v1380 = vpop.permute.xlu0 %1379
  %1381 = vrot.lane.b32.xlu0 %v1198, 127
  %v1382 = vpop.permute.xlu0 %1381
  %1383 = vrot.lane.b32.xlu0 %v1199, 127
  %v1384 = vpop.permute.xlu0 %1383
  %1385 = vrot.lane.b32.xlu0 %v1200, 127
  %v1386 = vpop.permute.xlu0 %1385
  %1387 = vrot.lane.b32.xlu0 %v1201, 127
  %v1388 = vpop.permute.xlu0 %1387
  %1389 = vrot.lane.b32.xlu0 %v1202, 127
  %v1390 = vpop.permute.xlu0 %1389
  %1391 = vrot.lane.b32.xlu0 %v1203, 127
  %v1392 = vpop.permute.xlu0 %1391
  %1393 = vrot.lane.b32.xlu0 %v1204, 127
  %v1394 = vpop.permute.xlu0 %1393
  %1395 = vrot.lane.b32.xlu0 %v1205, 127
  %v1396 = vpop.permute.xlu0 %1395
  %1397 = vrot.lane.b32.xlu0 %v1206, 127
  %v1398 = vpop.permute.xlu0 %1397
  %vm1399 = vcmask 1039360
  %v1400 = vsel %vm1399, %v1272, %v1274
  %v1401 = vsel %vm1399, %v1276, %v1278
  %v1402 = vsel %vm1399, %v1280, %v1282
  %v1403 = vsel %vm1399, %v1284, %v1286
  %v1404 = vsel %vm1399, %v1288, %v1290
  %v1405 = vsel %vm1399, %v1292, %v1294
  %v1406 = vsel %vm1399, %v1296, %v1298
  %v1407 = vsel %vm1399, %v1300, %v1302
  %v1408 = vsel %vm1399, %v1304, %v1306
  %v1409 = vsel %vm1399, %v1308, %v1310
  %v1410 = vsel %vm1399, %v1312, %v1314
  %v1411 = vsel %vm1399, %v1316, %v1318
  %v1412 = vsel %vm1399, %v1320, %v1322
  %v1413 = vsel %vm1399, %v1324, %v1326
  %v1414 = vsel %vm1399, %v1328, %v1330
  %v1415 = vsel %vm1399, %v1332, %v1334
  %v1416 = vsel %vm1399, %v1336, %v1338
  %v1417 = vsel %vm1399, %v1340, %v1342
  %v1418 = vsel %vm1399, %v1344, %v1346
  %v1419 = vsel %vm1399, %v1348, %v1350
  %v1420 = vsel %vm1399, %v1352, %v1354
  %v1421 = vsel %vm1399, %v1356, %v1358
  %v1422 = vsel %vm1399, %v1360, %v1362
  %v1423 = vsel %vm1399, %v1364, %v1366
  %v1424 = vsel %vm1399, %v1368, %v1370
  %v1425 = vsel %vm1399, %v1372, %v1374
  %v1426 = vsel %vm1399, %v1376, %v1378
  %v1427 = vsel %vm1399, %v1380, %v1382
  %v1428 = vsel %vm1399, %v1384, %v1386
  %v1429 = vsel %vm1399, %v1388, %v1390
  %v1430 = vsel %vm1399, %v1392, %v1394
  %v1431 = vsel %vm1399, %v1396, %v1398
  %vm1496 = vcmask 318464
  %v1497 = vsel %vm1496, %v1274, %v1144
  %v1498 = vsel %vm1496, %v1278, %v1146
  %v1499 = vsel %vm1496, %v1282, %v1148
  %v1500 = vsel %vm1496, %v1286, %v1150
  %v1501 = vsel %vm1496, %v1290, %v1152
  %v1502 = vsel %vm1496, %v1294, %v1154
  %v1503 = vsel %vm1496, %v1298, %v1156
  %v1504 = vsel %vm1496, %v1302, %v1158
  %v1505 = vsel %vm1496, %v1306, %v1160
  %v1506 = vsel %vm1496, %v1310, %v1162
  %v1507 = vsel %vm1496, %v1314, %v1164
  %v1508 = vsel %vm1496, %v1318, %v1166
  %v1509 = vsel %vm1496, %v1322, %v1168
  %v1510 = vsel %vm1496, %v1326, %v1170
  %v1511 = vsel %vm1496, %v1330, %v1172
  %v1512 = vsel %vm1496, %v1334, %v1174
  %v1513 = vsel %vm1496, %v1338, %v1176
  %v1514 = vsel %vm1496, %v1342, %v1178
  %v1515 = vsel %vm1496, %v1346, %v1180
  %v1516 = vsel %vm1496, %v1350, %v1182
  %v1517 = vsel %vm1496, %v1354, %v1184
  %v1518 = vsel %vm1496, %v1358, %v1186
  %v1519 = vsel %vm1496, %v1362, %v1188
  %v1520 = vsel %vm1496, %v1366, %v1190
  %v1521 = vsel %vm1496, %v1370, %v1192
  %v1522 = vsel %vm1496, %v1374, %v1194
  %v1523 = vsel %vm1496, %v1378, %v1196
  %v1524 = vsel %vm1496, %v1382, %v1198
  %v1525 = vsel %vm1496, %v1386, %v1200
  %v1526 = vsel %vm1496, %v1390, %v1202
  %v1527 = vsel %vm1496, %v1394, %v1204
  %v1528 = vsel %vm1496, %v1398, %v1206
  %v1529 = vmax.f32 %v1143, %v1400
  %v1530 = vmax.f32 %v1144, %v1497
  %v1531 = vmax.f32 %v1145, %v1401
  %v1532 = vmax.f32 %v1146, %v1498
  %v1533 = vmax.f32 %v1147, %v1402
  %v1534 = vmax.f32 %v1148, %v1499
  %v1535 = vmax.f32 %v1149, %v1403
  %v1536 = vmax.f32 %v1150, %v1500
  %v1537 = vmax.f32 %v1151, %v1404
  %v1538 = vmax.f32 %v1152, %v1501
  %v1539 = vmax.f32 %v1153, %v1405
  %v1540 = vmax.f32 %v1154, %v1502
  %v1541 = vmax.f32 %v1155, %v1406
  %v1542 = vmax.f32 %v1156, %v1503
  %v1543 = vmax.f32 %v1157, %v1407
  %v1544 = vmax.f32 %v1158, %v1504
  %v1545 = vmax.f32 %v1159, %v1408
  %v1546 = vmax.f32 %v1160, %v1505
  %v1547 = vmax.f32 %v1161, %v1409
  %v1548 = vmax.f32 %v1162, %v1506
  %v1549 = vmax.f32 %v1163, %v1410
  %v1550 = vmax.f32 %v1164, %v1507
  %v1551 = vmax.f32 %v1165, %v1411
  %v1552 = vmax.f32 %v1166, %v1508
  %v1553 = vmax.f32 %v1167, %v1412
  %v1554 = vmax.f32 %v1168, %v1509
  %v1555 = vmax.f32 %v1169, %v1413
  %v1556 = vmax.f32 %v1170, %v1510
  %v1557 = vmax.f32 %v1171, %v1414
  %v1558 = vmax.f32 %v1172, %v1511
  %v1559 = vmax.f32 %v1173, %v1415
  %v1560 = vmax.f32 %v1174, %v1512
  %v1561 = vmax.f32 %v1175, %v1416
  %v1562 = vmax.f32 %v1176, %v1513
  %v1563 = vmax.f32 %v1177, %v1417
  %v1564 = vmax.f32 %v1178, %v1514
  %v1565 = vmax.f32 %v1179, %v1418
  %v1566 = vmax.f32 %v1180, %v1515
  %v1567 = vmax.f32 %v1181, %v1419
  %v1568 = vmax.f32 %v1182, %v1516
  %v1569 = vmax.f32 %v1183, %v1420
  %v1570 = vmax.f32 %v1184, %v1517
  %v1571 = vmax.f32 %v1185, %v1421
  %v1572 = vmax.f32 %v1186, %v1518
  %v1573 = vmax.f32 %v1187, %v1422
  %v1574 = vmax.f32 %v1188, %v1519
  %v1575 = vmax.f32 %v1189, %v1423
  %v1576 = vmax.f32 %v1190, %v1520
  %v1577 = vmax.f32 %v1191, %v1424
  %v1578 = vmax.f32 %v1192, %v1521
  %v1579 = vmax.f32 %v1193, %v1425
  %v1580 = vmax.f32 %v1194, %v1522
  %v1581 = vmax.f32 %v1195, %v1426
  %v1582 = vmax.f32 %v1196, %v1523
  %v1583 = vmax.f32 %v1197, %v1427
  %v1584 = vmax.f32 %v1198, %v1524
  %v1585 = vmax.f32 %v1199, %v1428
  %v1586 = vmax.f32 %v1200, %v1525
  %v1587 = vmax.f32 %v1201, %v1429
  %v1588 = vmax.f32 %v1202, %v1526
  %v1589 = vmax.f32 %v1203, %v1430
  %v1590 = vmax.f32 %v1204, %v1527
  %v1591 = vmax.f32 %v1205, %v1431
  %v1592 = vmax.f32 %v1206, %v1528
  %v1593 = vld [vmem:[%s3] sm:$0xff]
  %v1594 = vld [vmem:[%s3 + $0x8] sm:$0xff]
  %v1595 = vld [vmem:[%s3 + $0x10] sm:$0xff]
  %v1596 = vld [vmem:[%s3 + $0x18] sm:$0xff]
  %v1597 = vld [vmem:[%s3 + $0x20] sm:$0xff]
  %v1598 = vld [vmem:[%s3 + $0x28] sm:$0xff]
  %v1599 = vld [vmem:[%s3 + $0x30] sm:$0xff]
  %v1600 = vld [vmem:[%s3 + $0x38] sm:$0xff]
  %v1601 = vld [vmem:[%s3 + $0x40] sm:$0xff]
  %v1602 = vld [vmem:[%s3 + $0x48] sm:$0xff]
  %v1603 = vld [vmem:[%s3 + $0x50] sm:$0xff]
  %v1604 = vld [vmem:[%s3 + $0x58] sm:$0xff]
  %v1605 = vld [vmem:[%s3 + $0x60] sm:$0xff]
  %v1606 = vld [vmem:[%s3 + $0x68] sm:$0xff]
  %v1607 = vld [vmem:[%s3 + $0x70] sm:$0xff]
  %v1608 = vld [vmem:[%s3 + $0x78] sm:$0xff]
  %v1609 = vld [vmem:[%s3 + $0x80] sm:$0xff]
  %v1610 = vld [vmem:[%s3 + $0x88] sm:$0xff]
  %v1611 = vld [vmem:[%s3 + $0x90] sm:$0xff]
  %v1612 = vld [vmem:[%s3 + $0x98] sm:$0xff]
  %v1613 = vld [vmem:[%s3 + $0xa0] sm:$0xff]
  %v1614 = vld [vmem:[%s3 + $0xa8] sm:$0xff]
  %v1615 = vld [vmem:[%s3 + $0xb0] sm:$0xff]
  %v1616 = vld [vmem:[%s3 + $0xb8] sm:$0xff]
  %v1617 = vld [vmem:[%s3 + $0xc0] sm:$0xff]
  %v1618 = vld [vmem:[%s3 + $0xc8] sm:$0xff]
  %v1619 = vld [vmem:[%s3 + $0xd0] sm:$0xff]
  %v1620 = vld [vmem:[%s3 + $0xd8] sm:$0xff]
  %v1621 = vld [vmem:[%s3 + $0xe0] sm:$0xff]
  %v1622 = vld [vmem:[%s3 + $0xe8] sm:$0xff]
  %v1623 = vld [vmem:[%s3 + $0xf0] sm:$0xff]
  %v1624 = vld [vmem:[%s3 + $0xf8] sm:$0xff]
  %v1625 = vld [vmem:[%s3 + $0x100] sm:$0xff]
  %v1626 = vld [vmem:[%s3 + $0x108] sm:$0xff]
  %1627 = vmatprep.subr.mxu0 %v1530
  %1628 = vmatpush1.msra.mxu0 %v1529
  %1629 = vmatprep.subr.mxu0 %v1532
  %1630 = vmatpush1.msra.mxu0 %v1531
  %1631 = vmatprep.subr.mxu0 %v1534
  %1632 = vmatpush1.msra.mxu0 %v1533
  %1633 = vmatprep.subr.mxu0 %v1536
  %1634 = vmatpush1.msra.mxu0 %v1535
  %1635 = vmatprep.subr.mxu0 %v1538
  %1636 = vmatpush1.msra.mxu0 %v1537
  %1637 = vmatprep.subr.mxu0 %v1540
  %1638 = vmatpush1.msra.mxu0 %v1539
  %1639 = vmatprep.subr.mxu0 %v1542
  %1640 = vmatpush1.msra.mxu0 %v1541
  %1641 = vmatprep.subr.mxu0 %v1544
  %1642 = vmatpush1.msra.mxu0 %v1543
  %1643 = vmatprep.subr.mxu0 %v1546
  %1644 = vmatpush1.msra.mxu0 %v1545
  %1645 = vmatprep.subr.mxu0 %v1548
  %1646 = vmatpush1.msra.mxu0 %v1547
  %1647 = vmatprep.subr.mxu0 %v1550
  %1648 = vmatpush1.msra.mxu0 %v1549
  %1649 = vmatprep.subr.mxu0 %v1552
  %1650 = vmatpush1.msra.mxu0 %v1551
  %1651 = vmatprep.subr.mxu0 %v1554
  %1652 = vmatpush1.msra.mxu0 %v1553
  %1653 = vmatprep.subr.mxu0 %v1556
  %1654 = vmatpush1.msra.mxu0 %v1555
  %1655 = vmatprep.subr.mxu0 %v1558
  %1656 = vmatpush1.msra.mxu0 %v1557
  %1657 = vmatprep.subr.mxu0 %v1560
  %1658 = vmatpush1.msra.mxu0 %v1559
  %1659 = vmatprep.subr.mxu0 %v1562
  %1660 = vmatpush1.msra.mxu0 %v1561
  %1661 = vmatprep.subr.mxu0 %v1564
  %1662 = vmatpush1.msra.mxu0 %v1563
  %1663 = vmatprep.subr.mxu0 %v1566
  %1664 = vmatpush1.msra.mxu0 %v1565
  %1665 = vmatprep.subr.mxu0 %v1568
  %1666 = vmatpush1.msra.mxu0 %v1567
  %1667 = vmatprep.subr.mxu0 %v1570
  %1668 = vmatpush1.msra.mxu0 %v1569
  %1669 = vmatprep.subr.mxu0 %v1572
  %1670 = vmatpush1.msra.mxu0 %v1571
  %1671 = vmatprep.subr.mxu0 %v1574
  %1672 = vmatpush1.msra.mxu0 %v1573
  %1673 = vmatprep.subr.mxu0 %v1576
  %1674 = vmatpush1.msra.mxu0 %v1575
  %1675 = vmatprep.subr.mxu0 %v1578
  %1676 = vmatpush1.msra.mxu0 %v1577
  %1677 = vmatprep.subr.mxu0 %v1580
  %1678 = vmatpush1.msra.mxu0 %v1579
  %1679 = vmatprep.subr.mxu0 %v1582
  %1680 = vmatpush1.msra.mxu0 %v1581
  %1681 = vmatprep.subr.mxu0 %v1584
  %1682 = vmatpush1.msra.mxu0 %v1583
  %1683 = vmatprep.subr.mxu0 %v1586
  %1684 = vmatpush1.msra.mxu0 %v1585
  %1685 = vmatprep.subr.mxu0 %v1588
  %1686 = vmatpush1.msra.mxu0 %v1587
  %1687 = vmatprep.subr.mxu0 %v1590
  %1688 = vmatpush1.msra.mxu0 %v1589
  %1689 = vmatprep.subr.mxu0 %v1592
  %1690 = vmatpush1.msra.mxu0 %v1591
  %1691 = vmatprep.mubr.f32.mxu0 %v1594
  %1692 = vmatmul.mubr.f32.gmra.mrb[0].mxu0 %v1593
  %v1693 = vpop.f32.mrb[0].mxu0
  %v1694 = vadd.f32 0.0, %v1693
  %v1695 = vpop.f32.mrb[0].mxu0
  %v1696 = vadd.f32 0.0, %v1695
  %1697 = vmatprep.mubr.f32.mxu0 %v1596
  %1698 = vmatmul.mubr.f32.gmra.mrb[0].mxu0 %v1595
  %v1699 = vpop.f32.mrb[0].mxu0
  %v1700 = vadd.f32 0.0, %v1699
  %v1701 = vpop.f32.mrb[0].mxu0
  %v1702 = vadd.f32 0.0, %v1701
  %1703 = vmatprep.mubr.f32.mxu0 %v1598
  %1704 = vmatmul.mubr.f32.gmra.mrb[0].mxu0 %v1597
  %v1705 = vpop.f32.mrb[0].mxu0
  %v1706 = vadd.f32 0.0, %v1705
  %v1707 = vpop.f32.mrb[0].mxu0
  %v1708 = vadd.f32 0.0, %v1707
  %1709 = vmatprep.mubr.f32.mxu0 %v1600
  %1710 = vmatmul.mubr.f32.gmra.mrb[0].mxu0 %v1599
  %v1711 = vpop.f32.mrb[0].mxu0
  %v1712 = vadd.f32 0.0, %v1711
  %v1713 = vpop.f32.mrb[0].mxu0
  %v1714 = vadd.f32 0.0, %v1713
  %1715 = vmatprep.mubr.f32.mxu0 %v1602
  %1716 = vmatmul.mubr.f32.gmra.mrb[0].mxu0 %v1601
  %v1717 = vpop.f32.mrb[0].mxu0
  %v1718 = vadd.f32 0.0, %v1717
  %v1719 = vpop.f32.mrb[0].mxu0
  %v1720 = vadd.f32 0.0, %v1719
  %1721 = vmatprep.mubr.f32.mxu0 %v1604
  %1722 = vmatmul.mubr.f32.gmra.mrb[0].mxu0 %v1603
  %v1723 = vpop.f32.mrb[0].mxu0
  %v1724 = vadd.f32 0.0, %v1723
  %v1725 = vpop.f32.mrb[0].mxu0
  %v1726 = vadd.f32 0.0, %v1725
  %1727 = vmatprep.mubr.f32.mxu0 %v1606
  %1728 = vmatmul.mubr.f32.gmra.mrb[0].mxu0 %v1605
  %v1729 = vpop.f32.mrb[0].mxu0
  %v1730 = vadd.f32 0.0, %v1729
  %v1731 = vpop.f32.mrb[0].mxu0
  %v1732 = vadd.f32 0.0, %v1731
  %1733 = vmatprep.mubr.f32.mxu0 %v1608
  %1734 = vmatmul.mubr.f32.gmra.mrb[0].mxu0 %v1607
  %v1735 = vpop.f32.mrb[0].mxu0
  %v1736 = vadd.f32 0.0, %v1735
  %v1737 = vpop.f32.mrb[0].mxu0
  %v1738 = vadd.f32 0.0, %v1737
  %1739 = vmatprep.mubr.f32.mxu0 %v1610
  %1740 = vmatmul.mubr.f32.gmra.mrb[0].mxu0 %v1609
  %v1741 = vpop.f32.mrb[0].mxu0
  %v1742 = vadd.f32 0.0, %v1741
  %v1743 = vpop.f32.mrb[0].mxu0
  %v1744 = vadd.f32 0.0, %v1743
  %1745 = vmatprep.mubr.f32.mxu0 %v1612
  %1746 = vmatmul.mubr.f32.gmra.mrb[0].mxu0 %v1611
  %v1747 = vpop.f32.mrb[0].mxu0
  %v1748 = vadd.f32 0.0, %v1747
  %v1749 = vpop.f32.mrb[0].mxu0
  %v1750 = vadd.f32 0.0, %v1749
  %1751 = vmatprep.mubr.f32.mxu0 %v1614
  %1752 = vmatmul.mubr.f32.gmra.mrb[0].mxu0 %v1613
  %v1753 = vpop.f32.mrb[0].mxu0
  %v1754 = vadd.f32 0.0, %v1753
  %v1755 = vpop.f32.mrb[0].mxu0
  %v1756 = vadd.f32 0.0, %v1755
  %1757 = vmatprep.mubr.f32.mxu0 %v1616
  %1758 = vmatmul.mubr.f32.gmra.mrb[0].mxu0 %v1615
  %v1759 = vpop.f32.mrb[0].mxu0
  %v1760 = vadd.f32 0.0, %v1759
  %v1761 = vpop.f32.mrb[0].mxu0
  %v1762 = vadd.f32 0.0, %v1761
  %1763 = vmatprep.mubr.f32.mxu0 %v1618
  %1764 = vmatmul.mubr.f32.gmra.mrb[0].mxu0 %v1617
  %v1765 = vpop.f32.mrb[0].mxu0
  %v1766 = vadd.f32 0.0, %v1765
  %v1767 = vpop.f32.mrb[0].mxu0
  %v1768 = vadd.f32 0.0, %v1767
  %1769 = vmatprep.mubr.f32.mxu0 %v1620
  %1770 = vmatmul.mubr.f32.gmra.mrb[0].mxu0 %v1619
  %v1771 = vpop.f32.mrb[0].mxu0
  %v1772 = vadd.f32 0.0, %v1771
  %v1773 = vpop.f32.mrb[0].mxu0
  %v1774 = vadd.f32 0.0, %v1773
  %1775 = vmatprep.mubr.f32.mxu0 %v1622
  %1776 = vmatmul.mubr.f32.gmra.mrb[0].mxu0 %v1621
  %v1777 = vpop.f32.mrb[0].mxu0
  %v1778 = vadd.f32 0.0, %v1777
  %v1779 = vpop.f32.mrb[0].mxu0
  %v1780 = vadd.f32 0.0, %v1779
  %1781 = vmatprep.mubr.f32.mxu0 %v1624
  %1782 = vmatmul.mubr.f32.gmra.mrb[0].mxu0 %v1623
  %v1783 = vpop.f32.mrb[0].mxu0
  %v1784 = vadd.f32 0.0, %v1783
  %v1785 = vpop.f32.mrb[0].mxu0
  %v1786 = vadd.f32 0.0, %v1785
  %1787 = vmatprep.mubr.f32.mxu0 %v1626
  %1788 = vmatmul.mubr.f32.gmra.mrb[0].mxu0 %v1625
  %v1789 = vpop.f32.mrb[0].mxu0
  %v1790 = vadd.f32 0.0, %v1789
  %v1791 = vpop.f32.mrb[0].mxu0
  %v1792 = vadd.f32 0.0, %v1791
  %1793 = vdwg.mxu0
  %v1794 = vld [vmem:[%s4] sm:$0xff]
  %v1795 = vld [vmem:[%s4 + $0x8] sm:$0xff]
  %v1796 = vld [vmem:[%s4 + $0x10] sm:$0xff]
  %v1797 = vld [vmem:[%s4 + $0x18] sm:$0xff]
  %v1798 = vld [vmem:[%s4 + $0x20] sm:$0xff]
  %v1799 = vld [vmem:[%s4 + $0x28] sm:$0xff]
  %v1800 = vld [vmem:[%s4 + $0x30] sm:$0xff]
  %v1801 = vld [vmem:[%s4 + $0x38] sm:$0xff]
  %v1802 = vld [vmem:[%s4 + $0x40] sm:$0xff]
  %v1803 = vld [vmem:[%s4 + $0x48] sm:$0xff]
  %v1804 = vld [vmem:[%s4 + $0x50] sm:$0xff]
  %v1805 = vld [vmem:[%s4 + $0x58] sm:$0xff]
  %v1806 = vld [vmem:[%s4 + $0x60] sm:$0xff]
  %v1807 = vld [vmem:[%s4 + $0x68] sm:$0xff]
  %v1808 = vld [vmem:[%s4 + $0x70] sm:$0xff]
  %v1809 = vld [vmem:[%s4 + $0x78] sm:$0xff]
  %v1810 = vld [vmem:[%s4 + $0x80] sm:$0xff]
  %v1811 = vld [vmem:[%s4 + $0x88] sm:$0xff]
  %v1812 = vld [vmem:[%s4 + $0x90] sm:$0xff]
  %v1813 = vld [vmem:[%s4 + $0x98] sm:$0xff]
  %v1814 = vld [vmem:[%s4 + $0xa0] sm:$0xff]
  %v1815 = vld [vmem:[%s4 + $0xa8] sm:$0xff]
  %v1816 = vld [vmem:[%s4 + $0xb0] sm:$0xff]
  %v1817 = vld [vmem:[%s4 + $0xb8] sm:$0xff]
  %v1818 = vld [vmem:[%s4 + $0xc0] sm:$0xff]
  %v1819 = vld [vmem:[%s4 + $0xc8] sm:$0xff]
  %v1820 = vld [vmem:[%s4 + $0xd0] sm:$0xff]
  %v1821 = vld [vmem:[%s4 + $0xd8] sm:$0xff]
  %v1822 = vld [vmem:[%s4 + $0xe0] sm:$0xff]
  %v1823 = vld [vmem:[%s4 + $0xe8] sm:$0xff]
  %v1824 = vld [vmem:[%s4 + $0xf0] sm:$0xff]
  %v1825 = vld [vmem:[%s4 + $0xf8] sm:$0xff]
  %v1826 = vld [vmem:[%s4 + $0x100] sm:$0xff]
  %v1827 = vld [vmem:[%s4 + $0x108] sm:$0xff]
  %1828 = vmatprep.subr.mxu0 %v1530
  %1829 = vmatpush1.msra.mxu0 %v1529
  %1830 = vmatprep.subr.mxu0 %v1532
  %1831 = vmatpush1.msra.mxu0 %v1531
  %1832 = vmatprep.subr.mxu0 %v1534
  %1833 = vmatpush1.msra.mxu0 %v1533
  %1834 = vmatprep.subr.mxu0 %v1536
  %1835 = vmatpush1.msra.mxu0 %v1535
  %1836 = vmatprep.subr.mxu0 %v1538
  %1837 = vmatpush1.msra.mxu0 %v1537
  %1838 = vmatprep.subr.mxu0 %v1540
  %1839 = vmatpush1.msra.mxu0 %v1539
  %1840 = vmatprep.subr.mxu0 %v1542
  %1841 = vmatpush1.msra.mxu0 %v1541
  %1842 = vmatprep.subr.mxu0 %v1544
  %1843 = vmatpush1.msra.mxu0 %v1543
  %1844 = vmatprep.subr.mxu0 %v1546
  %1845 = vmatpush1.msra.mxu0 %v1545
  %1846 = vmatprep.subr.mxu0 %v1548
  %1847 = vmatpush1.msra.mxu0 %v1547
  %1848 = vmatprep.subr.mxu0 %v1550
  %1849 = vmatpush1.msra.mxu0 %v1549
  %1850 = vmatprep.subr.mxu0 %v1552
  %1851 = vmatpush1.msra.mxu0 %v1551
  %1852 = vmatprep.subr.mxu0 %v1554
  %1853 = vmatpush1.msra.mxu0 %v1553
  %1854 = vmatprep.subr.mxu0 %v1556
  %1855 = vmatpush1.msra.mxu0 %v1555
  %1856 = vmatprep.subr.mxu0 %v1558
  %1857 = vmatpush1.msra.mxu0 %v1557
  %1858 = vmatprep.subr.mxu0 %v1560
  %1859 = vmatpush1.msra.mxu0 %v1559
  %1860 = vmatprep.subr.mxu0 %v1562
  %1861 = vmatpush1.msra.mxu0 %v1561
  %1862 = vmatprep.subr.mxu0 %v1564
  %1863 = vmatpush1.msra.mxu0 %v1563
  %1864 = vmatprep.subr.mxu0 %v1566
  %1865 = vmatpush1.msra.mxu0 %v1565
  %1866 = vmatprep.subr.mxu0 %v1568
  %1867 = vmatpush1.msra.mxu0 %v1567
  %1868 = vmatprep.subr.mxu0 %v1570
  %1869 = vmatpush1.msra.mxu0 %v1569
  %1870 = vmatprep.subr.mxu0 %v1572
  %1871 = vmatpush1.msra.mxu0 %v1571
  %1872 = vmatprep.subr.mxu0 %v1574
  %1873 = vmatpush1.msra.mxu0 %v1573
  %1874 = vmatprep.subr.mxu0 %v1576
  %1875 = vmatpush1.msra.mxu0 %v1575
  %1876 = vmatprep.subr.mxu0 %v1578
  %1877 = vmatpush1.msra.mxu0 %v1577
  %1878 = vmatprep.subr.mxu0 %v1580
  %1879 = vmatpush1.msra.mxu0 %v1579
  %1880 = vmatprep.subr.mxu0 %v1582
  %1881 = vmatpush1.msra.mxu0 %v1581
  %1882 = vmatprep.subr.mxu0 %v1584
  %1883 = vmatpush1.msra.mxu0 %v1583
  %1884 = vmatprep.subr.mxu0 %v1586
  %1885 = vmatpush1.msra.mxu0 %v1585
  %1886 = vmatprep.subr.mxu0 %v1588
  %1887 = vmatpush1.msra.mxu0 %v1587
  %1888 = vmatprep.subr.mxu0 %v1590
  %1889 = vmatpush1.msra.mxu0 %v1589
  %1890 = vmatprep.subr.mxu0 %v1592
  %1891 = vmatpush1.msra.mxu0 %v1591
  %1892 = vmatprep.mubr.f32.mxu0 %v1795
  %1893 = vmatmul.mubr.f32.gmra.mrb[0].mxu0 %v1794
  %v1894 = vpop.f32.mrb[0].mxu0
  %v1895 = vadd.f32 0.0, %v1894
  %v1896 = vpop.f32.mrb[0].mxu0
  %v1897 = vadd.f32 0.0, %v1896
  %1898 = vmatprep.mubr.f32.mxu0 %v1797
  %1899 = vmatmul.mubr.f32.gmra.mrb[0].mxu0 %v1796
  %v1900 = vpop.f32.mrb[0].mxu0
  %v1901 = vadd.f32 0.0, %v1900
  %v1902 = vpop.f32.mrb[0].mxu0
  %v1903 = vadd.f32 0.0, %v1902
  %1904 = vmatprep.mubr.f32.mxu0 %v1799
  %1905 = vmatmul.mubr.f32.gmra.mrb[0].mxu0 %v1798
  %v1906 = vpop.f32.mrb[0].mxu0
  %v1907 = vadd.f32 0.0, %v1906
  %v1908 = vpop.f32.mrb[0].mxu0
  %v1909 = vadd.f32 0.0, %v1908
  %1910 = vmatprep.mubr.f32.mxu0 %v1801
  %1911 = vmatmul.mubr.f32.gmra.mrb[0].mxu0 %v1800
  %v1912 = vpop.f32.mrb[0].mxu0
  %v1913 = vadd.f32 0.0, %v1912
  %v1914 = vpop.f32.mrb[0].mxu0
  %v1915 = vadd.f32 0.0, %v1914
  %1916 = vmatprep.mubr.f32.mxu0 %v1803
  %1917 = vmatmul.mubr.f32.gmra.mrb[0].mxu0 %v1802
  %v1918 = vpop.f32.mrb[0].mxu0
  %v1919 = vadd.f32 0.0, %v1918
  %v1920 = vpop.f32.mrb[0].mxu0
  %v1921 = vadd.f32 0.0, %v1920
  %1922 = vmatprep.mubr.f32.mxu0 %v1805
  %1923 = vmatmul.mubr.f32.gmra.mrb[0].mxu0 %v1804
  %v1924 = vpop.f32.mrb[0].mxu0
  %v1925 = vadd.f32 0.0, %v1924
  %v1926 = vpop.f32.mrb[0].mxu0
  %v1927 = vadd.f32 0.0, %v1926
  %1928 = vmatprep.mubr.f32.mxu0 %v1807
  %1929 = vmatmul.mubr.f32.gmra.mrb[0].mxu0 %v1806
  %v1930 = vpop.f32.mrb[0].mxu0
  %v1931 = vadd.f32 0.0, %v1930
  %v1932 = vpop.f32.mrb[0].mxu0
  %v1933 = vadd.f32 0.0, %v1932
  %1934 = vmatprep.mubr.f32.mxu0 %v1809
  %1935 = vmatmul.mubr.f32.gmra.mrb[0].mxu0 %v1808
  %v1936 = vpop.f32.mrb[0].mxu0
  %v1937 = vadd.f32 0.0, %v1936
  %v1938 = vpop.f32.mrb[0].mxu0
  %v1939 = vadd.f32 0.0, %v1938
  %1940 = vmatprep.mubr.f32.mxu0 %v1811
  %1941 = vmatmul.mubr.f32.gmra.mrb[0].mxu0 %v1810
  %v1942 = vpop.f32.mrb[0].mxu0
  %v1943 = vadd.f32 0.0, %v1942
  %v1944 = vpop.f32.mrb[0].mxu0
  %v1945 = vadd.f32 0.0, %v1944
  %1946 = vmatprep.mubr.f32.mxu0 %v1813
  %1947 = vmatmul.mubr.f32.gmra.mrb[0].mxu0 %v1812
  %v1948 = vpop.f32.mrb[0].mxu0
  %v1949 = vadd.f32 0.0, %v1948
  %v1950 = vpop.f32.mrb[0].mxu0
  %v1951 = vadd.f32 0.0, %v1950
  %1952 = vmatprep.mubr.f32.mxu0 %v1815
  %1953 = vmatmul.mubr.f32.gmra.mrb[0].mxu0 %v1814
  %v1954 = vpop.f32.mrb[0].mxu0
  %v1955 = vadd.f32 0.0, %v1954
  %v1956 = vpop.f32.mrb[0].mxu0
  %v1957 = vadd.f32 0.0, %v1956
  %1958 = vmatprep.mubr.f32.mxu0 %v1817
  %1959 = vmatmul.mubr.f32.gmra.mrb[0].mxu0 %v1816
  %v1960 = vpop.f32.mrb[0].mxu0
  %v1961 = vadd.f32 0.0, %v1960
  %v1962 = vpop.f32.mrb[0].mxu0
  %v1963 = vadd.f32 0.0, %v1962
  %1964 = vmatprep.mubr.f32.mxu0 %v1819
  %1965 = vmatmul.mubr.f32.gmra.mrb[0].mxu0 %v1818
  %v1966 = vpop.f32.mrb[0].mxu0
  %v1967 = vadd.f32 0.0, %v1966
  %v1968 = vpop.f32.mrb[0].mxu0
  %v1969 = vadd.f32 0.0, %v1968
  %1970 = vmatprep.mubr.f32.mxu0 %v1821
  %1971 = vmatmul.mubr.f32.gmra.mrb[0].mxu0 %v1820
  %v1972 = vpop.f32.mrb[0].mxu0
  %v1973 = vadd.f32 0.0, %v1972
  %v1974 = vpop.f32.mrb[0].mxu0
  %v1975 = vadd.f32 0.0, %v1974
  %1976 = vmatprep.mubr.f32.mxu0 %v1823
  %1977 = vmatmul.mubr.f32.gmra.mrb[0].mxu0 %v1822
  %v1978 = vpop.f32.mrb[0].mxu0
  %v1979 = vadd.f32 0.0, %v1978
  %v1980 = vpop.f32.mrb[0].mxu0
  %v1981 = vadd.f32 0.0, %v1980
  %1982 = vmatprep.mubr.f32.mxu0 %v1825
  %1983 = vmatmul.mubr.f32.gmra.mrb[0].mxu0 %v1824
  %v1984 = vpop.f32.mrb[0].mxu0
  %v1985 = vadd.f32 0.0, %v1984
  %v1986 = vpop.f32.mrb[0].mxu0
  %v1987 = vadd.f32 0.0, %v1986
  %1988 = vmatprep.mubr.f32.mxu0 %v1827
  %1989 = vmatmul.mubr.f32.gmra.mrb[0].mxu0 %v1826
  %v1990 = vpop.f32.mrb[0].mxu0
  %v1991 = vadd.f32 0.0, %v1990
  %v1992 = vpop.f32.mrb[0].mxu0
  %v1993 = vadd.f32 0.0, %v1992
  %1994 = vdwg.mxu0
  %v1995 = vmax.f32 %v1694, %v1895
  %v1996 = vmax.f32 %v1696, %v1897
  %v1997 = vmax.f32 %v1700, %v1901
  %v1998 = vmax.f32 %v1702, %v1903
  %v1999 = vmax.f32 %v1706, %v1907
  %v2000 = vmax.f32 %v1708, %v1909
  %v2001 = vmax.f32 %v1712, %v1913
  %v2002 = vmax.f32 %v1714, %v1915
  %v2003 = vmax.f32 %v1718, %v1919
  %v2004 = vmax.f32 %v1720, %v1921
  %v2005 = vmax.f32 %v1724, %v1925
  %v2006 = vmax.f32 %v1726, %v1927
  %v2007 = vmax.f32 %v1730, %v1931
  %v2008 = vmax.f32 %v1732, %v1933
  %v2009 = vmax.f32 %v1736, %v1937
  %v2010 = vmax.f32 %v1738, %v1939
  %v2011 = vmax.f32 %v1742, %v1943
  %v2012 = vmax.f32 %v1744, %v1945
  %v2013 = vmax.f32 %v1748, %v1949
  %v2014 = vmax.f32 %v1750, %v1951
  %v2015 = vmax.f32 %v1754, %v1955
  %v2016 = vmax.f32 %v1756, %v1957
  %v2017 = vmax.f32 %v1760, %v1961
  %v2018 = vmax.f32 %v1762, %v1963
  %v2019 = vmax.f32 %v1766, %v1967
  %v2020 = vmax.f32 %v1768, %v1969
  %v2021 = vmax.f32 %v1772, %v1973
  %v2022 = vmax.f32 %v1774, %v1975
  %v2023 = vmax.f32 %v1778, %v1979
  %v2024 = vmax.f32 %v1780, %v1981
  %v2025 = vmax.f32 %v1784, %v1985
  %v2026 = vmax.f32 %v1786, %v1987
  %v2027 = vmax.f32 %v1790, %v1991
  %v2028 = vmax.f32 %v1792, %v1993
  %v2063 = vrot.slane %v1995, 1
  %v2064 = vrot.slane %v1997, 1
  %v2065 = vsel %vm119, %v2063, %v2064
  %v2066 = vrot.slane %v1996, 1
  %v2067 = vrot.slane %v1998, 1
  %v2068 = vsel %vm119, %v2066, %v2067
  %v2069 = vrot.slane %v1999, 1
  %v2070 = vsel %vm119, %v2064, %v2069
  %v2071 = vrot.slane %v2000, 1
  %v2072 = vsel %vm119, %v2067, %v2071
  %v2073 = vrot.slane %v2001, 1
  %v2074 = vsel %vm119, %v2069, %v2073
  %v2075 = vrot.slane %v2002, 1
  %v2076 = vsel %vm119, %v2071, %v2075
  %v2077 = vrot.slane %v2003, 1
  %v2078 = vsel %vm119, %v2073, %v2077
  %v2079 = vrot.slane %v2004, 1
  %v2080 = vsel %vm119, %v2075, %v2079
  %v2081 = vrot.slane %v2005, 1
  %v2082 = vsel %vm119, %v2077, %v2081
  %v2083 = vrot.slane %v2006, 1
  %v2084 = vsel %vm119, %v2079, %v2083
  %v2085 = vrot.slane %v2007, 1
  %v2086 = vsel %vm119, %v2081, %v2085
  %v2087 = vrot.slane %v2008, 1
  %v2088 = vsel %vm119, %v2083, %v2087
  %v2089 = vrot.slane %v2009, 1
  %v2090 = vsel %vm119, %v2085, %v2089
  %v2091 = vrot.slane %v2010, 1
  %v2092 = vsel %vm119, %v2087, %v2091
  %v2093 = vrot.slane %v2011, 1
  %v2094 = vsel %vm119, %v2089, %v2093
  %v2095 = vrot.slane %v2012, 1
  %v2096 = vsel %vm119, %v2091, %v2095
  %v2097 = vrot.slane %v2013, 1
  %v2098 = vsel %vm119, %v2093, %v2097
  %v2099 = vrot.slane %v2014, 1
  %v2100 = vsel %vm119, %v2095, %v2099
  %v2101 = vrot.slane %v2015, 1
  %v2102 = vsel %vm119, %v2097, %v2101
  %v2103 = vrot.slane %v2016, 1
  %v2104 = vsel %vm119, %v2099, %v2103
  %v2105 = vrot.slane %v2017, 1
  %v2106 = vsel %vm119, %v2101, %v2105
  %v2107 = vrot.slane %v2018, 1
  %v2108 = vsel %vm119, %v2103, %v2107
  %v2109 = vrot.slane %v2019, 1
  %v2110 = vsel %vm119, %v2105, %v2109
  %v2111 = vrot.slane %v2020, 1
  %v2112 = vsel %vm119, %v2107, %v2111
  %v2113 = vrot.slane %v2021, 1
  %v2114 = vsel %vm119, %v2109, %v2113
  %v2115 = vrot.slane %v2022, 1
  %v2116 = vsel %vm119, %v2111, %v2115
  %v2117 = vrot.slane %v2023, 1
  %v2118 = vsel %vm119, %v2113, %v2117
  %v2119 = vrot.slane %v2024, 1
  %v2120 = vsel %vm119, %v2115, %v2119
  %v2121 = vrot.slane %v2025, 1
  %v2122 = vsel %vm119, %v2117, %v2121
  %v2123 = vrot.slane %v2026, 1
  %v2124 = vsel %vm119, %v2119, %v2123
  %v2125 = vrot.slane %v2027, 1
  %v2126 = vsel %vm119, %v2121, %v2125
  %v2127 = vrot.slane %v2028, 1
  %v2128 = vsel %vm119, %v2123, %v2127
  %2129 = vrot.lane.b32.xlu0 %v2065, 40
  %v2130 = vpop.permute.xlu0 %2129
  %2131 = vrot.lane.b32.xlu0 %v2068, 40
  %v2132 = vpop.permute.xlu0 %2131
  %2133 = vrot.lane.b32.xlu0 %v2070, 40
  %v2134 = vpop.permute.xlu0 %2133
  %2135 = vrot.lane.b32.xlu0 %v2072, 40
  %v2136 = vpop.permute.xlu0 %2135
  %2137 = vrot.lane.b32.xlu0 %v2074, 40
  %v2138 = vpop.permute.xlu0 %2137
  %2139 = vrot.lane.b32.xlu0 %v2076, 40
  %v2140 = vpop.permute.xlu0 %2139
  %2141 = vrot.lane.b32.xlu0 %v2078, 40
  %v2142 = vpop.permute.xlu0 %2141
  %2143 = vrot.lane.b32.xlu0 %v2080, 40
  %v2144 = vpop.permute.xlu0 %2143
  %2145 = vrot.lane.b32.xlu0 %v2082, 40
  %v2146 = vpop.permute.xlu0 %2145
  %2147 = vrot.lane.b32.xlu0 %v2084, 40
  %v2148 = vpop.permute.xlu0 %2147
  %2149 = vrot.lane.b32.xlu0 %v2086, 40
  %v2150 = vpop.permute.xlu0 %2149
  %2151 = vrot.lane.b32.xlu0 %v2088, 40
  %v2152 = vpop.permute.xlu0 %2151
  %2153 = vrot.lane.b32.xlu0 %v2090, 40
  %v2154 = vpop.permute.xlu0 %2153
  %2155 = vrot.lane.b32.xlu0 %v2092, 40
  %v2156 = vpop.permute.xlu0 %2155
  %2157 = vrot.lane.b32.xlu0 %v2094, 40
  %v2158 = vpop.permute.xlu0 %2157
  %2159 = vrot.lane.b32.xlu0 %v2096, 40
  %v2160 = vpop.permute.xlu0 %2159
  %2161 = vrot.lane.b32.xlu0 %v2098, 40
  %v2162 = vpop.permute.xlu0 %2161
  %2163 = vrot.lane.b32.xlu0 %v2100, 40
  %v2164 = vpop.permute.xlu0 %2163
  %2165 = vrot.lane.b32.xlu0 %v2102, 40
  %v2166 = vpop.permute.xlu0 %2165
  %2167 = vrot.lane.b32.xlu0 %v2104, 40
  %v2168 = vpop.permute.xlu0 %2167
  %2169 = vrot.lane.b32.xlu0 %v2106, 40
  %v2170 = vpop.permute.xlu0 %2169
  %2171 = vrot.lane.b32.xlu0 %v2108, 40
  %v2172 = vpop.permute.xlu0 %2171
  %2173 = vrot.lane.b32.xlu0 %v2110, 40
  %v2174 = vpop.permute.xlu0 %2173
  %2175 = vrot.lane.b32.xlu0 %v2112, 40
  %v2176 = vpop.permute.xlu0 %2175
  %2177 = vrot.lane.b32.xlu0 %v2114, 40
  %v2178 = vpop.permute.xlu0 %2177
  %2179 = vrot.lane.b32.xlu0 %v2116, 40
  %v2180 = vpop.permute.xlu0 %2179
  %2181 = vrot.lane.b32.xlu0 %v2118, 40
  %v2182 = vpop.permute.xlu0 %2181
  %2183 = vrot.lane.b32.xlu0 %v2120, 40
  %v2184 = vpop.permute.xlu0 %2183
  %2185 = vrot.lane.b32.xlu0 %v2122, 40
  %v2186 = vpop.permute.xlu0 %2185
  %2187 = vrot.lane.b32.xlu0 %v2124, 40
  %v2188 = vpop.permute.xlu0 %2187
  %2189 = vrot.lane.b32.xlu0 %v2126, 40
  %v2190 = vpop.permute.xlu0 %2189
  %2191 = vrot.lane.b32.xlu0 %v2128, 40
  %v2192 = vpop.permute.xlu0 %2191
  %vm2193 = vcmask 326656
  %v2194 = vsel %vm2193, %v2130, %v2132
  %v2195 = vsel %vm2193, %v2134, %v2136
  %v2196 = vsel %vm2193, %v2138, %v2140
  %v2197 = vsel %vm2193, %v2142, %v2144
  %v2198 = vsel %vm2193, %v2146, %v2148
  %v2199 = vsel %vm2193, %v2150, %v2152
  %v2200 = vsel %vm2193, %v2154, %v2156
  %v2201 = vsel %vm2193, %v2158, %v2160
  %v2202 = vsel %vm2193, %v2162, %v2164
  %v2203 = vsel %vm2193, %v2166, %v2168
  %v2204 = vsel %vm2193, %v2170, %v2172
  %v2205 = vsel %vm2193, %v2174, %v2176
  %v2206 = vsel %vm2193, %v2178, %v2180
  %v2207 = vsel %vm2193, %v2182, %v2184
  %v2208 = vsel %vm2193, %v2186, %v2188
  %v2209 = vsel %vm2193, %v2190, %v2192
  %v2242 = vrot.slane %v1995, 2
  %v2243 = vrot.slane %v1997, 2
  %v2244 = vsel %vm281, %v2242, %v2243
  %v2245 = vrot.slane %v1996, 2
  %v2246 = vrot.slane %v1998, 2
  %v2247 = vsel %vm281, %v2245, %v2246
  %v2248 = vrot.slane %v1999, 2
  %v2249 = vsel %vm281, %v2243, %v2248
  %v2250 = vrot.slane %v2000, 2
  %v2251 = vsel %vm281, %v2246, %v2250
  %v2252 = vrot.slane %v2001, 2
  %v2253 = vsel %vm281, %v2248, %v2252
  %v2254 = vrot.slane %v2002, 2
  %v2255 = vsel %vm281, %v2250, %v2254
  %v2256 = vrot.slane %v2003, 2
  %v2257 = vsel %vm281, %v2252, %v2256
  %v2258 = vrot.slane %v2004, 2
  %v2259 = vsel %vm281, %v2254, %v2258
  %v2260 = vrot.slane %v2005, 2
  %v2261 = vsel %vm281, %v2256, %v2260
  %v2262 = vrot.slane %v2006, 2
  %v2263 = vsel %vm281, %v2258, %v2262
  %v2264 = vrot.slane %v2007, 2
  %v2265 = vsel %vm281, %v2260, %v2264
  %v2266 = vrot.slane %v2008, 2
  %v2267 = vsel %vm281, %v2262, %v2266
  %v2268 = vrot.slane %v2009, 2
  %v2269 = vsel %vm281, %v2264, %v2268
  %v2270 = vrot.slane %v2010, 2
  %v2271 = vsel %vm281, %v2266, %v2270
  %v2272 = vrot.slane %v2011, 2
  %v2273 = vsel %vm281, %v2268, %v2272
  %v2274 = vrot.slane %v2012, 2
  %v2275 = vsel %vm281, %v2270, %v2274
  %v2276 = vrot.slane %v2013, 2
  %v2277 = vsel %vm281, %v2272, %v2276
  %v2278 = vrot.slane %v2014, 2
  %v2279 = vsel %vm281, %v2274, %v2278
  %v2280 = vrot.slane %v2015, 2
  %v2281 = vsel %vm281, %v2276, %v2280
  %v2282 = vrot.slane %v2016, 2
  %v2283 = vsel %vm281, %v2278, %v2282
  %v2284 = vrot.slane %v2017, 2
  %v2285 = vsel %vm281, %v2280, %v2284
  %v2286 = vrot.slane %v2018, 2
  %v2287 = vsel %vm281, %v2282, %v2286
  %v2288 = vrot.slane %v2019, 2
  %v2289 = vsel %vm281, %v2284, %v2288
  %v2290 = vrot.slane %v2020, 2
  %v2291 = vsel %vm281, %v2286, %v2290
  %v2292 = vrot.slane %v2021, 2
  %v2293 = vsel %vm281, %v2288, %v2292
  %v2294 = vrot.slane %v2022, 2
  %v2295 = vsel %vm281, %v2290, %v2294
  %v2296 = vrot.slane %v2023, 2
  %v2297 = vsel %vm281, %v2292, %v2296
  %v2298 = vrot.slane %v2024, 2
  %v2299 = vsel %vm281, %v2294, %v2298
  %v2300 = vrot.slane %v2025, 2
  %v2301 = vsel %vm281, %v2296, %v2300
  %v2302 = vrot.slane %v2026, 2
  %v2303 = vsel %vm281, %v2298, %v2302
  %v2304 = vrot.slane %v2027, 2
  %v2305 = vsel %vm281, %v2300, %v2304
  %v2306 = vrot.slane %v2028, 2
  %v2307 = vsel %vm281, %v2302, %v2306
  %2308 = vrot.lane.b32.xlu0 %v2244, 80
  %v2309 = vpop.permute.xlu0 %2308
  %2310 = vrot.lane.b32.xlu0 %v2247, 80
  %v2311 = vpop.permute.xlu0 %2310
  %2312 = vrot.lane.b32.xlu0 %v2249, 80
  %v2313 = vpop.permute.xlu0 %2312
  %2314 = vrot.lane.b32.xlu0 %v2251, 80
  %v2315 = vpop.permute.xlu0 %2314
  %2316 = vrot.lane.b32.xlu0 %v2253, 80
  %v2317 = vpop.permute.xlu0 %2316
  %2318 = vrot.lane.b32.xlu0 %v2255, 80
  %v2319 = vpop.permute.xlu0 %2318
  %2320 = vrot.lane.b32.xlu0 %v2257, 80
  %v2321 = vpop.permute.xlu0 %2320
  %2322 = vrot.lane.b32.xlu0 %v2259, 80
  %v2323 = vpop.permute.xlu0 %2322
  %2324 = vrot.lane.b32.xlu0 %v2261, 80
  %v2325 = vpop.permute.xlu0 %2324
  %2326 = vrot.lane.b32.xlu0 %v2263, 80
  %v2327 = vpop.permute.xlu0 %2326
  %2328 = vrot.lane.b32.xlu0 %v2265, 80
  %v2329 = vpop.permute.xlu0 %2328
  %2330 = vrot.lane.b32.xlu0 %v2267, 80
  %v2331 = vpop.permute.xlu0 %2330
  %2332 = vrot.lane.b32.xlu0 %v2269, 80
  %v2333 = vpop.permute.xlu0 %2332
  %2334 = vrot.lane.b32.xlu0 %v2271, 80
  %v2335 = vpop.permute.xlu0 %2334
  %2336 = vrot.lane.b32.xlu0 %v2273, 80
  %v2337 = vpop.permute.xlu0 %2336
  %2338 = vrot.lane.b32.xlu0 %v2275, 80
  %v2339 = vpop.permute.xlu0 %2338
  %2340 = vrot.lane.b32.xlu0 %v2277, 80
  %v2341 = vpop.permute.xlu0 %2340
  %2342 = vrot.lane.b32.xlu0 %v2279, 80
  %v2343 = vpop.permute.xlu0 %2342
  %2344 = vrot.lane.b32.xlu0 %v2281, 80
  %v2345 = vpop.permute.xlu0 %2344
  %2346 = vrot.lane.b32.xlu0 %v2283, 80
  %v2347 = vpop.permute.xlu0 %2346
  %2348 = vrot.lane.b32.xlu0 %v2285, 80
  %v2349 = vpop.permute.xlu0 %2348
  %2350 = vrot.lane.b32.xlu0 %v2287, 80
  %v2351 = vpop.permute.xlu0 %2350
  %2352 = vrot.lane.b32.xlu0 %v2289, 80
  %v2353 = vpop.permute.xlu0 %2352
  %2354 = vrot.lane.b32.xlu0 %v2291, 80
  %v2355 = vpop.permute.xlu0 %2354
  %2356 = vrot.lane.b32.xlu0 %v2293, 80
  %v2357 = vpop.permute.xlu0 %2356
  %2358 = vrot.lane.b32.xlu0 %v2295, 80
  %v2359 = vpop.permute.xlu0 %2358
  %2360 = vrot.lane.b32.xlu0 %v2297, 80
  %v2361 = vpop.permute.xlu0 %2360
  %2362 = vrot.lane.b32.xlu0 %v2299, 80
  %v2363 = vpop.permute.xlu0 %2362
  %2364 = vrot.lane.b32.xlu0 %v2301, 80
  %v2365 = vpop.permute.xlu0 %2364
  %2366 = vrot.lane.b32.xlu0 %v2303, 80
  %v2367 = vpop.permute.xlu0 %2366
  %2368 = vrot.lane.b32.xlu0 %v2305, 80
  %v2369 = vpop.permute.xlu0 %2368
  %2370 = vrot.lane.b32.xlu0 %v2307, 80
  %v2371 = vpop.permute.xlu0 %2370
  %vm2372 = vcmask 654336
  %v2373 = vsel %vm2372, %v2309, %v2311
  %v2374 = vsel %vm2372, %v2313, %v2315
  %v2375 = vsel %vm2372, %v2317, %v2319
  %v2376 = vsel %vm2372, %v2321, %v2323
  %v2377 = vsel %vm2372, %v2325, %v2327
  %v2378 = vsel %vm2372, %v2329, %v2331
  %v2379 = vsel %vm2372, %v2333, %v2335
  %v2380 = vsel %vm2372, %v2337, %v2339
  %v2381 = vsel %vm2372, %v2341, %v2343
  %v2382 = vsel %vm2372, %v2345, %v2347
  %v2383 = vsel %vm2372, %v2349, %v2351
  %v2384 = vsel %vm2372, %v2353, %v2355
  %v2385 = vsel %vm2372, %v2357, %v2359
  %v2386 = vsel %vm2372, %v2361, %v2363
  %v2387 = vsel %vm2372, %v2365, %v2367
  %v2388 = vsel %vm2372, %v2369, %v2371
  %v2421 = vrot.slane %v1995, 3
  %v2422 = vrot.slane %v1997, 3
  %v2423 = vsel %vm443, %v2421, %v2422
  %v2424 = vrot.slane %v1996, 3
  %v2425 = vrot.slane %v1998, 3
  %v2426 = vsel %vm443, %v2424, %v2425
  %v2427 = vrot.slane %v1999, 3
  %v2428 = vsel %vm443, %v2422, %v2427
  %v2429 = vrot.slane %v2000, 3
  %v2430 = vsel %vm443, %v2425, %v2429
  %v2431 = vrot.slane %v2001, 3
  %v2432 = vsel %vm443, %v2427, %v2431
  %v2433 = vrot.slane %v2002, 3
  %v2434 = vsel %vm443, %v2429, %v2433
  %v2435 = vrot.slane %v2003, 3
  %v2436 = vsel %vm443, %v2431, %v2435
  %v2437 = vrot.slane %v2004, 3
  %v2438 = vsel %vm443, %v2433, %v2437
  %v2439 = vrot.slane %v2005, 3
  %v2440 = vsel %vm443, %v2435, %v2439
  %v2441 = vrot.slane %v2006, 3
  %v2442 = vsel %vm443, %v2437, %v2441
  %v2443 = vrot.slane %v2007, 3
  %v2444 = vsel %vm443, %v2439, %v2443
  %v2445 = vrot.slane %v2008, 3
  %v2446 = vsel %vm443, %v2441, %v2445
  %v2447 = vrot.slane %v2009, 3
  %v2448 = vsel %vm443, %v2443, %v2447
  %v2449 = vrot.slane %v2010, 3
  %v2450 = vsel %vm443, %v2445, %v2449
  %v2451 = vrot.slane %v2011, 3
  %v2452 = vsel %vm443, %v2447, %v2451
  %v2453 = vrot.slane %v2012, 3
  %v2454 = vsel %vm443, %v2449, %v2453
  %v2455 = vrot.slane %v2013, 3
  %v2456 = vsel %vm443, %v2451, %v2455
  %v2457 = vrot.slane %v2014, 3
  %v2458 = vsel %vm443, %v2453, %v2457
  %v2459 = vrot.slane %v2015, 3
  %v2460 = vsel %vm443, %v2455, %v2459
  %v2461 = vrot.slane %v2016, 3
  %v2462 = vsel %vm443, %v2457, %v2461
  %v2463 = vrot.slane %v2017, 3
  %v2464 = vsel %vm443, %v2459, %v2463
  %v2465 = vrot.slane %v2018, 3
  %v2466 = vsel %vm443, %v2461, %v2465
  %v2467 = vrot.slane %v2019, 3
  %v2468 = vsel %vm443, %v2463, %v2467
  %v2469 = vrot.slane %v2020, 3
  %v2470 = vsel %vm443, %v2465, %v2469
  %v2471 = vrot.slane %v2021, 3
  %v2472 = vsel %vm443, %v2467, %v2471
  %v2473 = vrot.slane %v2022, 3
  %v2474 = vsel %vm443, %v2469, %v2473
  %v2475 = vrot.slane %v2023, 3
  %v2476 = vsel %vm443, %v2471, %v2475
  %v2477 = vrot.slane %v2024, 3
  %v2478 = vsel %vm443, %v2473, %v2477
  %v2479 = vrot.slane %v2025, 3
  %v2480 = vsel %vm443, %v2475, %v2479
  %v2481 = vrot.slane %v2026, 3
  %v2482 = vsel %vm443, %v2477, %v2481
  %v2483 = vrot.slane %v2027, 3
  %v2484 = vsel %vm443, %v2479, %v2483
  %v2485 = vrot.slane %v2028, 3
  %v2486 = vsel %vm443, %v2481, %v2485
  %2487 = vrot.lane.b32.xlu0 %v2423, 120
  %v2488 = vpop.permute.xlu0 %2487
  %2489 = vrot.lane.b32.xlu0 %v2426, 120
  %v2490 = vpop.permute.xlu0 %2489
  %2491 = vrot.lane.b32.xlu0 %v2428, 120
  %v2492 = vpop.permute.xlu0 %2491
  %2493 = vrot.lane.b32.xlu0 %v2430, 120
  %v2494 = vpop.permute.xlu0 %2493
  %2495 = vrot.lane.b32.xlu0 %v2432, 120
  %v2496 = vpop.permute.xlu0 %2495
  %2497 = vrot.lane.b32.xlu0 %v2434, 120
  %v2498 = vpop.permute.xlu0 %2497
  %2499 = vrot.lane.b32.xlu0 %v2436, 120
  %v2500 = vpop.permute.xlu0 %2499
  %2501 = vrot.lane.b32.xlu0 %v2438, 120
  %v2502 = vpop.permute.xlu0 %2501
  %2503 = vrot.lane.b32.xlu0 %v2440, 120
  %v2504 = vpop.permute.xlu0 %2503
  %2505 = vrot.lane.b32.xlu0 %v2442, 120
  %v2506 = vpop.permute.xlu0 %2505
  %2507 = vrot.lane.b32.xlu0 %v2444, 120
  %v2508 = vpop.permute.xlu0 %2507
  %2509 = vrot.lane.b32.xlu0 %v2446, 120
  %v2510 = vpop.permute.xlu0 %2509
  %2511 = vrot.lane.b32.xlu0 %v2448, 120
  %v2512 = vpop.permute.xlu0 %2511
  %2513 = vrot.lane.b32.xlu0 %v2450, 120
  %v2514 = vpop.permute.xlu0 %2513
  %2515 = vrot.lane.b32.xlu0 %v2452, 120
  %v2516 = vpop.permute.xlu0 %2515
  %2517 = vrot.lane.b32.xlu0 %v2454, 120
  %v2518 = vpop.permute.xlu0 %2517
  %2519 = vrot.lane.b32.xlu0 %v2456, 120
  %v2520 = vpop.permute.xlu0 %2519
  %2521 = vrot.lane.b32.xlu0 %v2458, 120
  %v2522 = vpop.permute.xlu0 %2521
  %2523 = vrot.lane.b32.xlu0 %v2460, 120
  %v2524 = vpop.permute.xlu0 %2523
  %2525 = vrot.lane.b32.xlu0 %v2462, 120
  %v2526 = vpop.permute.xlu0 %2525
  %2527 = vrot.lane.b32.xlu0 %v2464, 120
  %v2528 = vpop.permute.xlu0 %2527
  %2529 = vrot.lane.b32.xlu0 %v2466, 120
  %v2530 = vpop.permute.xlu0 %2529
  %2531 = vrot.lane.b32.xlu0 %v2468, 120
  %v2532 = vpop.permute.xlu0 %2531
  %2533 = vrot.lane.b32.xlu0 %v2470, 120
  %v2534 = vpop.permute.xlu0 %2533
  %2535 = vrot.lane.b32.xlu0 %v2472, 120
  %v2536 = vpop.permute.xlu0 %2535
  %2537 = vrot.lane.b32.xlu0 %v2474, 120
  %v2538 = vpop.permute.xlu0 %2537
  %2539 = vrot.lane.b32.xlu0 %v2476, 120
  %v2540 = vpop.permute.xlu0 %2539
  %2541 = vrot.lane.b32.xlu0 %v2478, 120
  %v2542 = vpop.permute.xlu0 %2541
  %2543 = vrot.lane.b32.xlu0 %v2480, 120
  %v2544 = vpop.permute.xlu0 %2543
  %2545 = vrot.lane.b32.xlu0 %v2482, 120
  %v2546 = vpop.permute.xlu0 %2545
  %2547 = vrot.lane.b32.xlu0 %v2484, 120
  %v2548 = vpop.permute.xlu0 %2547
  %2549 = vrot.lane.b32.xlu0 %v2486, 120
  %v2550 = vpop.permute.xlu0 %2549
  %vm2551 = vcmask 982016
  %v2552 = vsel %vm2551, %v2488, %v2490
  %v2553 = vsel %vm2551, %v2492, %v2494
  %v2554 = vsel %vm2551, %v2496, %v2498
  %v2555 = vsel %vm2551, %v2500, %v2502
  %v2556 = vsel %vm2551, %v2504, %v2506
  %v2557 = vsel %vm2551, %v2508, %v2510
  %v2558 = vsel %vm2551, %v2512, %v2514
  %v2559 = vsel %vm2551, %v2516, %v2518
  %v2560 = vsel %vm2551, %v2520, %v2522
  %v2561 = vsel %vm2551, %v2524, %v2526
  %v2562 = vsel %vm2551, %v2528, %v2530
  %v2563 = vsel %vm2551, %v2532, %v2534
  %v2564 = vsel %vm2551, %v2536, %v2538
  %v2565 = vsel %vm2551, %v2540, %v2542
  %v2566 = vsel %vm2551, %v2544, %v2546
  %v2567 = vsel %vm2551, %v2548, %v2550
  %v2616 = vrot.slane %v1995, 4
  %v2617 = vrot.slane %v1997, 4
  %v2618 = vsel %vm605, %v2616, %v2617
  %v2619 = vrot.slane %v1996, 4
  %v2620 = vrot.slane %v1998, 4
  %v2621 = vsel %vm605, %v2619, %v2620
  %v2622 = vrot.slane %v1999, 4
  %v2623 = vsel %vm605, %v2617, %v2622
  %v2624 = vrot.slane %v2000, 4
  %v2625 = vsel %vm605, %v2620, %v2624
  %v2626 = vrot.slane %v2001, 4
  %v2627 = vsel %vm605, %v2622, %v2626
  %v2628 = vrot.slane %v2002, 4
  %v2629 = vsel %vm605, %v2624, %v2628
  %v2630 = vrot.slane %v2003, 4
  %v2631 = vsel %vm605, %v2626, %v2630
  %v2632 = vrot.slane %v2004, 4
  %v2633 = vsel %vm605, %v2628, %v2632
  %v2634 = vrot.slane %v2005, 4
  %v2635 = vsel %vm605, %v2630, %v2634
  %v2636 = vrot.slane %v2006, 4
  %v2637 = vsel %vm605, %v2632, %v2636
  %v2638 = vrot.slane %v2007, 4
  %v2639 = vsel %vm605, %v2634, %v2638
  %v2640 = vrot.slane %v2008, 4
  %v2641 = vsel %vm605, %v2636, %v2640
  %v2642 = vrot.slane %v2009, 4
  %v2643 = vsel %vm605, %v2638, %v2642
  %v2644 = vrot.slane %v2010, 4
  %v2645 = vsel %vm605, %v2640, %v2644
  %v2646 = vrot.slane %v2011, 4
  %v2647 = vsel %vm605, %v2642, %v2646
  %v2648 = vrot.slane %v2012, 4
  %v2649 = vsel %vm605, %v2644, %v2648
  %v2650 = vrot.slane %v2013, 4
  %v2651 = vsel %vm605, %v2646, %v2650
  %v2652 = vrot.slane %v2014, 4
  %v2653 = vsel %vm605, %v2648, %v2652
  %v2654 = vrot.slane %v2015, 4
  %v2655 = vsel %vm605, %v2650, %v2654
  %v2656 = vrot.slane %v2016, 4
  %v2657 = vsel %vm605, %v2652, %v2656
  %v2658 = vrot.slane %v2017, 4
  %v2659 = vsel %vm605, %v2654, %v2658
  %v2660 = vrot.slane %v2018, 4
  %v2661 = vsel %vm605, %v2656, %v2660
  %v2662 = vrot.slane %v2019, 4
  %v2663 = vsel %vm605, %v2658, %v2662
  %v2664 = vrot.slane %v2020, 4
  %v2665 = vsel %vm605, %v2660, %v2664
  %v2666 = vrot.slane %v2021, 4
  %v2667 = vsel %vm605, %v2662, %v2666
  %v2668 = vrot.slane %v2022, 4
  %v2669 = vsel %vm605, %v2664, %v2668
  %v2670 = vrot.slane %v2023, 4
  %v2671 = vsel %vm605, %v2666, %v2670
  %v2672 = vrot.slane %v2024, 4
  %v2673 = vsel %vm605, %v2668, %v2672
  %v2674 = vrot.slane %v2025, 4
  %v2675 = vsel %vm605, %v2670, %v2674
  %v2676 = vrot.slane %v2026, 4
  %v2677 = vsel %vm605, %v2672, %v2676
  %v2678 = vrot.slane %v2027, 4
  %v2679 = vsel %vm605, %v2674, %v2678
  %v2680 = vrot.slane %v2028, 4
  %v2681 = vsel %vm605, %v2676, %v2680
  %2682 = vrot.lane.b32.xlu0 %v2618, 32
  %v2683 = vpop.permute.xlu0 %2682
  %2684 = vrot.lane.b32.xlu0 %v2621, 32
  %v2685 = vpop.permute.xlu0 %2684
  %2686 = vrot.lane.b32.xlu0 %v2623, 32
  %v2687 = vpop.permute.xlu0 %2686
  %2688 = vrot.lane.b32.xlu0 %v2625, 32
  %v2689 = vpop.permute.xlu0 %2688
  %2690 = vrot.lane.b32.xlu0 %v2627, 32
  %v2691 = vpop.permute.xlu0 %2690
  %2692 = vrot.lane.b32.xlu0 %v2629, 32
  %v2693 = vpop.permute.xlu0 %2692
  %2694 = vrot.lane.b32.xlu0 %v2631, 32
  %v2695 = vpop.permute.xlu0 %2694
  %2696 = vrot.lane.b32.xlu0 %v2633, 32
  %v2697 = vpop.permute.xlu0 %2696
  %2698 = vrot.lane.b32.xlu0 %v2635, 32
  %v2699 = vpop.permute.xlu0 %2698
  %2700 = vrot.lane.b32.xlu0 %v2637, 32
  %v2701 = vpop.permute.xlu0 %2700
  %2702 = vrot.lane.b32.xlu0 %v2639, 32
  %v2703 = vpop.permute.xlu0 %2702
  %2704 = vrot.lane.b32.xlu0 %v2641, 32
  %v2705 = vpop.permute.xlu0 %2704
  %2706 = vrot.lane.b32.xlu0 %v2643, 32
  %v2707 = vpop.permute.xlu0 %2706
  %2708 = vrot.lane.b32.xlu0 %v2645, 32
  %v2709 = vpop.permute.xlu0 %2708
  %2710 = vrot.lane.b32.xlu0 %v2647, 32
  %v2711 = vpop.permute.xlu0 %2710
  %2712 = vrot.lane.b32.xlu0 %v2649, 32
  %v2713 = vpop.permute.xlu0 %2712
  %2714 = vrot.lane.b32.xlu0 %v2651, 32
  %v2715 = vpop.permute.xlu0 %2714
  %2716 = vrot.lane.b32.xlu0 %v2653, 32
  %v2717 = vpop.permute.xlu0 %2716
  %2718 = vrot.lane.b32.xlu0 %v2655, 32
  %v2719 = vpop.permute.xlu0 %2718
  %2720 = vrot.lane.b32.xlu0 %v2657, 32
  %v2721 = vpop.permute.xlu0 %2720
  %2722 = vrot.lane.b32.xlu0 %v2659, 32
  %v2723 = vpop.permute.xlu0 %2722
  %2724 = vrot.lane.b32.xlu0 %v2661, 32
  %v2725 = vpop.permute.xlu0 %2724
  %2726 = vrot.lane.b32.xlu0 %v2663, 32
  %v2727 = vpop.permute.xlu0 %2726
  %2728 = vrot.lane.b32.xlu0 %v2665, 32
  %v2729 = vpop.permute.xlu0 %2728
  %2730 = vrot.lane.b32.xlu0 %v2667, 32
  %v2731 = vpop.permute.xlu0 %2730
  %2732 = vrot.lane.b32.xlu0 %v2669, 32
  %v2733 = vpop.permute.xlu0 %2732
  %2734 = vrot.lane.b32.xlu0 %v2671, 32
  %v2735 = vpop.permute.xlu0 %2734
  %2736 = vrot.lane.b32.xlu0 %v2673, 32
  %v2737 = vpop.permute.xlu0 %2736
  %2738 = vrot.lane.b32.xlu0 %v2675, 32
  %v2739 = vpop.permute.xlu0 %2738
  %2740 = vrot.lane.b32.xlu0 %v2677, 32
  %v2741 = vpop.permute.xlu0 %2740
  %2742 = vrot.lane.b32.xlu0 %v2679, 32
  %v2743 = vpop.permute.xlu0 %2742
  %2744 = vrot.lane.b32.xlu0 %v2681, 32
  %v2745 = vpop.permute.xlu0 %2744
  %v2746 = vsel %vm671, %v2683, %v2685
  %v2747 = vsel %vm671, %v2687, %v2689
  %v2748 = vsel %vm671, %v2691, %v2693
  %v2749 = vsel %vm671, %v2695, %v2697
  %v2750 = vsel %vm671, %v2699, %v2701
  %v2751 = vsel %vm671, %v2703, %v2705
  %v2752 = vsel %vm671, %v2707, %v2709
  %v2753 = vsel %vm671, %v2711, %v2713
  %v2754 = vsel %vm671, %v2715, %v2717
  %v2755 = vsel %vm671, %v2719, %v2721
  %v2756 = vsel %vm671, %v2723, %v2725
  %v2757 = vsel %vm671, %v2727, %v2729
  %v2758 = vsel %vm671, %v2731, %v2733
  %v2759 = vsel %vm671, %v2735, %v2737
  %v2760 = vsel %vm671, %v2739, %v2741
  %v2761 = vsel %vm671, %v2743, %v2745
  %v2778 = vsel %vm2193, %v1996, %v2130
  %v2779 = vsel %vm2193, %v1998, %v2134
  %v2780 = vsel %vm2193, %v2000, %v2138
  %v2781 = vsel %vm2193, %v2002, %v2142
  %v2782 = vsel %vm2193, %v2004, %v2146
  %v2783 = vsel %vm2193, %v2006, %v2150
  %v2784 = vsel %vm2193, %v2008, %v2154
  %v2785 = vsel %vm2193, %v2010, %v2158
  %v2786 = vsel %vm2193, %v2012, %v2162
  %v2787 = vsel %vm2193, %v2014, %v2166
  %v2788 = vsel %vm2193, %v2016, %v2170
  %v2789 = vsel %vm2193, %v2018, %v2174
  %v2790 = vsel %vm2193, %v2020, %v2178
  %v2791 = vsel %vm2193, %v2022, %v2182
  %v2792 = vsel %vm2193, %v2024, %v2186
  %v2793 = vsel %vm2193, %v2026, %v2190
  %v2794 = vsel %vm2372, %v2194, %v2309
  %v2795 = vsel %vm2372, %v2195, %v2313
  %v2796 = vsel %vm2372, %v2196, %v2317
  %v2797 = vsel %vm2372, %v2197, %v2321
  %v2798 = vsel %vm2372, %v2198, %v2325
  %v2799 = vsel %vm2372, %v2199, %v2329
  %v2800 = vsel %vm2372, %v2200, %v2333
  %v2801 = vsel %vm2372, %v2201, %v2337
  %v2802 = vsel %vm2372, %v2202, %v2341
  %v2803 = vsel %vm2372, %v2203, %v2345
  %v2804 = vsel %vm2372, %v2204, %v2349
  %v2805 = vsel %vm2372, %v2205, %v2353
  %v2806 = vsel %vm2372, %v2206, %v2357
  %v2807 = vsel %vm2372, %v2207, %v2361
  %v2808 = vsel %vm2372, %v2208, %v2365
  %v2809 = vsel %vm2372, %v2209, %v2369
  %v2810 = vsel %vm2551, %v2373, %v2488
  %v2811 = vsel %vm2551, %v2374, %v2492
  %v2812 = vsel %vm2551, %v2375, %v2496
  %v2813 = vsel %vm2551, %v2376, %v2500
  %v2814 = vsel %vm2551, %v2377, %v2504
  %v2815 = vsel %vm2551, %v2378, %v2508
  %v2816 = vsel %vm2551, %v2379, %v2512
  %v2817 = vsel %vm2551, %v2380, %v2516
  %v2818 = vsel %vm2551, %v2381, %v2520
  %v2819 = vsel %vm2551, %v2382, %v2524
  %v2820 = vsel %vm2551, %v2383, %v2528
  %v2821 = vsel %vm2551, %v2384, %v2532
  %v2822 = vsel %vm2551, %v2385, %v2536
  %v2823 = vsel %vm2551, %v2386, %v2540
  %v2824 = vsel %vm2551, %v2387, %v2544
  %v2825 = vsel %vm2551, %v2388, %v2548
  %v2826 = vsel %vm671, %v2490, %v2683
  %v2827 = vsel %vm671, %v2494, %v2687
  %v2828 = vsel %vm671, %v2498, %v2691
  %v2829 = vsel %vm671, %v2502, %v2695
  %v2830 = vsel %vm671, %v2506, %v2699
  %v2831 = vsel %vm671, %v2510, %v2703
  %v2832 = vsel %vm671, %v2514, %v2707
  %v2833 = vsel %vm671, %v2518, %v2711
  %v2834 = vsel %vm671, %v2522, %v2715
  %v2835 = vsel %vm671, %v2526, %v2719
  %v2836 = vsel %vm671, %v2530, %v2723
  %v2837 = vsel %vm671, %v2534, %v2727
  %v2838 = vsel %vm671, %v2538, %v2731
  %v2839 = vsel %vm671, %v2542, %v2735
  %v2840 = vsel %vm671, %v2546, %v2739
  %v2841 = vsel %vm671, %v2550, %v2743
  %v2842 = vld [vmem:[%s5] sm:$0xff]
  %v2843 = vld [vmem:[%s5 + $0x8] sm:$0xff]
  %v2844 = vld [vmem:[%s5 + $0x10] sm:$0xff]
  %v2845 = vld [vmem:[%s5 + $0x18] sm:$0xff]
  %v2846 = vld [vmem:[%s5 + $0x20] sm:$0xff]
  %v2847 = vld [vmem:[%s5 + $0x28] sm:$0xff]
  %v2848 = vld [vmem:[%s5 + $0x30] sm:$0xff]
  %v2849 = vld [vmem:[%s5 + $0x38] sm:$0xff]
  %v2850 = vld [vmem:[%s5 + $0x40] sm:$0xff]
  %v2851 = vld [vmem:[%s5 + $0x48] sm:$0xff]
  %v2852 = vld [vmem:[%s5 + $0x50] sm:$0xff]
  %v2853 = vld [vmem:[%s5 + $0x58] sm:$0xff]
  %v2854 = vld [vmem:[%s5 + $0x60] sm:$0xff]
  %v2855 = vld [vmem:[%s5 + $0x68] sm:$0xff]
  %v2856 = vld [vmem:[%s5 + $0x70] sm:$0xff]
  %v2857 = vld [vmem:[%s5 + $0x78] sm:$0xff]
  %v2858 = vld [vmem:[%s5 + $0x80] sm:$0xff]
  %v2859 = vld [vmem:[%s5 + $0x88] sm:$0xff]
  %v2860 = vld [vmem:[%s5 + $0x90] sm:$0xff]
  %v2861 = vld [vmem:[%s5 + $0x98] sm:$0xff]
  %v2862 = vld [vmem:[%s5 + $0xa0] sm:$0xff]
  %v2863 = vld [vmem:[%s5 + $0xa8] sm:$0xff]
  %v2864 = vld [vmem:[%s5 + $0xb0] sm:$0xff]
  %v2865 = vld [vmem:[%s5 + $0xb8] sm:$0xff]
  %v2866 = vld [vmem:[%s5 + $0xc0] sm:$0xff]
  %v2867 = vld [vmem:[%s5 + $0xc8] sm:$0xff]
  %v2868 = vld [vmem:[%s5 + $0xd0] sm:$0xff]
  %v2869 = vld [vmem:[%s5 + $0xd8] sm:$0xff]
  %v2870 = vld [vmem:[%s5 + $0xe0] sm:$0xff]
  %v2871 = vld [vmem:[%s5 + $0xe8] sm:$0xff]
  %v2872 = vld [vmem:[%s5 + $0xf0] sm:$0xff]
  %v2873 = vld [vmem:[%s5 + $0xf8] sm:$0xff]
  %v2874 = vld [vmem:[%s5 + $0x100] sm:$0xff]
  %v2875 = vld [vmem:[%s5 + $0x108] sm:$0xff]
  %v2876 = vld [vmem:[%s5 + $0x110] sm:$0xff]
  %v2877 = vld [vmem:[%s5 + $0x118] sm:$0xff]
  %v2878 = vld [vmem:[%s5 + $0x120] sm:$0xff]
  %v2879 = vld [vmem:[%s5 + $0x128] sm:$0xff]
  %v2880 = vld [vmem:[%s5 + $0x130] sm:$0xff]
  %v2881 = vld [vmem:[%s5 + $0x138] sm:$0xff]
  %v2882 = vld [vmem:[%s5 + $0x140] sm:$0xff]
  %v2883 = vld [vmem:[%s5 + $0x148] sm:$0xff]
  %v2884 = vld [vmem:[%s5 + $0x150] sm:$0xff]
  %v2885 = vld [vmem:[%s5 + $0x158] sm:$0xff]
  %v2886 = vld [vmem:[%s5 + $0x160] sm:$0xff]
  %v2887 = vld [vmem:[%s5 + $0x168] sm:$0xff]
  %v2888 = vld [vmem:[%s5 + $0x170] sm:$0xff]
  %v2889 = vld [vmem:[%s5 + $0x178] sm:$0xff]
  %v2890 = vld [vmem:[%s5 + $0x180] sm:$0xff]
  %v2891 = vld [vmem:[%s5 + $0x188] sm:$0xff]
  %v2892 = vld [vmem:[%s5 + $0x190] sm:$0xff]
  %v2893 = vld [vmem:[%s5 + $0x198] sm:$0xff]
  %v2894 = vld [vmem:[%s5 + $0x1a0] sm:$0xff]
  %v2895 = vld [vmem:[%s5 + $0x1a8] sm:$0xff]
  %v2896 = vld [vmem:[%s5 + $0x1b0] sm:$0xff]
  %v2897 = vld [vmem:[%s5 + $0x1b8] sm:$0xff]
  %v2898 = vld [vmem:[%s5 + $0x1c0] sm:$0xff]
  %v2899 = vld [vmem:[%s5 + $0x1c8] sm:$0xff]
  %v2900 = vld [vmem:[%s5 + $0x1d0] sm:$0xff]
  %v2901 = vld [vmem:[%s5 + $0x1d8] sm:$0xff]
  %v2902 = vld [vmem:[%s5 + $0x1e0] sm:$0xff]
  %v2903 = vld [vmem:[%s5 + $0x1e8] sm:$0xff]
  %v2904 = vld [vmem:[%s5 + $0x1f0] sm:$0xff]
  %v2905 = vld [vmem:[%s5 + $0x1f8] sm:$0xff]
  %v2906 = vld [vmem:[%s5 + $0x200] sm:$0xff]
  %v2907 = vld [vmem:[%s5 + $0x208] sm:$0xff]
  %v2908 = vld [vmem:[%s5 + $0x210] sm:$0xff]
  %v2909 = vld [vmem:[%s5 + $0x218] sm:$0xff]
  %v2910 = vld [vmem:[%s5 + $0x220] sm:$0xff]
  %v2911 = vld [vmem:[%s5 + $0x228] sm:$0xff]
  %v2912 = vld [vmem:[%s5 + $0x230] sm:$0xff]
  %v2913 = vld [vmem:[%s5 + $0x238] sm:$0xff]
  %v2914 = vld [vmem:[%s5 + $0x240] sm:$0xff]
  %v2915 = vld [vmem:[%s5 + $0x248] sm:$0xff]
  %v2916 = vld [vmem:[%s5 + $0x250] sm:$0xff]
  %v2917 = vld [vmem:[%s5 + $0x258] sm:$0xff]
  %v2918 = vld [vmem:[%s5 + $0x260] sm:$0xff]
  %v2919 = vld [vmem:[%s5 + $0x268] sm:$0xff]
  %v2920 = vld [vmem:[%s5 + $0x270] sm:$0xff]
  %v2921 = vld [vmem:[%s5 + $0x278] sm:$0xff]
  %v2922 = vld [vmem:[%s5 + $0x280] sm:$0xff]
  %v2923 = vld [vmem:[%s5 + $0x288] sm:$0xff]
  %v2924 = vld [vmem:[%s5 + $0x290] sm:$0xff]
  %v2925 = vld [vmem:[%s5 + $0x298] sm:$0xff]
  %v2926 = vld [vmem:[%s5 + $0x2a0] sm:$0xff]
  %v2927 = vld [vmem:[%s5 + $0x2a8] sm:$0xff]
  %v2928 = vld [vmem:[%s5 + $0x2b0] sm:$0xff]
  %v2929 = vld [vmem:[%s5 + $0x2b8] sm:$0xff]
  %v2930 = vld [vmem:[%s5 + $0x2c0] sm:$0xff]
  %v2931 = vld [vmem:[%s5 + $0x2c8] sm:$0xff]
  %v2932 = vld [vmem:[%s5 + $0x2d0] sm:$0xff]
  %v2933 = vld [vmem:[%s5 + $0x2d8] sm:$0xff]
  %v2934 = vld [vmem:[%s5 + $0x2e0] sm:$0xff]
  %v2935 = vld [vmem:[%s5 + $0x2e8] sm:$0xff]
  %v2936 = vld [vmem:[%s5 + $0x2f0] sm:$0xff]
  %v2937 = vld [vmem:[%s5 + $0x2f8] sm:$0xff]
  %v2938 = vld [vmem:[%s5 + $0x300] sm:$0xff]
  %v2939 = vld [vmem:[%s5 + $0x308] sm:$0xff]
  %v2940 = vld [vmem:[%s5 + $0x310] sm:$0xff]
  %v2941 = vld [vmem:[%s5 + $0x318] sm:$0xff]
  %v2942 = vld [vmem:[%s5 + $0x320] sm:$0xff]
  %v2943 = vld [vmem:[%s5 + $0x328] sm:$0xff]
  %v2944 = vld [vmem:[%s5 + $0x330] sm:$0xff]
  %v2945 = vld [vmem:[%s5 + $0x338] sm:$0xff]
  %v2946 = vld [vmem:[%s5 + $0x340] sm:$0xff]
  %v2947 = vld [vmem:[%s5 + $0x348] sm:$0xff]
  %v2948 = vld [vmem:[%s5 + $0x350] sm:$0xff]
  %v2949 = vld [vmem:[%s5 + $0x358] sm:$0xff]
  %v2950 = vld [vmem:[%s5 + $0x360] sm:$0xff]
  %v2951 = vld [vmem:[%s5 + $0x368] sm:$0xff]
  %v2952 = vld [vmem:[%s5 + $0x370] sm:$0xff]
  %v2953 = vld [vmem:[%s5 + $0x378] sm:$0xff]
  %v2954 = vld [vmem:[%s5 + $0x380] sm:$0xff]
  %v2955 = vld [vmem:[%s5 + $0x388] sm:$0xff]
  %v2956 = vld [vmem:[%s5 + $0x390] sm:$0xff]
  %v2957 = vld [vmem:[%s5 + $0x398] sm:$0xff]
  %v2958 = vld [vmem:[%s5 + $0x3a0] sm:$0xff]
  %v2959 = vld [vmem:[%s5 + $0x3a8] sm:$0xff]
  %v2960 = vld [vmem:[%s5 + $0x3b0] sm:$0xff]
  %v2961 = vld [vmem:[%s5 + $0x3b8] sm:$0xff]
  %v2962 = vld [vmem:[%s5 + $0x3c0] sm:$0xff]
  %v2963 = vld [vmem:[%s5 + $0x3c8] sm:$0xff]
  %v2964 = vld [vmem:[%s5 + $0x3d0] sm:$0xff]
  %v2965 = vld [vmem:[%s5 + $0x3d8] sm:$0xff]
  %v2966 = vld [vmem:[%s5 + $0x3e0] sm:$0xff]
  %v2967 = vld [vmem:[%s5 + $0x3e8] sm:$0xff]
  %v2968 = vld [vmem:[%s5 + $0x3f0] sm:$0xff]
  %v2969 = vld [vmem:[%s5 + $0x3f8] sm:$0xff]
  %v2970 = vld [vmem:[%s5 + $0x400] sm:$0xff]
  %v2971 = vld [vmem:[%s5 + $0x408] sm:$0xff]
  %v2972 = vld [vmem:[%s5 + $0x410] sm:$0xff]
  %v2973 = vld [vmem:[%s5 + $0x418] sm:$0xff]
  %v2974 = vld [vmem:[%s5 + $0x420] sm:$0xff]
  %v2975 = vld [vmem:[%s5 + $0x428] sm:$0xff]
  %v2976 = vld [vmem:[%s5 + $0x430] sm:$0xff]
  %v2977 = vld [vmem:[%s5 + $0x438] sm:$0xff]
  %v2978 = vld [vmem:[%s5 + $0x440] sm:$0xff]
  %v2979 = vld [vmem:[%s5 + $0x448] sm:$0xff]
  %v2980 = vld [vmem:[%s5 + $0x450] sm:$0xff]
  %v2981 = vld [vmem:[%s5 + $0x458] sm:$0xff]
  %v2982 = vld [vmem:[%s5 + $0x460] sm:$0xff]
  %v2983 = vld [vmem:[%s5 + $0x468] sm:$0xff]
  %v2984 = vld [vmem:[%s5 + $0x470] sm:$0xff]
  %v2985 = vld [vmem:[%s5 + $0x478] sm:$0xff]
  %v2986 = vld [vmem:[%s5 + $0x480] sm:$0xff]
  %v2987 = vld [vmem:[%s5 + $0x488] sm:$0xff]
  %v2988 = vld [vmem:[%s5 + $0x490] sm:$0xff]
  %v2989 = vld [vmem:[%s5 + $0x498] sm:$0xff]
  %v2990 = vld [vmem:[%s5 + $0x4a0] sm:$0xff]
  %v2991 = vld [vmem:[%s5 + $0x4a8] sm:$0xff]
  %v2992 = vld [vmem:[%s5 + $0x4b0] sm:$0xff]
  %v2993 = vld [vmem:[%s5 + $0x4b8] sm:$0xff]
  %v2994 = vld [vmem:[%s5 + $0x4c0] sm:$0xff]
  %v2995 = vld [vmem:[%s5 + $0x4c8] sm:$0xff]
  %v2996 = vld [vmem:[%s5 + $0x4d0] sm:$0xff]
  %v2997 = vld [vmem:[%s5 + $0x4d8] sm:$0xff]
  %v2998 = vld [vmem:[%s5 + $0x4e0] sm:$0xff]
  %v2999 = vld [vmem:[%s5 + $0x4e8] sm:$0xff]
  %v3000 = vld [vmem:[%s5 + $0x4f0] sm:$0xff]
  %v3001 = vld [vmem:[%s5 + $0x4f8] sm:$0xff]
  %v3002 = vld [vmem:[%s5 + $0x500] sm:$0xff]
  %v3003 = vld [vmem:[%s5 + $0x508] sm:$0xff]
  %v3004 = vld [vmem:[%s5 + $0x510] sm:$0xff]
  %v3005 = vld [vmem:[%s5 + $0x518] sm:$0xff]
  %v3006 = vld [vmem:[%s5 + $0x520] sm:$0xff]
  %v3007 = vld [vmem:[%s5 + $0x528] sm:$0xff]
  %v3008 = vld [vmem:[%s5 + $0x530] sm:$0xff]
  %v3009 = vld [vmem:[%s5 + $0x538] sm:$0xff]
  %v3010 = vld [vmem:[%s5 + $0x540] sm:$0xff]
  %v3011 = vld [vmem:[%s5 + $0x548] sm:$0xff]
  %v3012 = vld [vmem:[%s5 + $0x550] sm:$0xff]
  %v3013 = vld [vmem:[%s5 + $0x558] sm:$0xff]
  %v3014 = vld [vmem:[%s5 + $0x560] sm:$0xff]
  %v3015 = vld [vmem:[%s5 + $0x568] sm:$0xff]
  %v3016 = vld [vmem:[%s5 + $0x570] sm:$0xff]
  %v3017 = vld [vmem:[%s5 + $0x578] sm:$0xff]
  %v3018 = vld [vmem:[%s5 + $0x580] sm:$0xff]
  %v3019 = vld [vmem:[%s5 + $0x588] sm:$0xff]
  %v3020 = vld [vmem:[%s5 + $0x590] sm:$0xff]
  %v3021 = vld [vmem:[%s5 + $0x598] sm:$0xff]
  %v3022 = vld [vmem:[%s5 + $0x5a0] sm:$0xff]
  %v3023 = vld [vmem:[%s5 + $0x5a8] sm:$0xff]
  %v3024 = vld [vmem:[%s5 + $0x5b0] sm:$0xff]
  %v3025 = vld [vmem:[%s5 + $0x5b8] sm:$0xff]
  %v3026 = vld [vmem:[%s5 + $0x5c0] sm:$0xff]
  %v3027 = vld [vmem:[%s5 + $0x5c8] sm:$0xff]
  %v3028 = vld [vmem:[%s5 + $0x5d0] sm:$0xff]
  %v3029 = vld [vmem:[%s5 + $0x5d8] sm:$0xff]
  %v3030 = vld [vmem:[%s5 + $0x5e0] sm:$0xff]
  %v3031 = vld [vmem:[%s5 + $0x5e8] sm:$0xff]
  %v3032 = vld [vmem:[%s5 + $0x5f0] sm:$0xff]
  %v3033 = vld [vmem:[%s5 + $0x5f8] sm:$0xff]
  %v3034 = vld [vmem:[%s5 + $0x600] sm:$0xff]
  %v3035 = vld [vmem:[%s5 + $0x608] sm:$0xff]
  %v3036 = vld [vmem:[%s5 + $0x610] sm:$0xff]
  %v3037 = vld [vmem:[%s5 + $0x618] sm:$0xff]
  %v3038 = vld [vmem:[%s5 + $0x620] sm:$0xff]
  %v3039 = vld [vmem:[%s5 + $0x628] sm:$0xff]
  %v3040 = vld [vmem:[%s5 + $0x630] sm:$0xff]
  %v3041 = vld [vmem:[%s5 + $0x638] sm:$0xff]
  %v3042 = vld [vmem:[%s5 + $0x640] sm:$0xff]
  %v3043 = vld [vmem:[%s5 + $0x648] sm:$0xff]
  %v3044 = vld [vmem:[%s5 + $0x650] sm:$0xff]
  %v3045 = vld [vmem:[%s5 + $0x658] sm:$0xff]
  %v3046 = vld [vmem:[%s5 + $0x660] sm:$0xff]
  %v3047 = vld [vmem:[%s5 + $0x668] sm:$0xff]
  %v3048 = vld [vmem:[%s5 + $0x670] sm:$0xff]
  %v3049 = vld [vmem:[%s5 + $0x678] sm:$0xff]
  %v3050 = vld [vmem:[%s5 + $0x680] sm:$0xff]
  %v3051 = vld [vmem:[%s5 + $0x688] sm:$0xff]
  %v3052 = vld [vmem:[%s6] sm:$0x3]
  %v3054 = vlaneseq
  %v3055 = vshrl.u32 %v3054, 7
  %v3056 = vsub.s32 0, %v3055
  %v3057 = vrot.slane %v3052, %v3056
  %v3058 = vlaneseq
  %v3059 = vshrl.u32 %v3058, 7
  %v3060 = vsub.s32 1, %v3059
  %v3061 = vrot.slane %v3052, %v3060
  %vm3064 = vcmask 588800
  %v3065 = vsel %vm3064, %v2746, 0
  %v3067 = vsel %vm3064, %v2747, 0
  %v3069 = vsel %vm3064, %v2748, 0
  %v3071 = vsel %vm3064, %v2749, 0
  %v3073 = vsel %vm3064, %v2750, 0
  %v3075 = vsel %vm3064, %v2751, 0
  %v3077 = vsel %vm3064, %v2752, 0
  %v3079 = vsel %vm3064, %v2753, 0
  %v3081 = vsel %vm3064, %v2754, 0
  %v3083 = vsel %vm3064, %v2755, 0
  %v3085 = vsel %vm3064, %v2756, 0
  %v3087 = vsel %vm3064, %v2757, 0
  %v3089 = vsel %vm3064, %v2758, 0
  %v3091 = vsel %vm3064, %v2759, 0
  %v3093 = vsel %vm3064, %v2760, 0
  %v3095 = vsel %vm3064, %v2761, 0
  %3097 = vmatprep.subr.mxu0 %v2843
  %3098 = vmatpush1.msra.mxu0 %v2842
  %3099 = vmatprep.subr.mxu0 %v2845
  %3100 = vmatpush1.msra.mxu0 %v2844
  %3101 = vmatprep.subr.mxu0 %v2847
  %3102 = vmatpush1.msra.mxu0 %v2846
  %3103 = vmatprep.subr.mxu0 %v2849
  %3104 = vmatpush1.msra.mxu0 %v2848
  %3105 = vmatprep.subr.mxu0 %v2851
  %3106 = vmatpush1.msra.mxu0 %v2850
  %3107 = vmatprep.subr.mxu0 %v2853
  %3108 = vmatpush1.msra.mxu0 %v2852
  %3109 = vmatprep.subr.mxu0 %v2855
  %3110 = vmatpush1.msra.mxu0 %v2854
  %3111 = vmatprep.subr.mxu0 %v2857
  %3112 = vmatpush1.msra.mxu0 %v2856
  %3113 = vmatprep.subr.mxu0 %v2859
  %3114 = vmatpush1.msra.mxu0 %v2858
  %3115 = vmatprep.subr.mxu0 %v2861
  %3116 = vmatpush1.msra.mxu0 %v2860
  %3117 = vmatprep.subr.mxu0 %v2863
  %3118 = vmatpush1.msra.mxu0 %v2862
  %3119 = vmatprep.subr.mxu0 %v2865
  %3120 = vmatpush1.msra.mxu0 %v2864
  %3121 = vmatprep.subr.mxu0 %v2867
  %3122 = vmatpush1.msra.mxu0 %v2866
  %3123 = vmatprep.subr.mxu0 %v2869
  %3124 = vmatpush1.msra.mxu0 %v2868
  %3125 = vmatprep.subr.mxu0 %v2871
  %3126 = vmatpush1.msra.mxu0 %v2870
  %3127 = vmatprep.subr.mxu0 %v2873
  %3128 = vmatpush1.msra.mxu0 %v2872
  %3129 = vmatprep.subr.mxu0 %v2875
  %3130 = vmatpush1.msra.mxu0 %v2874
  %3131 = vmatprep.subr.mxu0 %v2877
  %3132 = vmatpush1.msra.mxu0 %v2876
  %3133 = vmatprep.subr.mxu0 %v2879
  %3134 = vmatpush1.msra.mxu0 %v2878
  %3135 = vmatprep.subr.mxu0 %v2881
  %3136 = vmatpush1.msra.mxu0 %v2880
  %3137 = vmatprep.subr.mxu0 %v2883
  %3138 = vmatpush1.msra.mxu0 %v2882
  %3139 = vmatprep.subr.mxu0 %v2885
  %3140 = vmatpush1.msra.mxu0 %v2884
  %3141 = vmatprep.subr.mxu0 %v2887
  %3142 = vmatpush1.msra.mxu0 %v2886
  %3143 = vmatprep.subr.mxu0 %v2889
  %3144 = vmatpush1.msra.mxu0 %v2888
  %3145 = vmatprep.subr.mxu0 %v2891
  %3146 = vmatpush1.msra.mxu0 %v2890
  %3147 = vmatprep.subr.mxu0 %v2893
  %3148 = vmatpush1.msra.mxu0 %v2892
  %3149 = vmatprep.subr.mxu0 %v2895
  %3150 = vmatpush1.msra.mxu0 %v2894
  %3151 = vmatprep.subr.mxu0 %v2897
  %3152 = vmatpush1.msra.mxu0 %v2896
  %3153 = vmatprep.subr.mxu0 %v2899
  %3154 = vmatpush1.msra.mxu0 %v2898
  %3155 = vmatprep.subr.mxu0 %v2901
  %3156 = vmatpush1.msra.mxu0 %v2900
  %3157 = vmatprep.subr.mxu0 %v2903
  %3158 = vmatpush1.msra.mxu0 %v2902
  %3159 = vmatprep.subr.mxu0 %v2905
  %3160 = vmatpush1.msra.mxu0 %v2904
  %3161 = vmatprep.mubr.f32.mxu0 %v2778
  %3162 = vmatmul.mubr.f32.gmra.mrb[0].mxu0 %v1995
  %v3163 = vpop.f32.mrb[0].mxu0
  %v3164 = vadd.f32 %v3057, %v3163
  %v3165 = vpop.f32.mrb[0].mxu0
  %v3166 = vadd.f32 %v3061, %v3165
  %3167 = vmatprep.mubr.f32.mxu0 %v2779
  %3168 = vmatmul.mubr.f32.gmra.mrb[0].mxu0 %v1997
  %v3169 = vpop.f32.mrb[0].mxu0
  %v3170 = vadd.f32 %v3057, %v3169
  %v3171 = vpop.f32.mrb[0].mxu0
  %v3172 = vadd.f32 %v3061, %v3171
  %3173 = vmatprep.mubr.f32.mxu0 %v2780
  %3174 = vmatmul.mubr.f32.gmra.mrb[0].mxu0 %v1999
  %v3175 = vpop.f32.mrb[0].mxu0
  %v3176 = vadd.f32 %v3057, %v3175
  %v3177 = vpop.f32.mrb[0].mxu0
  %v3178 = vadd.f32 %v3061, %v3177
  %3179 = vmatprep.mubr.f32.mxu0 %v2781
  %3180 = vmatmul.mubr.f32.gmra.mrb[0].mxu0 %v2001
  %v3181 = vpop.f32.mrb[0].mxu0
  %v3182 = vadd.f32 %v3057, %v3181
  %v3183 = vpop.f32.mrb[0].mxu0
  %v3184 = vadd.f32 %v3061, %v3183
  %3185 = vmatprep.mubr.f32.mxu0 %v2782
  %3186 = vmatmul.mubr.f32.gmra.mrb[0].mxu0 %v2003
  %v3187 = vpop.f32.mrb[0].mxu0
  %v3188 = vadd.f32 %v3057, %v3187
  %v3189 = vpop.f32.mrb[0].mxu0
  %v3190 = vadd.f32 %v3061, %v3189
  %3191 = vmatprep.mubr.f32.mxu0 %v2783
  %3192 = vmatmul.mubr.f32.gmra.mrb[0].mxu0 %v2005
  %v3193 = vpop.f32.mrb[0].mxu0
  %v3194 = vadd.f32 %v3057, %v3193
  %v3195 = vpop.f32.mrb[0].mxu0
  %v3196 = vadd.f32 %v3061, %v3195
  %3197 = vmatprep.mubr.f32.mxu0 %v2784
  %3198 = vmatmul.mubr.f32.gmra.mrb[0].mxu0 %v2007
  %v3199 = vpop.f32.mrb[0].mxu0
  %v3200 = vadd.f32 %v3057, %v3199
  %v3201 = vpop.f32.mrb[0].mxu0
  %v3202 = vadd.f32 %v3061, %v3201
  %3203 = vmatprep.mubr.f32.mxu0 %v2785
  %3204 = vmatmul.mubr.f32.gmra.mrb[0].mxu0 %v2009
  %v3205 = vpop.f32.mrb[0].mxu0
  %v3206 = vadd.f32 %v3057, %v3205
  %v3207 = vpop.f32.mrb[0].mxu0
  %v3208 = vadd.f32 %v3061, %v3207
  %3209 = vmatprep.mubr.f32.mxu0 %v2786
  %3210 = vmatmul.mubr.f32.gmra.mrb[0].mxu0 %v2011
  %v3211 = vpop.f32.mrb[0].mxu0
  %v3212 = vadd.f32 %v3057, %v3211
  %v3213 = vpop.f32.mrb[0].mxu0
  %v3214 = vadd.f32 %v3061, %v3213
  %3215 = vmatprep.mubr.f32.mxu0 %v2787
  %3216 = vmatmul.mubr.f32.gmra.mrb[0].mxu0 %v2013
  %v3217 = vpop.f32.mrb[0].mxu0
  %v3218 = vadd.f32 %v3057, %v3217
  %v3219 = vpop.f32.mrb[0].mxu0
  %v3220 = vadd.f32 %v3061, %v3219
  %3221 = vmatprep.mubr.f32.mxu0 %v2788
  %3222 = vmatmul.mubr.f32.gmra.mrb[0].mxu0 %v2015
  %v3223 = vpop.f32.mrb[0].mxu0
  %v3224 = vadd.f32 %v3057, %v3223
  %v3225 = vpop.f32.mrb[0].mxu0
  %v3226 = vadd.f32 %v3061, %v3225
  %3227 = vmatprep.mubr.f32.mxu0 %v2789
  %3228 = vmatmul.mubr.f32.gmra.mrb[0].mxu0 %v2017
  %v3229 = vpop.f32.mrb[0].mxu0
  %v3230 = vadd.f32 %v3057, %v3229
  %v3231 = vpop.f32.mrb[0].mxu0
  %v3232 = vadd.f32 %v3061, %v3231
  %3233 = vmatprep.mubr.f32.mxu0 %v2790
  %3234 = vmatmul.mubr.f32.gmra.mrb[0].mxu0 %v2019
  %v3235 = vpop.f32.mrb[0].mxu0
  %v3236 = vadd.f32 %v3057, %v3235
  %v3237 = vpop.f32.mrb[0].mxu0
  %v3238 = vadd.f32 %v3061, %v3237
  %3239 = vmatprep.mubr.f32.mxu0 %v2791
  %3240 = vmatmul.mubr.f32.gmra.mrb[0].mxu0 %v2021
  %v3241 = vpop.f32.mrb[0].mxu0
  %v3242 = vadd.f32 %v3057, %v3241
  %v3243 = vpop.f32.mrb[0].mxu0
  %v3244 = vadd.f32 %v3061, %v3243
  %3245 = vmatprep.mubr.f32.mxu0 %v2792
  %3246 = vmatmul.mubr.f32.gmra.mrb[0].mxu0 %v2023
  %v3247 = vpop.f32.mrb[0].mxu0
  %v3248 = vadd.f32 %v3057, %v3247
  %v3249 = vpop.f32.mrb[0].mxu0
  %v3250 = vadd.f32 %v3061, %v3249
  %3251 = vmatprep.mubr.f32.mxu0 %v2793
  %3252 = vmatmul.mubr.f32.gmra.mrb[0].mxu0 %v2025
  %v3253 = vpop.f32.mrb[0].mxu0
  %v3254 = vadd.f32 %v3057, %v3253
  %v3255 = vpop.f32.mrb[0].mxu0
  %v3256 = vadd.f32 %v3061, %v3255
  %3257 = vdwg.mxu0
  %3258 = vmatprep.subr.mxu0 %v2907
  %3259 = vmatpush1.msra.mxu0 %v2906
  %3260 = vmatprep.subr.mxu0 %v2909
  %3261 = vmatpush1.msra.mxu0 %v2908
  %3262 = vmatprep.subr.mxu0 %v2911
  %3263 = vmatpush1.msra.mxu0 %v2910
  %3264 = vmatprep.subr.mxu0 %v2913
  %3265 = vmatpush1.msra.mxu0 %v2912
  %3266 = vmatprep.subr.mxu0 %v2915
  %3267 = vmatpush1.msra.mxu0 %v2914
  %3268 = vmatprep.subr.mxu0 %v2917
  %3269 = vmatpush1.msra.mxu0 %v2916
  %3270 = vmatprep.subr.mxu0 %v2919
  %3271 = vmatpush1.msra.mxu0 %v2918
  %3272 = vmatprep.subr.mxu0 %v2921
  %3273 = vmatpush1.msra.mxu0 %v2920
  %3274 = vmatprep.subr.mxu0 %v2923
  %3275 = vmatpush1.msra.mxu0 %v2922
  %3276 = vmatprep.subr.mxu0 %v2925
  %3277 = vmatpush1.msra.mxu0 %v2924
  %3278 = vmatprep.subr.mxu0 %v2927
  %3279 = vmatpush1.msra.mxu0 %v2926
  %3280 = vmatprep.subr.mxu0 %v2929
  %3281 = vmatpush1.msra.mxu0 %v2928
  %3282 = vmatprep.subr.mxu0 %v2931
  %3283 = vmatpush1.msra.mxu0 %v2930
  %3284 = vmatprep.subr.mxu0 %v2933
  %3285 = vmatpush1.msra.mxu0 %v2932
  %3286 = vmatprep.subr.mxu0 %v2935
  %3287 = vmatpush1.msra.mxu0 %v2934
  %3288 = vmatprep.subr.mxu0 %v2937
  %3289 = vmatpush1.msra.mxu0 %v2936
  %3290 = vmatprep.subr.mxu0 %v2939
  %3291 = vmatpush1.msra.mxu0 %v2938
  %3292 = vmatprep.subr.mxu0 %v2941
  %3293 = vmatpush1.msra.mxu0 %v2940
  %3294 = vmatprep.subr.mxu0 %v2943
  %3295 = vmatpush1.msra.mxu0 %v2942
  %3296 = vmatprep.subr.mxu0 %v2945
  %3297 = vmatpush1.msra.mxu0 %v2944
  %3298 = vmatprep.subr.mxu0 %v2947
  %3299 = vmatpush1.msra.mxu0 %v2946
  %3300 = vmatprep.subr.mxu0 %v2949
  %3301 = vmatpush1.msra.mxu0 %v2948
  %3302 = vmatprep.subr.mxu0 %v2951
  %3303 = vmatpush1.msra.mxu0 %v2950
  %3304 = vmatprep.subr.mxu0 %v2953
  %3305 = vmatpush1.msra.mxu0 %v2952
  %3306 = vmatprep.subr.mxu0 %v2955
  %3307 = vmatpush1.msra.mxu0 %v2954
  %3308 = vmatprep.subr.mxu0 %v2957
  %3309 = vmatpush1.msra.mxu0 %v2956
  %3310 = vmatprep.subr.mxu0 %v2959
  %3311 = vmatpush1.msra.mxu0 %v2958
  %3312 = vmatprep.subr.mxu0 %v2961
  %3313 = vmatpush1.msra.mxu0 %v2960
  %3314 = vmatprep.subr.mxu0 %v2963
  %3315 = vmatpush1.msra.mxu0 %v2962
  %3316 = vmatprep.subr.mxu0 %v2965
  %3317 = vmatpush1.msra.mxu0 %v2964
  %3318 = vmatprep.subr.mxu0 %v2967
  %3319 = vmatpush1.msra.mxu0 %v2966
  %3320 = vmatprep.subr.mxu0 %v2969
  %3321 = vmatpush1.msra.mxu0 %v2968
  %3322 = vmatprep.mubr.f32.mxu0 %v2810
  %3323 = vmatmul.mubr.f32.gmra.mrb[0].mxu0 %v2794
  %v3324 = vpop.f32.mrb[0].mxu0
  %v3325 = vadd.f32 %v3164, %v3324
  %v3326 = vpop.f32.mrb[0].mxu0
  %v3327 = vadd.f32 %v3166, %v3326
  %3328 = vmatprep.mubr.f32.mxu0 %v2811
  %3329 = vmatmul.mubr.f32.gmra.mrb[0].mxu0 %v2795
  %v3330 = vpop.f32.mrb[0].mxu0
  %v3331 = vadd.f32 %v3170, %v3330
  %v3332 = vpop.f32.mrb[0].mxu0
  %v3333 = vadd.f32 %v3172, %v3332
  %3334 = vmatprep.mubr.f32.mxu0 %v2812
  %3335 = vmatmul.mubr.f32.gmra.mrb[0].mxu0 %v2796
  %v3336 = vpop.f32.mrb[0].mxu0
  %v3337 = vadd.f32 %v3176, %v3336
  %v3338 = vpop.f32.mrb[0].mxu0
  %v3339 = vadd.f32 %v3178, %v3338
  %3340 = vmatprep.mubr.f32.mxu0 %v2813
  %3341 = vmatmul.mubr.f32.gmra.mrb[0].mxu0 %v2797
  %v3342 = vpop.f32.mrb[0].mxu0
  %v3343 = vadd.f32 %v3182, %v3342
  %v3344 = vpop.f32.mrb[0].mxu0
  %v3345 = vadd.f32 %v3184, %v3344
  %3346 = vmatprep.mubr.f32.mxu0 %v2814
  %3347 = vmatmul.mubr.f32.gmra.mrb[0].mxu0 %v2798
  %v3348 = vpop.f32.mrb[0].mxu0
  %v3349 = vadd.f32 %v3188, %v3348
  %v3350 = vpop.f32.mrb[0].mxu0
  %v3351 = vadd.f32 %v3190, %v3350
  %3352 = vmatprep.mubr.f32.mxu0 %v2815
  %3353 = vmatmul.mubr.f32.gmra.mrb[0].mxu0 %v2799
  %v3354 = vpop.f32.mrb[0].mxu0
  %v3355 = vadd.f32 %v3194, %v3354
  %v3356 = vpop.f32.mrb[0].mxu0
  %v3357 = vadd.f32 %v3196, %v3356
  %3358 = vmatprep.mubr.f32.mxu0 %v2816
  %3359 = vmatmul.mubr.f32.gmra.mrb[0].mxu0 %v2800
  %v3360 = vpop.f32.mrb[0].mxu0
  %v3361 = vadd.f32 %v3200, %v3360
  %v3362 = vpop.f32.mrb[0].mxu0
  %v3363 = vadd.f32 %v3202, %v3362
  %3364 = vmatprep.mubr.f32.mxu0 %v2817
  %3365 = vmatmul.mubr.f32.gmra.mrb[0].mxu0 %v2801
  %v3366 = vpop.f32.mrb[0].mxu0
  %v3367 = vadd.f32 %v3206, %v3366
  %v3368 = vpop.f32.mrb[0].mxu0
  %v3369 = vadd.f32 %v3208, %v3368
  %3370 = vmatprep.mubr.f32.mxu0 %v2818
  %3371 = vmatmul.mubr.f32.gmra.mrb[0].mxu0 %v2802
  %v3372 = vpop.f32.mrb[0].mxu0
  %v3373 = vadd.f32 %v3212, %v3372
  %v3374 = vpop.f32.mrb[0].mxu0
  %v3375 = vadd.f32 %v3214, %v3374
  %3376 = vmatprep.mubr.f32.mxu0 %v2819
  %3377 = vmatmul.mubr.f32.gmra.mrb[0].mxu0 %v2803
  %v3378 = vpop.f32.mrb[0].mxu0
  %v3379 = vadd.f32 %v3218, %v3378
  %v3380 = vpop.f32.mrb[0].mxu0
  %v3381 = vadd.f32 %v3220, %v3380
  %3382 = vmatprep.mubr.f32.mxu0 %v2820
  %3383 = vmatmul.mubr.f32.gmra.mrb[0].mxu0 %v2804
  %v3384 = vpop.f32.mrb[0].mxu0
  %v3385 = vadd.f32 %v3224, %v3384
  %v3386 = vpop.f32.mrb[0].mxu0
  %v3387 = vadd.f32 %v3226, %v3386
  %3388 = vmatprep.mubr.f32.mxu0 %v2821
  %3389 = vmatmul.mubr.f32.gmra.mrb[0].mxu0 %v2805
  %v3390 = vpop.f32.mrb[0].mxu0
  %v3391 = vadd.f32 %v3230, %v3390
  %v3392 = vpop.f32.mrb[0].mxu0
  %v3393 = vadd.f32 %v3232, %v3392
  %3394 = vmatprep.mubr.f32.mxu0 %v2822
  %3395 = vmatmul.mubr.f32.gmra.mrb[0].mxu0 %v2806
  %v3396 = vpop.f32.mrb[0].mxu0
  %v3397 = vadd.f32 %v3236, %v3396
  %v3398 = vpop.f32.mrb[0].mxu0
  %v3399 = vadd.f32 %v3238, %v3398
  %3400 = vmatprep.mubr.f32.mxu0 %v2823
  %3401 = vmatmul.mubr.f32.gmra.mrb[0].mxu0 %v2807
  %v3402 = vpop.f32.mrb[0].mxu0
  %v3403 = vadd.f32 %v3242, %v3402
  %v3404 = vpop.f32.mrb[0].mxu0
  %v3405 = vadd.f32 %v3244, %v3404
  %3406 = vmatprep.mubr.f32.mxu0 %v2824
  %3407 = vmatmul.mubr.f32.gmra.mrb[0].mxu0 %v2808
  %v3408 = vpop.f32.mrb[0].mxu0
  %v3409 = vadd.f32 %v3248, %v3408
  %v3410 = vpop.f32.mrb[0].mxu0
  %v3411 = vadd.f32 %v3250, %v3410
  %3412 = vmatprep.mubr.f32.mxu0 %v2825
  %3413 = vmatmul.mubr.f32.gmra.mrb[0].mxu0 %v2809
  %v3414 = vpop.f32.mrb[0].mxu0
  %v3415 = vadd.f32 %v3254, %v3414
  %v3416 = vpop.f32.mrb[0].mxu0
  %v3417 = vadd.f32 %v3256, %v3416
  %3418 = vdwg.mxu0
  %3419 = vmatprep.subr.mxu0 %v2971
  %3420 = vmatpush1.msra.mxu0 %v2970
  %3421 = vmatprep.subr.mxu0 %v2973
  %3422 = vmatpush1.msra.mxu0 %v2972
  %3423 = vmatprep.subr.mxu0 %v2975
  %3424 = vmatpush1.msra.mxu0 %v2974
  %3425 = vmatprep.subr.mxu0 %v2977
  %3426 = vmatpush1.msra.mxu0 %v2976
  %3427 = vmatprep.subr.mxu0 %v2979
  %3428 = vmatpush1.msra.mxu0 %v2978
  %3429 = vmatprep.subr.mxu0 %v2981
  %3430 = vmatpush1.msra.mxu0 %v2980
  %3431 = vmatprep.subr.mxu0 %v2983
  %3432 = vmatpush1.msra.mxu0 %v2982
  %3433 = vmatprep.subr.mxu0 %v2985
  %3434 = vmatpush1.msra.mxu0 %v2984
  %3435 = vmatprep.subr.mxu0 %v2987
  %3436 = vmatpush1.msra.mxu0 %v2986
  %3437 = vmatprep.subr.mxu0 %v2989
  %3438 = vmatpush1.msra.mxu0 %v2988
  %3439 = vmatprep.subr.mxu0 %v2991
  %3440 = vmatpush1.msra.mxu0 %v2990
  %3441 = vmatprep.subr.mxu0 %v2993
  %3442 = vmatpush1.msra.mxu0 %v2992
  %3443 = vmatprep.subr.mxu0 %v2995
  %3444 = vmatpush1.msra.mxu0 %v2994
  %3445 = vmatprep.subr.mxu0 %v2997
  %3446 = vmatpush1.msra.mxu0 %v2996
  %3447 = vmatprep.subr.mxu0 %v2999
  %3448 = vmatpush1.msra.mxu0 %v2998
  %3449 = vmatprep.subr.mxu0 %v3001
  %3450 = vmatpush1.msra.mxu0 %v3000
  %3451 = vmatprep.subr.mxu0 %v3003
  %3452 = vmatpush1.msra.mxu0 %v3002
  %3453 = vmatprep.subr.mxu0 %v3005
  %3454 = vmatpush1.msra.mxu0 %v3004
  %3455 = vmatprep.subr.mxu0 %v3007
  %3456 = vmatpush1.msra.mxu0 %v3006
  %3457 = vmatprep.subr.mxu0 %v3009
  %3458 = vmatpush1.msra.mxu0 %v3008
  %3459 = vmatprep.subr.mxu0 %v3011
  %3460 = vmatpush1.msra.mxu0 %v3010
  %3461 = vmatprep.subr.mxu0 %v3013
  %3462 = vmatpush1.msra.mxu0 %v3012
  %3463 = vmatprep.subr.mxu0 %v3015
  %3464 = vmatpush1.msra.mxu0 %v3014
  %3465 = vmatprep.subr.mxu0 %v3017
  %3466 = vmatpush1.msra.mxu0 %v3016
  %3467 = vmatprep.subr.mxu0 %v3019
  %3468 = vmatpush1.msra.mxu0 %v3018
  %3469 = vmatprep.subr.mxu0 %v3021
  %3470 = vmatpush1.msra.mxu0 %v3020
  %3471 = vmatprep.subr.mxu0 %v3023
  %3472 = vmatpush1.msra.mxu0 %v3022
  %3473 = vmatprep.subr.mxu0 %v3025
  %3474 = vmatpush1.msra.mxu0 %v3024
  %3475 = vmatprep.subr.mxu0 %v3027
  %3476 = vmatpush1.msra.mxu0 %v3026
  %3477 = vmatprep.subr.mxu0 %v3029
  %3478 = vmatpush1.msra.mxu0 %v3028
  %3479 = vmatprep.subr.mxu0 %v3031
  %3480 = vmatpush1.msra.mxu0 %v3030
  %3481 = vmatprep.subr.mxu0 %v3033
  %3482 = vmatpush1.msra.mxu0 %v3032
  %3483 = vmatprep.mubr.f32.mxu0 %v2826
  %3484 = vmatmul.mubr.f32.gmra.mrb[0].mxu0 %v2552
  %v3485 = vpop.f32.mrb[0].mxu0
  %v3486 = vadd.f32 %v3325, %v3485
  %v3487 = vpop.f32.mrb[0].mxu0
  %v3488 = vadd.f32 %v3327, %v3487
  %3489 = vmatprep.mubr.f32.mxu0 %v2827
  %3490 = vmatmul.mubr.f32.gmra.mrb[0].mxu0 %v2553
  %v3491 = vpop.f32.mrb[0].mxu0
  %v3492 = vadd.f32 %v3331, %v3491
  %v3493 = vpop.f32.mrb[0].mxu0
  %v3494 = vadd.f32 %v3333, %v3493
  %3495 = vmatprep.mubr.f32.mxu0 %v2828
  %3496 = vmatmul.mubr.f32.gmra.mrb[0].mxu0 %v2554
  %v3497 = vpop.f32.mrb[0].mxu0
  %v3498 = vadd.f32 %v3337, %v3497
  %v3499 = vpop.f32.mrb[0].mxu0
  %v3500 = vadd.f32 %v3339, %v3499
  %3501 = vmatprep.mubr.f32.mxu0 %v2829
  %3502 = vmatmul.mubr.f32.gmra.mrb[0].mxu0 %v2555
  %v3503 = vpop.f32.mrb[0].mxu0
  %v3504 = vadd.f32 %v3343, %v3503
  %v3505 = vpop.f32.mrb[0].mxu0
  %v3506 = vadd.f32 %v3345, %v3505
  %3507 = vmatprep.mubr.f32.mxu0 %v2830
  %3508 = vmatmul.mubr.f32.gmra.mrb[0].mxu0 %v2556
  %v3509 = vpop.f32.mrb[0].mxu0
  %v3510 = vadd.f32 %v3349, %v3509
  %v3511 = vpop.f32.mrb[0].mxu0
  %v3512 = vadd.f32 %v3351, %v3511
  %3513 = vmatprep.mubr.f32.mxu0 %v2831
  %3514 = vmatmul.mubr.f32.gmra.mrb[0].mxu0 %v2557
  %v3515 = vpop.f32.mrb[0].mxu0
  %v3516 = vadd.f32 %v3355, %v3515
  %v3517 = vpop.f32.mrb[0].mxu0
  %v3518 = vadd.f32 %v3357, %v3517
  %3519 = vmatprep.mubr.f32.mxu0 %v2832
  %3520 = vmatmul.mubr.f32.gmra.mrb[0].mxu0 %v2558
  %v3521 = vpop.f32.mrb[0].mxu0
  %v3522 = vadd.f32 %v3361, %v3521
  %v3523 = vpop.f32.mrb[0].mxu0
  %v3524 = vadd.f32 %v3363, %v3523
  %3525 = vmatprep.mubr.f32.mxu0 %v2833
  %3526 = vmatmul.mubr.f32.gmra.mrb[0].mxu0 %v2559
  %v3527 = vpop.f32.mrb[0].mxu0
  %v3528 = vadd.f32 %v3367, %v3527
  %v3529 = vpop.f32.mrb[0].mxu0
  %v3530 = vadd.f32 %v3369, %v3529
  %3531 = vmatprep.mubr.f32.mxu0 %v2834
  %3532 = vmatmul.mubr.f32.gmra.mrb[0].mxu0 %v2560
  %v3533 = vpop.f32.mrb[0].mxu0
  %v3534 = vadd.f32 %v3373, %v3533
  %v3535 = vpop.f32.mrb[0].mxu0
  %v3536 = vadd.f32 %v3375, %v3535
  %3537 = vmatprep.mubr.f32.mxu0 %v2835
  %3538 = vmatmul.mubr.f32.gmra.mrb[0].mxu0 %v2561
  %v3539 = vpop.f32.mrb[0].mxu0
  %v3540 = vadd.f32 %v3379, %v3539
  %v3541 = vpop.f32.mrb[0].mxu0
  %v3542 = vadd.f32 %v3381, %v3541
  %3543 = vmatprep.mubr.f32.mxu0 %v2836
  %3544 = vmatmul.mubr.f32.gmra.mrb[0].mxu0 %v2562
  %v3545 = vpop.f32.mrb[0].mxu0
  %v3546 = vadd.f32 %v3385, %v3545
  %v3547 = vpop.f32.mrb[0].mxu0
  %v3548 = vadd.f32 %v3387, %v3547
  %3549 = vmatprep.mubr.f32.mxu0 %v2837
  %3550 = vmatmul.mubr.f32.gmra.mrb[0].mxu0 %v2563
  %v3551 = vpop.f32.mrb[0].mxu0
  %v3552 = vadd.f32 %v3391, %v3551
  %v3553 = vpop.f32.mrb[0].mxu0
  %v3554 = vadd.f32 %v3393, %v3553
  %3555 = vmatprep.mubr.f32.mxu0 %v2838
  %3556 = vmatmul.mubr.f32.gmra.mrb[0].mxu0 %v2564
  %v3557 = vpop.f32.mrb[0].mxu0
  %v3558 = vadd.f32 %v3397, %v3557
  %v3559 = vpop.f32.mrb[0].mxu0
  %v3560 = vadd.f32 %v3399, %v3559
  %3561 = vmatprep.mubr.f32.mxu0 %v2839
  %3562 = vmatmul.mubr.f32.gmra.mrb[0].mxu0 %v2565
  %v3563 = vpop.f32.mrb[0].mxu0
  %v3564 = vadd.f32 %v3403, %v3563
  %v3565 = vpop.f32.mrb[0].mxu0
  %v3566 = vadd.f32 %v3405, %v3565
  %3567 = vmatprep.mubr.f32.mxu0 %v2840
  %3568 = vmatmul.mubr.f32.gmra.mrb[0].mxu0 %v2566
  %v3569 = vpop.f32.mrb[0].mxu0
  %v3570 = vadd.f32 %v3409, %v3569
  %v3571 = vpop.f32.mrb[0].mxu0
  %v3572 = vadd.f32 %v3411, %v3571
  %3573 = vmatprep.mubr.f32.mxu0 %v2841
  %3574 = vmatmul.mubr.f32.gmra.mrb[0].mxu0 %v2567
  %v3575 = vpop.f32.mrb[0].mxu0
  %v3576 = vadd.f32 %v3415, %v3575
  %v3577 = vpop.f32.mrb[0].mxu0
  %v3578 = vadd.f32 %v3417, %v3577
  %3579 = vdwg.mxu0
  %3580 = vmatprep.subr.mxu0 %v3035
  %3581 = vmatpush1.msra.mxu0 %v3034
  %3582 = vmatprep.subr.mxu0 %v3037
  %3583 = vmatpush1.msra.mxu0 %v3036
  %3584 = vmatprep.subr.mxu0 %v3039
  %3585 = vmatpush1.msra.mxu0 %v3038
  %3586 = vmatprep.subr.mxu0 %v3041
  %3587 = vmatpush1.msra.mxu0 %v3040
  %3588 = vmatprep.subr.mxu0 %v3043
  %3589 = vmatpush1.msra.mxu0 %v3042
  %3590 = vmatprep.subr.mxu0 %v3045
  %3591 = vmatpush1.msra.mxu0 %v3044
  %3592 = vmatprep.subr.mxu0 %v3047
  %3593 = vmatpush1.msra.mxu0 %v3046
  %3594 = vmatprep.subr.mxu0 %v3049
  %3595 = vmatpush1.msra.mxu0 %v3048
  %3596 = vmatprep.subr.mxu0 %v3051
  %3597 = vmatpush1.msra.mxu0 %v3050
  %3598 = vmatprep.subr.mxu0 0.0
  %3599 = vmatpush1.msra.mxu0 0.0
  %3600 = vmatprep.subr.mxu0 0.0
  %3601 = vmatpush1.msra.mxu0 0.0
  %3602 = vmatprep.subr.mxu0 0.0
  %3603 = vmatpush1.msra.mxu0 0.0
  %3604 = vmatprep.subr.mxu0 0.0
  %3605 = vmatpush1.msra.mxu0 0.0
  %3606 = vmatprep.subr.mxu0 0.0
  %3607 = vmatpush1.msra.mxu0 0.0
  %3608 = vmatprep.subr.mxu0 0.0
  %3609 = vmatpush1.msra.mxu0 0.0
  %3610 = vmatprep.subr.mxu0 0.0
  %3611 = vmatpush1.msra.mxu0 0.0
  %3612 = vmatprep.subr.mxu0 0.0
  %3613 = vmatpush1.msra.mxu0 0.0
  %3614 = vmatprep.subr.mxu0 0.0
  %3615 = vmatpush1.msra.mxu0 0.0
  %3616 = vmatprep.subr.mxu0 0.0
  %3617 = vmatpush1.msra.mxu0 0.0
  %3618 = vmatprep.subr.mxu0 0.0
  %3619 = vmatpush1.msra.mxu0 0.0
  %3620 = vmatprep.subr.mxu0 0.0
  %3621 = vmatpush1.msra.mxu0 0.0
  %3622 = vmatprep.subr.mxu0 0.0
  %3623 = vmatpush1.msra.mxu0 0.0
  %3624 = vmatprep.subr.mxu0 0.0
  %3625 = vmatpush1.msra.mxu0 0.0
  %3626 = vmatprep.subr.mxu0 0.0
  %3627 = vmatpush1.msra.mxu0 0.0
  %3628 = vmatprep.subr.mxu0 0.0
  %3629 = vmatpush1.msra.mxu0 0.0
  %3630 = vmatprep.subr.mxu0 0.0
  %3631 = vmatpush1.msra.mxu0 0.0
  %3632 = vmatprep.subr.mxu0 0.0
  %3633 = vmatpush1.msra.mxu0 0.0
  %3634 = vmatprep.subr.mxu0 0.0
  %3635 = vmatpush1.msra.mxu0 0.0
  %3636 = vmatprep.subr.mxu0 0.0
  %3637 = vmatpush1.msra.mxu0 0.0
  %3638 = vmatprep.subr.mxu0 0.0
  %3639 = vmatpush1.msra.mxu0 0.0
  %3640 = vmatprep.subr.mxu0 0.0
  %3641 = vmatpush1.msra.mxu0 0.0
  %3642 = vmatprep.subr.mxu0 0.0
  %3643 = vmatpush1.msra.mxu0 0.0
  %3644 = vmatprep.mubr.f32.mxu0 0.0
  %3645 = vmatmul.mubr.f32.gmra.mrb[0].mxu0 %v3065
  %v3646 = vpop.f32.mrb[0].mxu0
  %v3647 = vadd.f32 %v3486, %v3646
  %v3648 = vpop.f32.mrb[0].mxu0
  %v3649 = vadd.f32 %v3488, %v3648
  %3650 = vmatprep.mubr.f32.mxu0 0.0
  %3651 = vmatmul.mubr.f32.gmra.mrb[0].mxu0 %v3067
  %v3652 = vpop.f32.mrb[0].mxu0
  %v3653 = vadd.f32 %v3492, %v3652
  %v3654 = vpop.f32.mrb[0].mxu0
  %v3655 = vadd.f32 %v3494, %v3654
  %3656 = vmatprep.mubr.f32.mxu0 0.0
  %3657 = vmatmul.mubr.f32.gmra.mrb[0].mxu0 %v3069
  %v3658 = vpop.f32.mrb[0].mxu0
  %v3659 = vadd.f32 %v3498, %v3658
  %v3660 = vpop.f32.mrb[0].mxu0
  %v3661 = vadd.f32 %v3500, %v3660
  %3662 = vmatprep.mubr.f32.mxu0 0.0
  %3663 = vmatmul.mubr.f32.gmra.mrb[0].mxu0 %v3071
  %v3664 = vpop.f32.mrb[0].mxu0
  %v3665 = vadd.f32 %v3504, %v3664
  %v3666 = vpop.f32.mrb[0].mxu0
  %v3667 = vadd.f32 %v3506, %v3666
  %3668 = vmatprep.mubr.f32.mxu0 0.0
  %3669 = vmatmul.mubr.f32.gmra.mrb[0].mxu0 %v3073
  %v3670 = vpop.f32.mrb[0].mxu0
  %v3671 = vadd.f32 %v3510, %v3670
  %v3672 = vpop.f32.mrb[0].mxu0
  %v3673 = vadd.f32 %v3512, %v3672
  %3674 = vmatprep.mubr.f32.mxu0 0.0
  %3675 = vmatmul.mubr.f32.gmra.mrb[0].mxu0 %v3075
  %v3676 = vpop.f32.mrb[0].mxu0
  %v3677 = vadd.f32 %v3516, %v3676
  %v3678 = vpop.f32.mrb[0].mxu0
  %v3679 = vadd.f32 %v3518, %v3678
  %3680 = vmatprep.mubr.f32.mxu0 0.0
  %3681 = vmatmul.mubr.f32.gmra.mrb[0].mxu0 %v3077
  %v3682 = vpop.f32.mrb[0].mxu0
  %v3683 = vadd.f32 %v3522, %v3682
  %v3684 = vpop.f32.mrb[0].mxu0
  %v3685 = vadd.f32 %v3524, %v3684
  %3686 = vmatprep.mubr.f32.mxu0 0.0
  %3687 = vmatmul.mubr.f32.gmra.mrb[0].mxu0 %v3079
  %v3688 = vpop.f32.mrb[0].mxu0
  %v3689 = vadd.f32 %v3528, %v3688
  %v3690 = vpop.f32.mrb[0].mxu0
  %v3691 = vadd.f32 %v3530, %v3690
  %3692 = vmatprep.mubr.f32.mxu0 0.0
  %3693 = vmatmul.mubr.f32.gmra.mrb[0].mxu0 %v3081
  %v3694 = vpop.f32.mrb[0].mxu0
  %v3695 = vadd.f32 %v3534, %v3694
  %v3696 = vpop.f32.mrb[0].mxu0
  %v3697 = vadd.f32 %v3536, %v3696
  %3698 = vmatprep.mubr.f32.mxu0 0.0
  %3699 = vmatmul.mubr.f32.gmra.mrb[0].mxu0 %v3083
  %v3700 = vpop.f32.mrb[0].mxu0
  %v3701 = vadd.f32 %v3540, %v3700
  %v3702 = vpop.f32.mrb[0].mxu0
  %v3703 = vadd.f32 %v3542, %v3702
  %3704 = vmatprep.mubr.f32.mxu0 0.0
  %3705 = vmatmul.mubr.f32.gmra.mrb[0].mxu0 %v3085
  %v3706 = vpop.f32.mrb[0].mxu0
  %v3707 = vadd.f32 %v3546, %v3706
  %v3708 = vpop.f32.mrb[0].mxu0
  %v3709 = vadd.f32 %v3548, %v3708
  %3710 = vmatprep.mubr.f32.mxu0 0.0
  %3711 = vmatmul.mubr.f32.gmra.mrb[0].mxu0 %v3087
  %v3712 = vpop.f32.mrb[0].mxu0
  %v3713 = vadd.f32 %v3552, %v3712
  %v3714 = vpop.f32.mrb[0].mxu0
  %v3715 = vadd.f32 %v3554, %v3714
  %3716 = vmatprep.mubr.f32.mxu0 0.0
  %3717 = vmatmul.mubr.f32.gmra.mrb[0].mxu0 %v3089
  %v3718 = vpop.f32.mrb[0].mxu0
  %v3719 = vadd.f32 %v3558, %v3718
  %v3720 = vpop.f32.mrb[0].mxu0
  %v3721 = vadd.f32 %v3560, %v3720
  %3722 = vmatprep.mubr.f32.mxu0 0.0
  %3723 = vmatmul.mubr.f32.gmra.mrb[0].mxu0 %v3091
  %v3724 = vpop.f32.mrb[0].mxu0
  %v3725 = vadd.f32 %v3564, %v3724
  %v3726 = vpop.f32.mrb[0].mxu0
  %v3727 = vadd.f32 %v3566, %v3726
  %3728 = vmatprep.mubr.f32.mxu0 0.0
  %3729 = vmatmul.mubr.f32.gmra.mrb[0].mxu0 %v3093
  %v3730 = vpop.f32.mrb[0].mxu0
  %v3731 = vadd.f32 %v3570, %v3730
  %v3732 = vpop.f32.mrb[0].mxu0
  %v3733 = vadd.f32 %v3572, %v3732
  %3734 = vmatprep.mubr.f32.mxu0 0.0
  %3735 = vmatmul.mubr.f32.gmra.mrb[0].mxu0 %v3095
  %v3736 = vpop.f32.mrb[0].mxu0
  %v3737 = vadd.f32 %v3576, %v3736
  %v3738 = vpop.f32.mrb[0].mxu0
  %v3739 = vadd.f32 %v3578, %v3738
  %3740 = vdwg.mxu0
  %v3741 = vmax.f32 %v3647, 0.0
  %v3742 = vmax.f32 %v3649, 0.0
  %v3743 = vmax.f32 %v3653, 0.0
  %v3744 = vmax.f32 %v3655, 0.0
  %v3745 = vmax.f32 %v3659, 0.0
  %v3746 = vmax.f32 %v3661, 0.0
  %v3747 = vmax.f32 %v3665, 0.0
  %v3748 = vmax.f32 %v3667, 0.0
  %v3749 = vmax.f32 %v3671, 0.0
  %v3750 = vmax.f32 %v3673, 0.0
  %v3751 = vmax.f32 %v3677, 0.0
  %v3752 = vmax.f32 %v3679, 0.0
  %v3753 = vmax.f32 %v3683, 0.0
  %v3754 = vmax.f32 %v3685, 0.0
  %v3755 = vmax.f32 %v3689, 0.0
  %v3756 = vmax.f32 %v3691, 0.0
  %v3757 = vmax.f32 %v3695, 0.0
  %v3758 = vmax.f32 %v3697, 0.0
  %v3759 = vmax.f32 %v3701, 0.0
  %v3760 = vmax.f32 %v3703, 0.0
  %v3761 = vmax.f32 %v3707, 0.0
  %v3762 = vmax.f32 %v3709, 0.0
  %v3763 = vmax.f32 %v3713, 0.0
  %v3764 = vmax.f32 %v3715, 0.0
  %v3765 = vmax.f32 %v3719, 0.0
  %v3766 = vmax.f32 %v3721, 0.0
  %v3767 = vmax.f32 %v3725, 0.0
  %v3768 = vmax.f32 %v3727, 0.0
  %v3769 = vmax.f32 %v3731, 0.0
  %v3770 = vmax.f32 %v3733, 0.0
  %v3771 = vmax.f32 %v3737, 0.0
  %v3772 = vmax.f32 %v3739, 0.0
  %3805 = vrot.lane.b32.xlu0 %v3741, 127
  %v3806 = vpop.permute.xlu0 %3805
  %3807 = vrot.lane.b32.xlu0 %v3742, 127
  %v3808 = vpop.permute.xlu0 %3807
  %3809 = vrot.lane.b32.xlu0 %v3743, 127
  %v3810 = vpop.permute.xlu0 %3809
  %3811 = vrot.lane.b32.xlu0 %v3744, 127
  %v3812 = vpop.permute.xlu0 %3811
  %3813 = vrot.lane.b32.xlu0 %v3745, 127
  %v3814 = vpop.permute.xlu0 %3813
  %3815 = vrot.lane.b32.xlu0 %v3746, 127
  %v3816 = vpop.permute.xlu0 %3815
  %3817 = vrot.lane.b32.xlu0 %v3747, 127
  %v3818 = vpop.permute.xlu0 %3817
  %3819 = vrot.lane.b32.xlu0 %v3748, 127
  %v3820 = vpop.permute.xlu0 %3819
  %3821 = vrot.lane.b32.xlu0 %v3749, 127
  %v3822 = vpop.permute.xlu0 %3821
  %3823 = vrot.lane.b32.xlu0 %v3750, 127
  %v3824 = vpop.permute.xlu0 %3823
  %3825 = vrot.lane.b32.xlu0 %v3751, 127
  %v3826 = vpop.permute.xlu0 %3825
  %3827 = vrot.lane.b32.xlu0 %v3752, 127
  %v3828 = vpop.permute.xlu0 %3827
  %3829 = vrot.lane.b32.xlu0 %v3753, 127
  %v3830 = vpop.permute.xlu0 %3829
  %3831 = vrot.lane.b32.xlu0 %v3754, 127
  %v3832 = vpop.permute.xlu0 %3831
  %3833 = vrot.lane.b32.xlu0 %v3755, 127
  %v3834 = vpop.permute.xlu0 %3833
  %3835 = vrot.lane.b32.xlu0 %v3756, 127
  %v3836 = vpop.permute.xlu0 %3835
  %3837 = vrot.lane.b32.xlu0 %v3757, 127
  %v3838 = vpop.permute.xlu0 %3837
  %3839 = vrot.lane.b32.xlu0 %v3758, 127
  %v3840 = vpop.permute.xlu0 %3839
  %3841 = vrot.lane.b32.xlu0 %v3759, 127
  %v3842 = vpop.permute.xlu0 %3841
  %3843 = vrot.lane.b32.xlu0 %v3760, 127
  %v3844 = vpop.permute.xlu0 %3843
  %3845 = vrot.lane.b32.xlu0 %v3761, 127
  %v3846 = vpop.permute.xlu0 %3845
  %3847 = vrot.lane.b32.xlu0 %v3762, 127
  %v3848 = vpop.permute.xlu0 %3847
  %3849 = vrot.lane.b32.xlu0 %v3763, 127
  %v3850 = vpop.permute.xlu0 %3849
  %3851 = vrot.lane.b32.xlu0 %v3764, 127
  %v3852 = vpop.permute.xlu0 %3851
  %3853 = vrot.lane.b32.xlu0 %v3765, 127
  %v3854 = vpop.permute.xlu0 %3853
  %3855 = vrot.lane.b32.xlu0 %v3766, 127
  %v3856 = vpop.permute.xlu0 %3855
  %3857 = vrot.lane.b32.xlu0 %v3767, 127
  %v3858 = vpop.permute.xlu0 %3857
  %3859 = vrot.lane.b32.xlu0 %v3768, 127
  %v3860 = vpop.permute.xlu0 %3859
  %3861 = vrot.lane.b32.xlu0 %v3769, 127
  %v3862 = vpop.permute.xlu0 %3861
  %3863 = vrot.lane.b32.xlu0 %v3770, 127
  %v3864 = vpop.permute.xlu0 %3863
  %3865 = vrot.lane.b32.xlu0 %v3771, 127
  %v3866 = vpop.permute.xlu0 %3865
  %3867 = vrot.lane.b32.xlu0 %v3772, 127
  %v3868 = vpop.permute.xlu0 %3867
  %v3869 = vsel %vm1399, %v3806, %v3808
  %v3870 = vsel %vm1399, %v3810, %v3812
  %v3871 = vsel %vm1399, %v3814, %v3816
  %v3872 = vsel %vm1399, %v3818, %v3820
  %v3873 = vsel %vm1399, %v3822, %v3824
  %v3874 = vsel %vm1399, %v3826, %v3828
  %v3875 = vsel %vm1399, %v3830, %v3832
  %v3876 = vsel %vm1399, %v3834, %v3836
  %v3877 = vsel %vm1399, %v3838, %v3840
  %v3878 = vsel %vm1399, %v3842, %v3844
  %v3879 = vsel %vm1399, %v3846, %v3848
  %v3880 = vsel %vm1399, %v3850, %v3852
  %v3881 = vsel %vm1399, %v3854, %v3856
  %v3882 = vsel %vm1399, %v3858, %v3860
  %v3883 = vsel %vm1399, %v3862, %v3864
  %v3884 = vsel %vm1399, %v3866, %v3868
  %vm3917 = vcmask 252928
  %v3918 = vsel %vm3917, %v3808, %v3742
  %v3919 = vsel %vm3917, %v3812, %v3744
  %v3920 = vsel %vm3917, %v3816, %v3746
  %v3921 = vsel %vm3917, %v3820, %v3748
  %v3922 = vsel %vm3917, %v3824, %v3750
  %v3923 = vsel %vm3917, %v3828, %v3752
  %v3924 = vsel %vm3917, %v3832, %v3754
  %v3925 = vsel %vm3917, %v3836, %v3756
  %v3926 = vsel %vm3917, %v3840, %v3758
  %v3927 = vsel %vm3917, %v3844, %v3760
  %v3928 = vsel %vm3917, %v3848, %v3762
  %v3929 = vsel %vm3917, %v3852, %v3764
  %v3930 = vsel %vm3917, %v3856, %v3766
  %v3931 = vsel %vm3917, %v3860, %v3768
  %v3932 = vsel %vm3917, %v3864, %v3770
  %v3933 = vsel %vm3917, %v3868, %v3772
  %v3934 = vmax.f32 %v3741, %v3869
  %v3935 = vmax.f32 %v3742, %v3918
  %v3936 = vmax.f32 %v3743, %v3870
  %v3937 = vmax.f32 %v3744, %v3919
  %v3938 = vmax.f32 %v3745, %v3871
  %v3939 = vmax.f32 %v3746, %v3920
  %v3940 = vmax.f32 %v3747, %v3872
  %v3941 = vmax.f32 %v3748, %v3921
  %v3942 = vmax.f32 %v3749, %v3873
  %v3943 = vmax.f32 %v3750, %v3922
  %v3944 = vmax.f32 %v3751, %v3874
  %v3945 = vmax.f32 %v3752, %v3923
  %v3946 = vmax.f32 %v3753, %v3875
  %v3947 = vmax.f32 %v3754, %v3924
  %v3948 = vmax.f32 %v3755, %v3876
  %v3949 = vmax.f32 %v3756, %v3925
  %v3950 = vmax.f32 %v3757, %v3877
  %v3951 = vmax.f32 %v3758, %v3926
  %v3952 = vmax.f32 %v3759, %v3878
  %v3953 = vmax.f32 %v3760, %v3927
  %v3954 = vmax.f32 %v3761, %v3879
  %v3955 = vmax.f32 %v3762, %v3928
  %v3956 = vmax.f32 %v3763, %v3880
  %v3957 = vmax.f32 %v3764, %v3929
  %v3958 = vmax.f32 %v3765, %v3881
  %v3959 = vmax.f32 %v3766, %v3930
  %v3960 = vmax.f32 %v3767, %v3882
  %v3961 = vmax.f32 %v3768, %v3931
  %v3962 = vmax.f32 %v3769, %v3883
  %v3963 = vmax.f32 %v3770, %v3932
  %v3964 = vmax.f32 %v3771, %v3884
  %v3965 = vmax.f32 %v3772, %v3933
  %v3966 = vld [vmem:[%s7] sm:$0xff]
  %v3967 = vld [vmem:[%s7 + $0x8] sm:$0xff]
  %v3968 = vld [vmem:[%s7 + $0x10] sm:$0xff]
  %v3969 = vld [vmem:[%s7 + $0x18] sm:$0xff]
  %v3970 = vld [vmem:[%s7 + $0x20] sm:$0xff]
  %v3971 = vld [vmem:[%s7 + $0x28] sm:$0xff]
  %v3972 = vld [vmem:[%s7 + $0x30] sm:$0xff]
  %v3973 = vld [vmem:[%s7 + $0x38] sm:$0xff]
  %v3974 = vld [vmem:[%s7 + $0x40] sm:$0xff]
  %3975 = vmatprep.subr.mxu0 %v3935
  %3976 = vmatpush1.msra.mxu0 %v3934
  %3977 = vmatprep.subr.mxu0 %v3937
  %3978 = vmatpush1.msra.mxu0 %v3936
  %3979 = vmatprep.subr.mxu0 %v3939
  %3980 = vmatpush1.msra.mxu0 %v3938
  %3981 = vmatprep.subr.mxu0 %v3941
  %3982 = vmatpush1.msra.mxu0 %v3940
  %3983 = vmatprep.subr.mxu0 %v3943
  %3984 = vmatpush1.msra.mxu0 %v3942
  %3985 = vmatprep.subr.mxu0 %v3945
  %3986 = vmatpush1.msra.mxu0 %v3944
  %3987 = vmatprep.subr.mxu0 %v3947
  %3988 = vmatpush1.msra.mxu0 %v3946
  %3989 = vmatprep.subr.mxu0 %v3949
  %3990 = vmatpush1.msra.mxu0 %v3948
  %3991 = vmatprep.subr.mxu0 %v3951
  %3992 = vmatpush1.msra.mxu0 %v3950
  %3993 = vmatprep.subr.mxu0 %v3953
  %3994 = vmatpush1.msra.mxu0 %v3952
  %3995 = vmatprep.subr.mxu0 %v3955
  %3996 = vmatpush1.msra.mxu0 %v3954
  %3997 = vmatprep.subr.mxu0 %v3957
  %3998 = vmatpush1.msra.mxu0 %v3956
  %3999 = vmatprep.subr.mxu0 %v3959
  %4000 = vmatpush1.msra.mxu0 %v3958
  %4001 = vmatprep.subr.mxu0 %v3961
  %4002 = vmatpush1.msra.mxu0 %v3960
  %4003 = vmatprep.subr.mxu0 %v3963
  %4004 = vmatpush1.msra.mxu0 %v3962
  %4005 = vmatprep.subr.mxu0 %v3965
  %4006 = vmatpush1.msra.mxu0 %v3964
  %4007 = vmatprep.subr.mxu0 0.0
  %4008 = vmatpush1.msra.mxu0 0.0
  %4009 = vmatprep.subr.mxu0 0.0
  %4010 = vmatpush1.msra.mxu0 0.0
  %4011 = vmatprep.subr.mxu0 0.0
  %4012 = vmatpush1.msra.mxu0 0.0
  %4013 = vmatprep.subr.mxu0 0.0
  %4014 = vmatpush1.msra.mxu0 0.0
  %4015 = vmatprep.subr.mxu0 0.0
  %4016 = vmatpush1.msra.mxu0 0.0
  %4017 = vmatprep.subr.mxu0 0.0
  %4018 = vmatpush1.msra.mxu0 0.0
  %4019 = vmatprep.subr.mxu0 0.0
  %4020 = vmatpush1.msra.mxu0 0.0
  %4021 = vmatprep.subr.mxu0 0.0
  %4022 = vmatpush1.msra.mxu0 0.0
  %4023 = vmatprep.subr.mxu0 0.0
  %4024 = vmatpush1.msra.mxu0 0.0
  %4025 = vmatprep.subr.mxu0 0.0
  %4026 = vmatpush1.msra.mxu0 0.0
  %4027 = vmatprep.subr.mxu0 0.0
  %4028 = vmatpush1.msra.mxu0 0.0
  %4029 = vmatprep.subr.mxu0 0.0
  %4030 = vmatpush1.msra.mxu0 0.0
  %4031 = vmatprep.subr.mxu0 0.0
  %4032 = vmatpush1.msra.mxu0 0.0
  %4033 = vmatprep.subr.mxu0 0.0
  %4034 = vmatpush1.msra.mxu0 0.0
  %4035 = vmatprep.subr.mxu0 0.0
  %4036 = vmatpush1.msra.mxu0 0.0
  %4037 = vmatprep.subr.mxu0 0.0
  %4038 = vmatpush1.msra.mxu0 0.0
  %4039 = vmatprep.mubr.f32.mxu0 0.0
  %4040 = vmatmul.mubr.f32.gmra.mrb[0].mxu0 %v3966
  %v4041 = vpop.f32.mrb[0].mxu0
  %v4042 = vadd.f32 0.0, %v4041
  %v4043 = vpop.f32.mrb[0].mxu0
  %v4044 = vadd.f32 0.0, %v4043
  %4045 = vmatprep.mubr.f32.mxu0 0.0
  %4046 = vmatmul.mubr.f32.gmra.mrb[0].mxu0 %v3967
  %v4047 = vpop.f32.mrb[0].mxu0
  %v4048 = vadd.f32 0.0, %v4047
  %v4049 = vpop.f32.mrb[0].mxu0
  %v4050 = vadd.f32 0.0, %v4049
  %4051 = vmatprep.mubr.f32.mxu0 0.0
  %4052 = vmatmul.mubr.f32.gmra.mrb[0].mxu0 %v3968
  %v4053 = vpop.f32.mrb[0].mxu0
  %v4054 = vadd.f32 0.0, %v4053
  %v4055 = vpop.f32.mrb[0].mxu0
  %v4056 = vadd.f32 0.0, %v4055
  %4057 = vmatprep.mubr.f32.mxu0 0.0
  %4058 = vmatmul.mubr.f32.gmra.mrb[0].mxu0 %v3969
  %v4059 = vpop.f32.mrb[0].mxu0
  %v4060 = vadd.f32 0.0, %v4059
  %v4061 = vpop.f32.mrb[0].mxu0
  %v4062 = vadd.f32 0.0, %v4061
  %4063 = vmatprep.mubr.f32.mxu0 0.0
  %4064 = vmatmul.mubr.f32.gmra.mrb[0].mxu0 %v3970
  %v4065 = vpop.f32.mrb[0].mxu0
  %v4066 = vadd.f32 0.0, %v4065
  %v4067 = vpop.f32.mrb[0].mxu0
  %v4068 = vadd.f32 0.0, %v4067
  %4069 = vmatprep.mubr.f32.mxu0 0.0
  %4070 = vmatmul.mubr.f32.gmra.mrb[0].mxu0 %v3971
  %v4071 = vpop.f32.mrb[0].mxu0
  %v4072 = vadd.f32 0.0, %v4071
  %v4073 = vpop.f32.mrb[0].mxu0
  %v4074 = vadd.f32 0.0, %v4073
  %4075 = vmatprep.mubr.f32.mxu0 0.0
  %4076 = vmatmul.mubr.f32.gmra.mrb[0].mxu0 %v3972
  %v4077 = vpop.f32.mrb[0].mxu0
  %v4078 = vadd.f32 0.0, %v4077
  %v4079 = vpop.f32.mrb[0].mxu0
  %v4080 = vadd.f32 0.0, %v4079
  %4081 = vmatprep.mubr.f32.mxu0 0.0
  %4082 = vmatmul.mubr.f32.gmra.mrb[0].mxu0 %v3973
  %v4083 = vpop.f32.mrb[0].mxu0
  %v4084 = vadd.f32 0.0, %v4083
  %v4085 = vpop.f32.mrb[0].mxu0
  %v4086 = vadd.f32 0.0, %v4085
  %4087 = vmatprep.mubr.f32.mxu0 0.0
  %4088 = vmatmul.mubr.f32.gmra.mrb[0].mxu0 %v3974
  %v4089 = vpop.f32.mrb[0].mxu0
  %v4090 = vadd.f32 0.0, %v4089
  %v4091 = vpop.f32.mrb[0].mxu0
  %v4092 = vadd.f32 0.0, %v4091
  %4093 = vdwg.mxu0
  %v4094 = vld [vmem:[%s8] sm:$0xff]
  %v4095 = vld [vmem:[%s8 + $0x8] sm:$0xff]
  %v4096 = vld [vmem:[%s8 + $0x10] sm:$0xff]
  %v4097 = vld [vmem:[%s8 + $0x18] sm:$0xff]
  %v4098 = vld [vmem:[%s8 + $0x20] sm:$0xff]
  %v4099 = vld [vmem:[%s8 + $0x28] sm:$0xff]
  %v4100 = vld [vmem:[%s8 + $0x30] sm:$0xff]
  %v4101 = vld [vmem:[%s8 + $0x38] sm:$0xff]
  %v4102 = vld [vmem:[%s8 + $0x40] sm:$0xff]
  %4103 = vmatprep.subr.mxu0 %v3935
  %4104 = vmatpush1.msra.mxu0 %v3934
  %4105 = vmatprep.subr.mxu0 %v3937
  %4106 = vmatpush1.msra.mxu0 %v3936
  %4107 = vmatprep.subr.mxu0 %v3939
  %4108 = vmatpush1.msra.mxu0 %v3938
  %4109 = vmatprep.subr.mxu0 %v3941
  %4110 = vmatpush1.msra.mxu0 %v3940
  %4111 = vmatprep.subr.mxu0 %v3943
  %4112 = vmatpush1.msra.mxu0 %v3942
  %4113 = vmatprep.subr.mxu0 %v3945
  %4114 = vmatpush1.msra.mxu0 %v3944
  %4115 = vmatprep.subr.mxu0 %v3947
  %4116 = vmatpush1.msra.mxu0 %v3946
  %4117 = vmatprep.subr.mxu0 %v3949
  %4118 = vmatpush1.msra.mxu0 %v3948
  %4119 = vmatprep.subr.mxu0 %v3951
  %4120 = vmatpush1.msra.mxu0 %v3950
  %4121 = vmatprep.subr.mxu0 %v3953
  %4122 = vmatpush1.msra.mxu0 %v3952
  %4123 = vmatprep.subr.mxu0 %v3955
  %4124 = vmatpush1.msra.mxu0 %v3954
  %4125 = vmatprep.subr.mxu0 %v3957
  %4126 = vmatpush1.msra.mxu0 %v3956
  %4127 = vmatprep.subr.mxu0 %v3959
  %4128 = vmatpush1.msra.mxu0 %v3958
  %4129 = vmatprep.subr.mxu0 %v3961
  %4130 = vmatpush1.msra.mxu0 %v3960
  %4131 = vmatprep.subr.mxu0 %v3963
  %4132 = vmatpush1.msra.mxu0 %v3962
  %4133 = vmatprep.subr.mxu0 %v3965
  %4134 = vmatpush1.msra.mxu0 %v3964
  %4135 = vmatprep.subr.mxu0 0.0
  %4136 = vmatpush1.msra.mxu0 0.0
  %4137 = vmatprep.subr.mxu0 0.0
  %4138 = vmatpush1.msra.mxu0 0.0
  %4139 = vmatprep.subr.mxu0 0.0
  %4140 = vmatpush1.msra.mxu0 0.0
  %4141 = vmatprep.subr.mxu0 0.0
  %4142 = vmatpush1.msra.mxu0 0.0
  %4143 = vmatprep.subr.mxu0 0.0
  %4144 = vmatpush1.msra.mxu0 0.0
  %4145 = vmatprep.subr.mxu0 0.0
  %4146 = vmatpush1.msra.mxu0 0.0
  %4147 = vmatprep.subr.mxu0 0.0
  %4148 = vmatpush1.msra.mxu0 0.0
  %4149 = vmatprep.subr.mxu0 0.0
  %4150 = vmatpush1.msra.mxu0 0.0
  %4151 = vmatprep.subr.mxu0 0.0
  %4152 = vmatpush1.msra.mxu0 0.0
  %4153 = vmatprep.subr.mxu0 0.0
  %4154 = vmatpush1.msra.mxu0 0.0
  %4155 = vmatprep.subr.mxu0 0.0
  %4156 = vmatpush1.msra.mxu0 0.0
  %4157 = vmatprep.subr.mxu0 0.0
  %4158 = vmatpush1.msra.mxu0 0.0
  %4159 = vmatprep.subr.mxu0 0.0
  %4160 = vmatpush1.msra.mxu0 0.0
  %4161 = vmatprep.subr.mxu0 0.0
  %4162 = vmatpush1.msra.mxu0 0.0
  %4163 = vmatprep.subr.mxu0 0.0
  %4164 = vmatpush1.msra.mxu0 0.0
  %4165 = vmatprep.subr.mxu0 0.0
  %4166 = vmatpush1.msra.mxu0 0.0
  %4167 = vmatprep.mubr.f32.mxu0 0.0
  %4168 = vmatmul.mubr.f32.gmra.mrb[0].mxu0 %v4094
  %v4169 = vpop.f32.mrb[0].mxu0
  %v4170 = vadd.f32 0.0, %v4169
  %v4171 = vpop.f32.mrb[0].mxu0
  %v4172 = vadd.f32 0.0, %v4171
  %4173 = vmatprep.mubr.f32.mxu0 0.0
  %4174 = vmatmul.mubr.f32.gmra.mrb[0].mxu0 %v4095
  %v4175 = vpop.f32.mrb[0].mxu0
  %v4176 = vadd.f32 0.0, %v4175
  %v4177 = vpop.f32.mrb[0].mxu0
  %v4178 = vadd.f32 0.0, %v4177
  %4179 = vmatprep.mubr.f32.mxu0 0.0
  %4180 = vmatmul.mubr.f32.gmra.mrb[0].mxu0 %v4096
  %v4181 = vpop.f32.mrb[0].mxu0
  %v4182 = vadd.f32 0.0, %v4181
  %v4183 = vpop.f32.mrb[0].mxu0
  %v4184 = vadd.f32 0.0, %v4183
  %4185 = vmatprep.mubr.f32.mxu0 0.0
  %4186 = vmatmul.mubr.f32.gmra.mrb[0].mxu0 %v4097
  %v4187 = vpop.f32.mrb[0].mxu0
  %v4188 = vadd.f32 0.0, %v4187
  %v4189 = vpop.f32.mrb[0].mxu0
  %v4190 = vadd.f32 0.0, %v4189
  %4191 = vmatprep.mubr.f32.mxu0 0.0
  %4192 = vmatmul.mubr.f32.gmra.mrb[0].mxu0 %v4098
  %v4193 = vpop.f32.mrb[0].mxu0
  %v4194 = vadd.f32 0.0, %v4193
  %v4195 = vpop.f32.mrb[0].mxu0
  %v4196 = vadd.f32 0.0, %v4195
  %4197 = vmatprep.mubr.f32.mxu0 0.0
  %4198 = vmatmul.mubr.f32.gmra.mrb[0].mxu0 %v4099
  %v4199 = vpop.f32.mrb[0].mxu0
  %v4200 = vadd.f32 0.0, %v4199
  %v4201 = vpop.f32.mrb[0].mxu0
  %v4202 = vadd.f32 0.0, %v4201
  %4203 = vmatprep.mubr.f32.mxu0 0.0
  %4204 = vmatmul.mubr.f32.gmra.mrb[0].mxu0 %v4100
  %v4205 = vpop.f32.mrb[0].mxu0
  %v4206 = vadd.f32 0.0, %v4205
  %v4207 = vpop.f32.mrb[0].mxu0
  %v4208 = vadd.f32 0.0, %v4207
  %4209 = vmatprep.mubr.f32.mxu0 0.0
  %4210 = vmatmul.mubr.f32.gmra.mrb[0].mxu0 %v4101
  %v4211 = vpop.f32.mrb[0].mxu0
  %v4212 = vadd.f32 0.0, %v4211
  %v4213 = vpop.f32.mrb[0].mxu0
  %v4214 = vadd.f32 0.0, %v4213
  %4215 = vmatprep.mubr.f32.mxu0 0.0
  %4216 = vmatmul.mubr.f32.gmra.mrb[0].mxu0 %v4102
  %v4217 = vpop.f32.mrb[0].mxu0
  %v4218 = vadd.f32 0.0, %v4217
  %v4219 = vpop.f32.mrb[0].mxu0
  %v4220 = vadd.f32 0.0, %v4219
  %4221 = vdwg.mxu0
  %v4222 = vmax.f32 %v4042, %v4170
  %v4223 = vmax.f32 %v4044, %v4172
  %v4224 = vmax.f32 %v4048, %v4176
  %v4225 = vmax.f32 %v4050, %v4178
  %v4226 = vmax.f32 %v4054, %v4182
  %v4227 = vmax.f32 %v4056, %v4184
  %v4228 = vmax.f32 %v4060, %v4188
  %v4229 = vmax.f32 %v4062, %v4190
  %v4230 = vmax.f32 %v4066, %v4194
  %v4231 = vmax.f32 %v4068, %v4196
  %v4232 = vmax.f32 %v4072, %v4200
  %v4233 = vmax.f32 %v4074, %v4202
  %v4234 = vmax.f32 %v4078, %v4206
  %v4235 = vmax.f32 %v4080, %v4208
  %v4236 = vmax.f32 %v4084, %v4212
  %v4237 = vmax.f32 %v4086, %v4214
  %v4238 = vmax.f32 %v4090, %v4218
  %v4239 = vmax.f32 %v4092, %v4220
  %v4258 = vrot.slane %v4222, 1
  %v4259 = vrot.slane %v4224, 1
  %v4260 = vsel %vm119, %v4258, %v4259
  %v4261 = vrot.slane %v4223, 1
  %v4262 = vrot.slane %v4225, 1
  %v4263 = vsel %vm119, %v4261, %v4262
  %v4264 = vrot.slane %v4226, 1
  %v4265 = vsel %vm119, %v4259, %v4264
  %v4266 = vrot.slane %v4227, 1
  %v4267 = vsel %vm119, %v4262, %v4266
  %v4268 = vrot.slane %v4228, 1
  %v4269 = vsel %vm119, %v4264, %v4268
  %v4270 = vrot.slane %v4229, 1
  %v4271 = vsel %vm119, %v4266, %v4270
  %v4272 = vrot.slane %v4230, 1
  %v4273 = vsel %vm119, %v4268, %v4272
  %v4274 = vrot.slane %v4231, 1
  %v4275 = vsel %vm119, %v4270, %v4274
  %v4276 = vrot.slane %v4232, 1
  %v4277 = vsel %vm119, %v4272, %v4276
  %v4278 = vrot.slane %v4233, 1
  %v4279 = vsel %vm119, %v4274, %v4278
  %v4280 = vrot.slane %v4234, 1
  %v4281 = vsel %vm119, %v4276, %v4280
  %v4282 = vrot.slane %v4235, 1
  %v4283 = vsel %vm119, %v4278, %v4282
  %v4284 = vrot.slane %v4236, 1
  %v4285 = vsel %vm119, %v4280, %v4284
  %v4286 = vrot.slane %v4237, 1
  %v4287 = vsel %vm119, %v4282, %v4286
  %v4288 = vrot.slane %v4238, 1
  %v4289 = vsel %vm119, %v4284, %v4288
  %v4290 = vrot.slane %v4239, 1
  %v4291 = vsel %vm119, %v4286, %v4290
  %4292 = vrot.lane.b32.xlu0 %v4260, 32
  %v4293 = vpop.permute.xlu0 %4292
  %4294 = vrot.lane.b32.xlu0 %v4263, 32
  %v4295 = vpop.permute.xlu0 %4294
  %4296 = vrot.lane.b32.xlu0 %v4265, 32
  %v4297 = vpop.permute.xlu0 %4296
  %4298 = vrot.lane.b32.xlu0 %v4267, 32
  %v4299 = vpop.permute.xlu0 %4298
  %4300 = vrot.lane.b32.xlu0 %v4269, 32
  %v4301 = vpop.permute.xlu0 %4300
  %4302 = vrot.lane.b32.xlu0 %v4271, 32
  %v4303 = vpop.permute.xlu0 %4302
  %4304 = vrot.lane.b32.xlu0 %v4273, 32
  %v4305 = vpop.permute.xlu0 %4304
  %4306 = vrot.lane.b32.xlu0 %v4275, 32
  %v4307 = vpop.permute.xlu0 %4306
  %4308 = vrot.lane.b32.xlu0 %v4277, 32
  %v4309 = vpop.permute.xlu0 %4308
  %4310 = vrot.lane.b32.xlu0 %v4279, 32
  %v4311 = vpop.permute.xlu0 %4310
  %4312 = vrot.lane.b32.xlu0 %v4281, 32
  %v4313 = vpop.permute.xlu0 %4312
  %4314 = vrot.lane.b32.xlu0 %v4283, 32
  %v4315 = vpop.permute.xlu0 %4314
  %4316 = vrot.lane.b32.xlu0 %v4285, 32
  %v4317 = vpop.permute.xlu0 %4316
  %4318 = vrot.lane.b32.xlu0 %v4287, 32
  %v4319 = vpop.permute.xlu0 %4318
  %4320 = vrot.lane.b32.xlu0 %v4289, 32
  %v4321 = vpop.permute.xlu0 %4320
  %4322 = vrot.lane.b32.xlu0 %v4291, 32
  %v4323 = vpop.permute.xlu0 %4322
  %v4324 = vsel %vm671, %v4293, %v4295
  %v4325 = vsel %vm671, %v4297, %v4299
  %v4326 = vsel %vm671, %v4301, %v4303
  %v4327 = vsel %vm671, %v4305, %v4307
  %v4328 = vsel %vm671, %v4309, %v4311
  %v4329 = vsel %vm671, %v4313, %v4315
  %v4330 = vsel %vm671, %v4317, %v4319
  %v4331 = vsel %vm671, %v4321, %v4323
  %v4348 = vrot.slane %v4222, 2
  %v4349 = vrot.slane %v4224, 2
  %v4350 = vsel %vm281, %v4348, %v4349
  %v4351 = vrot.slane %v4223, 2
  %v4352 = vrot.slane %v4225, 2
  %v4353 = vsel %vm281, %v4351, %v4352
  %v4354 = vrot.slane %v4226, 2
  %v4355 = vsel %vm281, %v4349, %v4354
  %v4356 = vrot.slane %v4227, 2
  %v4357 = vsel %vm281, %v4352, %v4356
  %v4358 = vrot.slane %v4228, 2
  %v4359 = vsel %vm281, %v4354, %v4358
  %v4360 = vrot.slane %v4229, 2
  %v4361 = vsel %vm281, %v4356, %v4360
  %v4362 = vrot.slane %v4230, 2
  %v4363 = vsel %vm281, %v4358, %v4362
  %v4364 = vrot.slane %v4231, 2
  %v4365 = vsel %vm281, %v4360, %v4364
  %v4366 = vrot.slane %v4232, 2
  %v4367 = vsel %vm281, %v4362, %v4366
  %v4368 = vrot.slane %v4233, 2
  %v4369 = vsel %vm281, %v4364, %v4368
  %v4370 = vrot.slane %v4234, 2
  %v4371 = vsel %vm281, %v4366, %v4370
  %v4372 = vrot.slane %v4235, 2
  %v4373 = vsel %vm281, %v4368, %v4372
  %v4374 = vrot.slane %v4236, 2
  %v4375 = vsel %vm281, %v4370, %v4374
  %v4376 = vrot.slane %v4237, 2
  %v4377 = vsel %vm281, %v4372, %v4376
  %v4378 = vrot.slane %v4238, 2
  %v4379 = vsel %vm281, %v4374, %v4378
  %v4380 = vrot.slane %v4239, 2
  %v4381 = vsel %vm281, %v4376, %v4380
  %4382 = vrot.lane.b32.xlu0 %v4350, 64
  %v4383 = vpop.permute.xlu0 %4382
  %4384 = vrot.lane.b32.xlu0 %v4353, 64
  %v4385 = vpop.permute.xlu0 %4384
  %4386 = vrot.lane.b32.xlu0 %v4355, 64
  %v4387 = vpop.permute.xlu0 %4386
  %4388 = vrot.lane.b32.xlu0 %v4357, 64
  %v4389 = vpop.permute.xlu0 %4388
  %4390 = vrot.lane.b32.xlu0 %v4359, 64
  %v4391 = vpop.permute.xlu0 %4390
  %4392 = vrot.lane.b32.xlu0 %v4361, 64
  %v4393 = vpop.permute.xlu0 %4392
  %4394 = vrot.lane.b32.xlu0 %v4363, 64
  %v4395 = vpop.permute.xlu0 %4394
  %4396 = vrot.lane.b32.xlu0 %v4365, 64
  %v4397 = vpop.permute.xlu0 %4396
  %4398 = vrot.lane.b32.xlu0 %v4367, 64
  %v4399 = vpop.permute.xlu0 %4398
  %4400 = vrot.lane.b32.xlu0 %v4369, 64
  %v4401 = vpop.permute.xlu0 %4400
  %4402 = vrot.lane.b32.xlu0 %v4371, 64
  %v4403 = vpop.permute.xlu0 %4402
  %4404 = vrot.lane.b32.xlu0 %v4373, 64
  %v4405 = vpop.permute.xlu0 %4404
  %4406 = vrot.lane.b32.xlu0 %v4375, 64
  %v4407 = vpop.permute.xlu0 %4406
  %4408 = vrot.lane.b32.xlu0 %v4377, 64
  %v4409 = vpop.permute.xlu0 %4408
  %4410 = vrot.lane.b32.xlu0 %v4379, 64
  %v4411 = vpop.permute.xlu0 %4410
  %4412 = vrot.lane.b32.xlu0 %v4381, 64
  %v4413 = vpop.permute.xlu0 %4412
  %v4414 = vsel %vm704, %v4383, %v4385
  %v4415 = vsel %vm704, %v4387, %v4389
  %v4416 = vsel %vm704, %v4391, %v4393
  %v4417 = vsel %vm704, %v4395, %v4397
  %v4418 = vsel %vm704, %v4399, %v4401
  %v4419 = vsel %vm704, %v4403, %v4405
  %v4420 = vsel %vm704, %v4407, %v4409
  %v4421 = vsel %vm704, %v4411, %v4413
  %v4438 = vrot.slane %v4222, 3
  %v4439 = vrot.slane %v4224, 3
  %v4440 = vsel %vm443, %v4438, %v4439
  %v4441 = vrot.slane %v4223, 3
  %v4442 = vrot.slane %v4225, 3
  %v4443 = vsel %vm443, %v4441, %v4442
  %v4444 = vrot.slane %v4226, 3
  %v4445 = vsel %vm443, %v4439, %v4444
  %v4446 = vrot.slane %v4227, 3
  %v4447 = vsel %vm443, %v4442, %v4446
  %v4448 = vrot.slane %v4228, 3
  %v4449 = vsel %vm443, %v4444, %v4448
  %v4450 = vrot.slane %v4229, 3
  %v4451 = vsel %vm443, %v4446, %v4450
  %v4452 = vrot.slane %v4230, 3
  %v4453 = vsel %vm443, %v4448, %v4452
  %v4454 = vrot.slane %v4231, 3
  %v4455 = vsel %vm443, %v4450, %v4454
  %v4456 = vrot.slane %v4232, 3
  %v4457 = vsel %vm443, %v4452, %v4456
  %v4458 = vrot.slane %v4233, 3
  %v4459 = vsel %vm443, %v4454, %v4458
  %v4460 = vrot.slane %v4234, 3
  %v4461 = vsel %vm443, %v4456, %v4460
  %v4462 = vrot.slane %v4235, 3
  %v4463 = vsel %vm443, %v4458, %v4462
  %v4464 = vrot.slane %v4236, 3
  %v4465 = vsel %vm443, %v4460, %v4464
  %v4466 = vrot.slane %v4237, 3
  %v4467 = vsel %vm443, %v4462, %v4466
  %v4468 = vrot.slane %v4238, 3
  %v4469 = vsel %vm443, %v4464, %v4468
  %v4470 = vrot.slane %v4239, 3
  %v4471 = vsel %vm443, %v4466, %v4470
  %4472 = vrot.lane.b32.xlu0 %v4440, 96
  %v4473 = vpop.permute.xlu0 %4472
  %4474 = vrot.lane.b32.xlu0 %v4443, 96
  %v4475 = vpop.permute.xlu0 %4474
  %4476 = vrot.lane.b32.xlu0 %v4445, 96
  %v4477 = vpop.permute.xlu0 %4476
  %4478 = vrot.lane.b32.xlu0 %v4447, 96
  %v4479 = vpop.permute.xlu0 %4478
  %4480 = vrot.lane.b32.xlu0 %v4449, 96
  %v4481 = vpop.permute.xlu0 %4480
  %4482 = vrot.lane.b32.xlu0 %v4451, 96
  %v4483 = vpop.permute.xlu0 %4482
  %4484 = vrot.lane.b32.xlu0 %v4453, 96
  %v4485 = vpop.permute.xlu0 %4484
  %4486 = vrot.lane.b32.xlu0 %v4455, 96
  %v4487 = vpop.permute.xlu0 %4486
  %4488 = vrot.lane.b32.xlu0 %v4457, 96
  %v4489 = vpop.permute.xlu0 %4488
  %4490 = vrot.lane.b32.xlu0 %v4459, 96
  %v4491 = vpop.permute.xlu0 %4490
  %4492 = vrot.lane.b32.xlu0 %v4461, 96
  %v4493 = vpop.permute.xlu0 %4492
  %4494 = vrot.lane.b32.xlu0 %v4463, 96
  %v4495 = vpop.permute.xlu0 %4494
  %4496 = vrot.lane.b32.xlu0 %v4465, 96
  %v4497 = vpop.permute.xlu0 %4496
  %4498 = vrot.lane.b32.xlu0 %v4467, 96
  %v4499 = vpop.permute.xlu0 %4498
  %4500 = vrot.lane.b32.xlu0 %v4469, 96
  %v4501 = vpop.permute.xlu0 %4500
  %4502 = vrot.lane.b32.xlu0 %v4471, 96
  %v4503 = vpop.permute.xlu0 %4502
  %v4504 = vsel %vm737, %v4473, %v4475
  %v4505 = vsel %vm737, %v4477, %v4479
  %v4506 = vsel %vm737, %v4481, %v4483
  %v4507 = vsel %vm737, %v4485, %v4487
  %v4508 = vsel %vm737, %v4489, %v4491
  %v4509 = vsel %vm737, %v4493, %v4495
  %v4510 = vsel %vm737, %v4497, %v4499
  %v4511 = vsel %vm737, %v4501, %v4503
  %v4528 = vrot.slane %v4222, 4
  %v4529 = vrot.slane %v4224, 4
  %v4530 = vsel %vm605, %v4528, %v4529
  %v4531 = vrot.slane %v4223, 4
  %v4532 = vrot.slane %v4225, 4
  %v4533 = vsel %vm605, %v4531, %v4532
  %v4534 = vrot.slane %v4226, 4
  %v4535 = vsel %vm605, %v4529, %v4534
  %v4536 = vrot.slane %v4227, 4
  %v4537 = vsel %vm605, %v4532, %v4536
  %v4538 = vrot.slane %v4228, 4
  %v4539 = vsel %vm605, %v4534, %v4538
  %v4540 = vrot.slane %v4229, 4
  %v4541 = vsel %vm605, %v4536, %v4540
  %v4542 = vrot.slane %v4230, 4
  %v4543 = vsel %vm605, %v4538, %v4542
  %v4544 = vrot.slane %v4231, 4
  %v4545 = vsel %vm605, %v4540, %v4544
  %v4546 = vrot.slane %v4232, 4
  %v4547 = vsel %vm605, %v4542, %v4546
  %v4548 = vrot.slane %v4233, 4
  %v4549 = vsel %vm605, %v4544, %v4548
  %v4550 = vrot.slane %v4234, 4
  %v4551 = vsel %vm605, %v4546, %v4550
  %v4552 = vrot.slane %v4235, 4
  %v4553 = vsel %vm605, %v4548, %v4552
  %v4554 = vrot.slane %v4236, 4
  %v4555 = vsel %vm605, %v4550, %v4554
  %v4556 = vrot.slane %v4237, 4
  %v4557 = vsel %vm605, %v4552, %v4556
  %v4558 = vrot.slane %v4238, 4
  %v4559 = vsel %vm605, %v4554, %v4558
  %v4560 = vrot.slane %v4239, 4
  %v4561 = vsel %vm605, %v4556, %v4560
  %v4578 = vsel %vm671, %v4223, %v4293
  %v4579 = vsel %vm671, %v4225, %v4297
  %v4580 = vsel %vm671, %v4227, %v4301
  %v4581 = vsel %vm671, %v4229, %v4305
  %v4582 = vsel %vm671, %v4231, %v4309
  %v4583 = vsel %vm671, %v4233, %v4313
  %v4584 = vsel %vm671, %v4235, %v4317
  %v4585 = vsel %vm671, %v4237, %v4321
  %v4586 = vsel %vm704, %v4324, %v4383
  %v4587 = vsel %vm704, %v4325, %v4387
  %v4588 = vsel %vm704, %v4326, %v4391
  %v4589 = vsel %vm704, %v4327, %v4395
  %v4590 = vsel %vm704, %v4328, %v4399
  %v4591 = vsel %vm704, %v4329, %v4403
  %v4592 = vsel %vm704, %v4330, %v4407
  %v4593 = vsel %vm704, %v4331, %v4411
  %v4594 = vsel %vm737, %v4414, %v4473
  %v4595 = vsel %vm737, %v4415, %v4477
  %v4596 = vsel %vm737, %v4416, %v4481
  %v4597 = vsel %vm737, %v4417, %v4485
  %v4598 = vsel %vm737, %v4418, %v4489
  %v4599 = vsel %vm737, %v4419, %v4493
  %v4600 = vsel %vm737, %v4420, %v4497
  %v4601 = vsel %vm737, %v4421, %v4501
  %v4602 = vld [vmem:[%s9] sm:$0xff]
  %v4604 = vsel %vm704, %v4602, 0
  %4606 = vmatprep.subr.mxu0 %v4578
  %4607 = vmatpush1.msra.mxu0 %v4222
  %4608 = vmatprep.subr.mxu0 %v4579
  %4609 = vmatpush1.msra.mxu0 %v4224
  %4610 = vmatprep.subr.mxu0 %v4580
  %4611 = vmatpush1.msra.mxu0 %v4226
  %4612 = vmatprep.subr.mxu0 %v4581
  %4613 = vmatpush1.msra.mxu0 %v4228
  %4614 = vmatprep.subr.mxu0 %v4582
  %4615 = vmatpush1.msra.mxu0 %v4230
  %4616 = vmatprep.subr.mxu0 %v4583
  %4617 = vmatpush1.msra.mxu0 %v4232
  %4618 = vmatprep.subr.mxu0 %v4584
  %4619 = vmatpush1.msra.mxu0 %v4234
  %4620 = vmatprep.subr.mxu0 %v4585
  %4621 = vmatpush1.msra.mxu0 %v4236
  %4622 = vmatprep.subr.mxu0 0.0
  %4623 = vmatpush1.msra.mxu0 0.0
  %4624 = vmatprep.subr.mxu0 0.0
  %4625 = vmatpush1.msra.mxu0 0.0
  %4626 = vmatprep.subr.mxu0 0.0
  %4627 = vmatpush1.msra.mxu0 0.0
  %4628 = vmatprep.subr.mxu0 0.0
  %4629 = vmatpush1.msra.mxu0 0.0
  %4630 = vmatprep.subr.mxu0 0.0
  %4631 = vmatpush1.msra.mxu0 0.0
  %4632 = vmatprep.subr.mxu0 0.0
  %4633 = vmatpush1.msra.mxu0 0.0
  %4634 = vmatprep.subr.mxu0 0.0
  %4635 = vmatpush1.msra.mxu0 0.0
  %4636 = vmatprep.subr.mxu0 0.0
  %4637 = vmatpush1.msra.mxu0 0.0
  %4638 = vmatprep.subr.mxu0 0.0
  %4639 = vmatpush1.msra.mxu0 0.0
  %4640 = vmatprep.subr.mxu0 0.0
  %4641 = vmatpush1.msra.mxu0 0.0
  %4642 = vmatprep.subr.mxu0 0.0
  %4643 = vmatpush1.msra.mxu0 0.0
  %4644 = vmatprep.subr.mxu0 0.0
  %4645 = vmatpush1.msra.mxu0 0.0
  %4646 = vmatprep.subr.mxu0 0.0
  %4647 = vmatpush1.msra.mxu0 0.0
  %4648 = vmatprep.subr.mxu0 0.0
  %4649 = vmatpush1.msra.mxu0 0.0
  %4650 = vmatprep.subr.mxu0 0.0
  %4651 = vmatpush1.msra.mxu0 0.0
  %4652 = vmatprep.subr.mxu0 0.0
  %4653 = vmatpush1.msra.mxu0 0.0
  %4654 = vmatprep.subr.mxu0 0.0
  %4655 = vmatpush1.msra.mxu0 0.0
  %4656 = vmatprep.subr.mxu0 0.0
  %4657 = vmatpush1.msra.mxu0 0.0
  %4658 = vmatprep.subr.mxu0 0.0
  %4659 = vmatpush1.msra.mxu0 0.0
  %4660 = vmatprep.subr.mxu0 0.0
  %4661 = vmatpush1.msra.mxu0 0.0
  %4662 = vmatprep.subr.mxu0 0.0
  %4663 = vmatpush1.msra.mxu0 0.0
  %4664 = vmatprep.subr.mxu0 0.0
  %4665 = vmatpush1.msra.mxu0 0.0
  %4666 = vmatprep.subr.mxu0 0.0
  %4667 = vmatpush1.msra.mxu0 0.0
  %4668 = vmatprep.subr.mxu0 0.0
  %4669 = vmatpush1.msra.mxu0 0.0
  %4670 = vmatprep.mubr.f32.mxu0 0.0
  %4671 = vmatmul.mubr.f32.gmra.mrb[0].mxu0 %v4604
  %v4672 = vpop.f32.mrb[0].mxu0
  %v4673 = vadd.f32 0.0, %v4672
  %v4674 = vpop.f32.mrb[0].mxu0
  %v4675 = vadd.f32 0.0, %v4674
  %4676 = vdwg.mxu0
  %4677 = vmatprep.subr.mxu0 %v4594
  %4678 = vmatpush1.msra.mxu0 %v4586
  %4679 = vmatprep.subr.mxu0 %v4595
  %4680 = vmatpush1.msra.mxu0 %v4587
  %4681 = vmatprep.subr.mxu0 %v4596
  %4682 = vmatpush1.msra.mxu0 %v4588
  %4683 = vmatprep.subr.mxu0 %v4597
  %4684 = vmatpush1.msra.mxu0 %v4589
  %4685 = vmatprep.subr.mxu0 %v4598
  %4686 = vmatpush1.msra.mxu0 %v4590
  %4687 = vmatprep.subr.mxu0 %v4599
  %4688 = vmatpush1.msra.mxu0 %v4591
  %4689 = vmatprep.subr.mxu0 %v4600
  %4690 = vmatpush1.msra.mxu0 %v4592
  %4691 = vmatprep.subr.mxu0 %v4601
  %4692 = vmatpush1.msra.mxu0 %v4593
  %4693 = vmatprep.subr.mxu0 0.0
  %4694 = vmatpush1.msra.mxu0 0.0
  %4695 = vmatprep.subr.mxu0 0.0
  %4696 = vmatpush1.msra.mxu0 0.0
  %4697 = vmatprep.subr.mxu0 0.0
  %4698 = vmatpush1.msra.mxu0 0.0
  %4699 = vmatprep.subr.mxu0 0.0
  %4700 = vmatpush1.msra.mxu0 0.0
  %4701 = vmatprep.subr.mxu0 0.0
  %4702 = vmatpush1.msra.mxu0 0.0
  %4703 = vmatprep.subr.mxu0 0.0
  %4704 = vmatpush1.msra.mxu0 0.0
  %4705 = vmatprep.subr.mxu0 0.0
  %4706 = vmatpush1.msra.mxu0 0.0
  %4707 = vmatprep.subr.mxu0 0.0
  %4708 = vmatpush1.msra.mxu0 0.0
  %4709 = vmatprep.subr.mxu0 0.0
  %4710 = vmatpush1.msra.mxu0 0.0
  %4711 = vmatprep.subr.mxu0 0.0
  %4712 = vmatpush1.msra.mxu0 0.0
  %4713 = vmatprep.subr.mxu0 0.0
  %4714 = vmatpush1.msra.mxu0 0.0
  %4715 = vmatprep.subr.mxu0 0.0
  %4716 = vmatpush1.msra.mxu0 0.0
  %4717 = vmatprep.subr.mxu0 0.0
  %4718 = vmatpush1.msra.mxu0 0.0
  %4719 = vmatprep.subr.mxu0 0.0
  %4720 = vmatpush1.msra.mxu0 0.0
  %4721 = vmatprep.subr.mxu0 0.0
  %4722 = vmatpush1.msra.mxu0 0.0
  %4723 = vmatprep.subr.mxu0 0.0
  %4724 = vmatpush1.msra.mxu0 0.0
  %4725 = vmatprep.subr.mxu0 0.0
  %4726 = vmatpush1.msra.mxu0 0.0
  %4727 = vmatprep.subr.mxu0 0.0
  %4728 = vmatpush1.msra.mxu0 0.0
  %4729 = vmatprep.subr.mxu0 0.0
  %4730 = vmatpush1.msra.mxu0 0.0
  %4731 = vmatprep.subr.mxu0 0.0
  %4732 = vmatpush1.msra.mxu0 0.0
  %4733 = vmatprep.subr.mxu0 0.0
  %4734 = vmatpush1.msra.mxu0 0.0
  %4735 = vmatprep.subr.mxu0 0.0
  %4736 = vmatpush1.msra.mxu0 0.0
  %4737 = vmatprep.subr.mxu0 0.0
  %4738 = vmatpush1.msra.mxu0 0.0
  %4739 = vmatprep.subr.mxu0 0.0
  %4740 = vmatpush1.msra.mxu0 0.0
  %4741 = vmatprep.mubr.f32.mxu0 0.0
  %4742 = vmatmul.mubr.f32.gmra.mrb[0].mxu0 %v4604
  %v4743 = vpop.f32.mrb[0].mxu0
  %v4744 = vadd.f32 0.0, %v4743
  %v4745 = vpop.f32.mrb[0].mxu0
  %v4746 = vadd.f32 0.0, %v4745
  %4747 = vdwg.mxu0
  %4748 = vmatprep.subr.mxu0 %v4530
  %4749 = vmatpush1.msra.mxu0 %v4504
  %4750 = vmatprep.subr.mxu0 %v4535
  %4751 = vmatpush1.msra.mxu0 %v4505
  %4752 = vmatprep.subr.mxu0 %v4539
  %4753 = vmatpush1.msra.mxu0 %v4506
  %4754 = vmatprep.subr.mxu0 %v4543
  %4755 = vmatpush1.msra.mxu0 %v4507
  %4756 = vmatprep.subr.mxu0 %v4547
  %4757 = vmatpush1.msra.mxu0 %v4508
  %4758 = vmatprep.subr.mxu0 %v4551
  %4759 = vmatpush1.msra.mxu0 %v4509
  %4760 = vmatprep.subr.mxu0 %v4555
  %4761 = vmatpush1.msra.mxu0 %v4510
  %4762 = vmatprep.subr.mxu0 %v4559
  %4763 = vmatpush1.msra.mxu0 %v4511
  %4764 = vmatprep.subr.mxu0 0.0
  %4765 = vmatpush1.msra.mxu0 0.0
  %4766 = vmatprep.subr.mxu0 0.0
  %4767 = vmatpush1.msra.mxu0 0.0
  %4768 = vmatprep.subr.mxu0 0.0
  %4769 = vmatpush1.msra.mxu0 0.0
  %4770 = vmatprep.subr.mxu0 0.0
  %4771 = vmatpush1.msra.mxu0 0.0
  %4772 = vmatprep.subr.mxu0 0.0
  %4773 = vmatpush1.msra.mxu0 0.0
  %4774 = vmatprep.subr.mxu0 0.0
  %4775 = vmatpush1.msra.mxu0 0.0
  %4776 = vmatprep.subr.mxu0 0.0
  %4777 = vmatpush1.msra.mxu0 0.0
  %4778 = vmatprep.subr.mxu0 0.0
  %4779 = vmatpush1.msra.mxu0 0.0
  %4780 = vmatprep.subr.mxu0 0.0
  %4781 = vmatpush1.msra.mxu0 0.0
  %4782 = vmatprep.subr.mxu0 0.0
  %4783 = vmatpush1.msra.mxu0 0.0
  %4784 = vmatprep.subr.mxu0 0.0
  %4785 = vmatpush1.msra.mxu0 0.0
  %4786 = vmatprep.subr.mxu0 0.0
  %4787 = vmatpush1.msra.mxu0 0.0
  %4788 = vmatprep.subr.mxu0 0.0
  %4789 = vmatpush1.msra.mxu0 0.0
  %4790 = vmatprep.subr.mxu0 0.0
  %4791 = vmatpush1.msra.mxu0 0.0
  %4792 = vmatprep.subr.mxu0 0.0
  %4793 = vmatpush1.msra.mxu0 0.0
  %4794 = vmatprep.subr.mxu0 0.0
  %4795 = vmatpush1.msra.mxu0 0.0
  %4796 = vmatprep.subr.mxu0 0.0
  %4797 = vmatpush1.msra.mxu0 0.0
  %4798 = vmatprep.subr.mxu0 0.0
  %4799 = vmatpush1.msra.mxu0 0.0
  %4800 = vmatprep.subr.mxu0 0.0
  %4801 = vmatpush1.msra.mxu0 0.0
  %4802 = vmatprep.subr.mxu0 0.0
  %4803 = vmatpush1.msra.mxu0 0.0
  %4804 = vmatprep.subr.mxu0 0.0
  %4805 = vmatpush1.msra.mxu0 0.0
  %4806 = vmatprep.subr.mxu0 0.0
  %4807 = vmatpush1.msra.mxu0 0.0
  %4808 = vmatprep.subr.mxu0 0.0
  %4809 = vmatpush1.msra.mxu0 0.0
  %4810 = vmatprep.subr.mxu0 0.0
  %4811 = vmatpush1.msra.mxu0 0.0
  %4812 = vmatprep.mubr.f32.mxu0 0.0
  %4813 = vmatmul.mubr.f32.gmra.mrb[0].mxu0 %v4604
  %v4814 = vpop.f32.mrb[0].mxu0
  %v4815 = vadd.f32 0.0, %v4814
  %v4816 = vpop.f32.mrb[0].mxu0
  %v4817 = vadd.f32 0.0, %v4816
  %4818 = vdwg.mxu0
  %4819 = vmatprep.subr.mxu0 0.0
  %4820 = vmatpush1.msra.mxu0 %v4533
  %4821 = vmatprep.subr.mxu0 0.0
  %4822 = vmatpush1.msra.mxu0 %v4537
  %4823 = vmatprep.subr.mxu0 0.0
  %4824 = vmatpush1.msra.mxu0 %v4541
  %4825 = vmatprep.subr.mxu0 0.0
  %4826 = vmatpush1.msra.mxu0 %v4545
  %4827 = vmatprep.subr.mxu0 0.0
  %4828 = vmatpush1.msra.mxu0 %v4549
  %4829 = vmatprep.subr.mxu0 0.0
  %4830 = vmatpush1.msra.mxu0 %v4553
  %4831 = vmatprep.subr.mxu0 0.0
  %4832 = vmatpush1.msra.mxu0 %v4557
  %4833 = vmatprep.subr.mxu0 0.0
  %4834 = vmatpush1.msra.mxu0 %v4561
  %4835 = vmatprep.subr.mxu0 0.0
  %4836 = vmatpush1.msra.mxu0 0.0
  %4837 = vmatprep.subr.mxu0 0.0
  %4838 = vmatpush1.msra.mxu0 0.0
  %4839 = vmatprep.subr.mxu0 0.0
  %4840 = vmatpush1.msra.mxu0 0.0
  %4841 = vmatprep.subr.mxu0 0.0
  %4842 = vmatpush1.msra.mxu0 0.0
  %4843 = vmatprep.subr.mxu0 0.0
  %4844 = vmatpush1.msra.mxu0 0.0
  %4845 = vmatprep.subr.mxu0 0.0
  %4846 = vmatpush1.msra.mxu0 0.0
  %4847 = vmatprep.subr.mxu0 0.0
  %4848 = vmatpush1.msra.mxu0 0.0
  %4849 = vmatprep.subr.mxu0 0.0
  %4850 = vmatpush1.msra.mxu0 0.0
  %4851 = vmatprep.subr.mxu0 0.0
  %4852 = vmatpush1.msra.mxu0 0.0
  %4853 = vmatprep.subr.mxu0 0.0
  %4854 = vmatpush1.msra.mxu0 0.0
  %4855 = vmatprep.subr.mxu0 0.0
  %4856 = vmatpush1.msra.mxu0 0.0
  %4857 = vmatprep.subr.mxu0 0.0
  %4858 = vmatpush1.msra.mxu0 0.0
  %4859 = vmatprep.subr.mxu0 0.0
  %4860 = vmatpush1.msra.mxu0 0.0
  %4861 = vmatprep.subr.mxu0 0.0
  %4862 = vmatpush1.msra.mxu0 0.0
  %4863 = vmatprep.subr.mxu0 0.0
  %4864 = vmatpush1.msra.mxu0 0.0
  %4865 = vmatprep.subr.mxu0 0.0
  %4866 = vmatpush1.msra.mxu0 0.0
  %4867 = vmatprep.subr.mxu0 0.0
  %4868 = vmatpush1.msra.mxu0 0.0
  %4869 = vmatprep.subr.mxu0 0.0
  %4870 = vmatpush1.msra.mxu0 0.0
  %4871 = vmatprep.subr.mxu0 0.0
  %4872 = vmatpush1.msra.mxu0 0.0
  %4873 = vmatprep.subr.mxu0 0.0
  %4874 = vmatpush1.msra.mxu0 0.0
  %4875 = vmatprep.subr.mxu0 0.0
  %4876 = vmatpush1.msra.mxu0 0.0
  %4877 = vmatprep.subr.mxu0 0.0
  %4878 = vmatpush1.msra.mxu0 0.0
  %4879 = vmatprep.subr.mxu0 0.0
  %4880 = vmatpush1.msra.mxu0 0.0
  %4881 = vmatprep.subr.mxu0 0.0
  %4882 = vmatpush1.msra.mxu0 0.0
  %4883 = vmatprep.mubr.f32.mxu0 0.0
  %4884 = vmatmul.mubr.f32.gmra.mrb[0].mxu0 %v4604
  %v4885 = vpop.f32.mrb[0].mxu0
  %v4886 = vadd.f32 0.0, %v4885
  %v4887 = vpop.f32.mrb[0].mxu0
  %4888 = vdwg.mxu0
  %v4889 = vld [vmem:[%s10] sm:$0xff]
  %v4890 = vld [vmem:[%s10 + $0x8] sm:$0xff]
  %v4891 = vld [vmem:[%s10 + $0x10] sm:$0xff]
  %v4892 = vld [vmem:[%s10 + $0x18] sm:$0xff]
  %v4893 = vld [vmem:[%s10 + $0x20] sm:$0xff]
  %v4894 = vld [vmem:[%s10 + $0x28] sm:$0xff]
  %v4895 = vld [vmem:[%s10 + $0x30] sm:$0xff]
  %v4896 = vld [vmem:[%s10 + $0x38] sm:$0xff]
  %v4897 = vld [vmem:[%s10 + $0x40] sm:$0xff]
  %v4898 = vld [vmem:[%s10 + $0x48] sm:$0xff]
  %v4899 = vld [vmem:[%s10 + $0x50] sm:$0xff]
  %v4900 = vld [vmem:[%s10 + $0x58] sm:$0xff]
  %v4901 = vld [vmem:[%s10 + $0x60] sm:$0xff]
  %v4902 = vld [vmem:[%s10 + $0x68] sm:$0xff]
  %v4903 = vld [vmem:[%s10 + $0x70] sm:$0xff]
  %v4904 = vld [vmem:[%s10 + $0x78] sm:$0xff]
  %v4905 = vld [vmem:[%s10 + $0x80] sm:$0xff]
  %v4906 = vld [vmem:[%s10 + $0x88] sm:$0xff]
  %v4907 = vld [vmem:[%s10 + $0x90] sm:$0xff]
  %v4908 = vld [vmem:[%s10 + $0x98] sm:$0xff]
  %v4909 = vld [vmem:[%s10 + $0xa0] sm:$0xff]
  %v4910 = vld [vmem:[%s10 + $0xa8] sm:$0xff]
  %v4911 = vld [vmem:[%s10 + $0xb0] sm:$0xff]
  %v4912 = vld [vmem:[%s10 + $0xb8] sm:$0xff]
  %v4913 = vld [vmem:[%s10 + $0xc0] sm:$0xff]
  %v4914 = vld [vmem:[%s10 + $0xc8] sm:$0xff]
  %v4915 = vld [vmem:[%s10 + $0xd0] sm:$0xff]
  %v4916 = vld [vmem:[%s10 + $0xd8] sm:$0xff]
  %v4917 = vld [vmem:[%s10 + $0xe0] sm:$0xff]
  %v4918 = vld [vmem:[%s10 + $0xe8] sm:$0xff]
  %v4919 = vld [vmem:[%s10 + $0xf0] sm:$0xff]
  %v4920 = vld [vmem:[%s10 + $0xf8] sm:$0xff]
  %v4921 = vld [vmem:[%s10 + $0x100] sm:$0xff]
  %v4922 = vld [vmem:[%s10 + $0x108] sm:$0xff]
  %v4923 = vld [vmem:[%s10 + $0x110] sm:$0xff]
  %v4924 = vld [vmem:[%s10 + $0x118] sm:$0xff]
  %v4925 = vld [vmem:[%s10 + $0x120] sm:$0xff]
  %v4926 = vld [vmem:[%s10 + $0x128] sm:$0xff]
  %v4927 = vld [vmem:[%s10 + $0x130] sm:$0xff]
  %v4928 = vld [vmem:[%s10 + $0x138] sm:$0xff]
  %v4929 = vld [vmem:[%s10 + $0x140] sm:$0xff]
  %v4930 = vld [vmem:[%s10 + $0x148] sm:$0xff]
  %v4931 = vld [vmem:[%s10 + $0x150] sm:$0xff]
  %v4932 = vld [vmem:[%s10 + $0x158] sm:$0xff]
  %v4933 = vld [vmem:[%s10 + $0x160] sm:$0xff]
  %v4934 = vld [vmem:[%s10 + $0x168] sm:$0xff]
  %v4935 = vld [vmem:[%s10 + $0x170] sm:$0xff]
  %v4936 = vld [vmem:[%s10 + $0x178] sm:$0xff]
  %v4937 = vld [vmem:[%s10 + $0x180] sm:$0xff]
  %v4938 = vld [vmem:[%s10 + $0x188] sm:$0xff]
  %v4939 = vld [vmem:[%s10 + $0x190] sm:$0xff]
  %v4940 = vld [vmem:[%s10 + $0x198] sm:$0xff]
  %v4941 = vld [vmem:[%s10 + $0x1a0] sm:$0xff]
  %v4942 = vld [vmem:[%s10 + $0x1a8] sm:$0xff]
  %v4943 = vld [vmem:[%s10 + $0x1b0] sm:$0xff]
  %v4944 = vld [vmem:[%s10 + $0x1b8] sm:$0xff]
  %v4945 = vld [vmem:[%s10 + $0x1c0] sm:$0xff]
  %v4946 = vld [vmem:[%s10 + $0x1c8] sm:$0xff]
  %v4947 = vld [vmem:[%s10 + $0x1d0] sm:$0xff]
  %v4948 = vld [vmem:[%s10 + $0x1d8] sm:$0xff]
  %v4949 = vld [vmem:[%s10 + $0x1e0] sm:$0xff]
  %v4950 = vld [vmem:[%s10 + $0x1e8] sm:$0xff]
  %v4951 = vld [vmem:[%s10 + $0x1f0] sm:$0xff]
  %v4952 = vld [vmem:[%s10 + $0x1f8] sm:$0xff]
  %v4953 = vld [vmem:[%s10 + $0x200] sm:$0xff]
  %v4954 = vld [vmem:[%s10 + $0x208] sm:$0xff]
  %v4955 = vld [vmem:[%s10 + $0x210] sm:$0xff]
  %v4956 = vld [vmem:[%s10 + $0x218] sm:$0xff]
  %v4957 = vld [vmem:[%s10 + $0x220] sm:$0xff]
  %v4958 = vld [vmem:[%s10 + $0x228] sm:$0xff]
  %v4959 = vld [vmem:[%s10 + $0x230] sm:$0xff]
  %v4960 = vld [vmem:[%s10 + $0x238] sm:$0xff]
  %v4961 = vld [vmem:[%s10 + $0x240] sm:$0xff]
  %v4962 = vld [vmem:[%s10 + $0x248] sm:$0xff]
  %v4963 = vld [vmem:[%s10 + $0x250] sm:$0xff]
  %v4964 = vld [vmem:[%s10 + $0x258] sm:$0xff]
  %v4965 = vld [vmem:[%s10 + $0x260] sm:$0xff]
  %v4966 = vld [vmem:[%s10 + $0x268] sm:$0xff]
  %v4967 = vld [vmem:[%s10 + $0x270] sm:$0xff]
  %v4968 = vld [vmem:[%s10 + $0x278] sm:$0xff]
  %v4969 = vld [vmem:[%s10 + $0x280] sm:$0xff]
  %v4970 = vld [vmem:[%s10 + $0x288] sm:$0xff]
  %v4971 = vld [vmem:[%s10 + $0x290] sm:$0xff]
  %v4972 = vld [vmem:[%s10 + $0x298] sm:$0xff]
  %v4973 = vld [vmem:[%s10 + $0x2a0] sm:$0xff]
  %v4974 = vld [vmem:[%s10 + $0x2a8] sm:$0xff]
  %v4975 = vld [vmem:[%s10 + $0x2b0] sm:$0xff]
  %v4976 = vld [vmem:[%s10 + $0x2b8] sm:$0xff]
  %v4977 = vld [vmem:[%s10 + $0x2c0] sm:$0xff]
  %v4978 = vld [vmem:[%s10 + $0x2c8] sm:$0xff]
  %v4979 = vld [vmem:[%s10 + $0x2d0] sm:$0xff]
  %v4980 = vld [vmem:[%s10 + $0x2d8] sm:$0xff]
  %v4981 = vld [vmem:[%s10 + $0x2e0] sm:$0xff]
  %v4982 = vld [vmem:[%s10 + $0x2e8] sm:$0xff]
  %v4983 = vld [vmem:[%s10 + $0x2f0] sm:$0xff]
  %v4984 = vld [vmem:[%s10 + $0x2f8] sm:$0xff]
  %v4985 = vld [vmem:[%s10 + $0x300] sm:$0xff]
  %v4986 = vld [vmem:[%s10 + $0x308] sm:$0xff]
  %v4987 = vld [vmem:[%s10 + $0x310] sm:$0xff]
  %v4988 = vld [vmem:[%s10 + $0x318] sm:$0xff]
  %v4989 = vld [vmem:[%s11] sm:$0x1]
  %v4991 = vlaneseq
  %v4992 = vshrl.u32 %v4991, 7
  %v4993 = vsub.s32 0, %v4992
  %v4994 = vrot.slane %v4989, %v4993
  %v4997 = vsel %vm671, %v4886, 0
  %4999 = vmatprep.subr.mxu0 0.0
  %5000 = vmatpush1.msra.mxu0 %v4889
  %5001 = vmatprep.subr.mxu0 0.0
  %5002 = vmatpush1.msra.mxu0 %v4890
  %5003 = vmatprep.subr.mxu0 0.0
  %5004 = vmatpush1.msra.mxu0 %v4891
  %5005 = vmatprep.subr.mxu0 0.0
  %5006 = vmatpush1.msra.mxu0 %v4892
  %5007 = vmatprep.subr.mxu0 0.0
  %5008 = vmatpush1.msra.mxu0 %v4893
  %5009 = vmatprep.subr.mxu0 0.0
  %5010 = vmatpush1.msra.mxu0 %v4894
  %5011 = vmatprep.subr.mxu0 0.0
  %5012 = vmatpush1.msra.mxu0 %v4895
  %5013 = vmatprep.subr.mxu0 0.0
  %5014 = vmatpush1.msra.mxu0 %v4896
  %5015 = vmatprep.subr.mxu0 0.0
  %5016 = vmatpush1.msra.mxu0 %v4897
  %5017 = vmatprep.subr.mxu0 0.0
  %5018 = vmatpush1.msra.mxu0 %v4898
  %5019 = vmatprep.subr.mxu0 0.0
  %5020 = vmatpush1.msra.mxu0 %v4899
  %5021 = vmatprep.subr.mxu0 0.0
  %5022 = vmatpush1.msra.mxu0 %v4900
  %5023 = vmatprep.subr.mxu0 0.0
  %5024 = vmatpush1.msra.mxu0 %v4901
  %5025 = vmatprep.subr.mxu0 0.0
  %5026 = vmatpush1.msra.mxu0 %v4902
  %5027 = vmatprep.subr.mxu0 0.0
  %5028 = vmatpush1.msra.mxu0 %v4903
  %5029 = vmatprep.subr.mxu0 0.0
  %5030 = vmatpush1.msra.mxu0 %v4904
  %5031 = vmatprep.subr.mxu0 0.0
  %5032 = vmatpush1.msra.mxu0 %v4905
  %5033 = vmatprep.subr.mxu0 0.0
  %5034 = vmatpush1.msra.mxu0 %v4906
  %5035 = vmatprep.subr.mxu0 0.0
  %5036 = vmatpush1.msra.mxu0 %v4907
  %5037 = vmatprep.subr.mxu0 0.0
  %5038 = vmatpush1.msra.mxu0 %v4908
  %5039 = vmatprep.subr.mxu0 0.0
  %5040 = vmatpush1.msra.mxu0 %v4909
  %5041 = vmatprep.subr.mxu0 0.0
  %5042 = vmatpush1.msra.mxu0 %v4910
  %5043 = vmatprep.subr.mxu0 0.0
  %5044 = vmatpush1.msra.mxu0 %v4911
  %5045 = vmatprep.subr.mxu0 0.0
  %5046 = vmatpush1.msra.mxu0 %v4912
  %5047 = vmatprep.subr.mxu0 0.0
  %5048 = vmatpush1.msra.mxu0 %v4913
  %5049 = vmatprep.subr.mxu0 0.0
  %5050 = vmatpush1.msra.mxu0 %v4914
  %5051 = vmatprep.subr.mxu0 0.0
  %5052 = vmatpush1.msra.mxu0 %v4915
  %5053 = vmatprep.subr.mxu0 0.0
  %5054 = vmatpush1.msra.mxu0 %v4916
  %5055 = vmatprep.subr.mxu0 0.0
  %5056 = vmatpush1.msra.mxu0 %v4917
  %5057 = vmatprep.subr.mxu0 0.0
  %5058 = vmatpush1.msra.mxu0 %v4918
  %5059 = vmatprep.subr.mxu0 0.0
  %5060 = vmatpush1.msra.mxu0 %v4919
  %5061 = vmatprep.subr.mxu0 0.0
  %5062 = vmatpush1.msra.mxu0 %v4920
  %5063 = vmatprep.mubr.f32.mxu0 %v4675
  %5064 = vmatmul.mubr.f32.gmra.mrb[0].mxu0 %v4673
  %v5065 = vpop.f32.mrb[0].mxu0
  %v5066 = vadd.f32 %v4994, %v5065
  %v5067 = vpop.f32.mrb[0].mxu0
  %5068 = vdwg.mxu0
  %5069 = vmatprep.subr.mxu0 0.0
  %5070 = vmatpush1.msra.mxu0 %v4921
  %5071 = vmatprep.subr.mxu0 0.0
  %5072 = vmatpush1.msra.mxu0 %v4922
  %5073 = vmatprep.subr.mxu0 0.0
  %5074 = vmatpush1.msra.mxu0 %v4923
  %5075 = vmatprep.subr.mxu0 0.0
  %5076 = vmatpush1.msra.mxu0 %v4924
  %5077 = vmatprep.subr.mxu0 0.0
  %5078 = vmatpush1.msra.mxu0 %v4925
  %5079 = vmatprep.subr.mxu0 0.0
  %5080 = vmatpush1.msra.mxu0 %v4926
  %5081 = vmatprep.subr.mxu0 0.0
  %5082 = vmatpush1.msra.mxu0 %v4927
  %5083 = vmatprep.subr.mxu0 0.0
  %5084 = vmatpush1.msra.mxu0 %v4928
  %5085 = vmatprep.subr.mxu0 0.0
  %5086 = vmatpush1.msra.mxu0 %v4929
  %5087 = vmatprep.subr.mxu0 0.0
  %5088 = vmatpush1.msra.mxu0 %v4930
  %5089 = vmatprep.subr.mxu0 0.0
  %5090 = vmatpush1.msra.mxu0 %v4931
  %5091 = vmatprep.subr.mxu0 0.0
  %5092 = vmatpush1.msra.mxu0 %v4932
  %5093 = vmatprep.subr.mxu0 0.0
  %5094 = vmatpush1.msra.mxu0 %v4933
  %5095 = vmatprep.subr.mxu0 0.0
  %5096 = vmatpush1.msra.mxu0 %v4934
  %5097 = vmatprep.subr.mxu0 0.0
  %5098 = vmatpush1.msra.mxu0 %v4935
  %5099 = vmatprep.subr.mxu0 0.0
  %5100 = vmatpush1.msra.mxu0 %v4936
  %5101 = vmatprep.subr.mxu0 0.0
  %5102 = vmatpush1.msra.mxu0 %v4937
  %5103 = vmatprep.subr.mxu0 0.0
  %5104 = vmatpush1.msra.mxu0 %v4938
  %5105 = vmatprep.subr.mxu0 0.0
  %5106 = vmatpush1.msra.mxu0 %v4939
  %5107 = vmatprep.subr.mxu0 0.0
  %5108 = vmatpush1.msra.mxu0 %v4940
  %5109 = vmatprep.subr.mxu0 0.0
  %5110 = vmatpush1.msra.mxu0 %v4941
  %5111 = vmatprep.subr.mxu0 0.0
  %5112 = vmatpush1.msra.mxu0 %v4942
  %5113 = vmatprep.subr.mxu0 0.0
  %5114 = vmatpush1.msra.mxu0 %v4943
  %5115 = vmatprep.subr.mxu0 0.0
  %5116 = vmatpush1.msra.mxu0 %v4944
  %5117 = vmatprep.subr.mxu0 0.0
  %5118 = vmatpush1.msra.mxu0 %v4945
  %5119 = vmatprep.subr.mxu0 0.0
  %5120 = vmatpush1.msra.mxu0 %v4946
  %5121 = vmatprep.subr.mxu0 0.0
  %5122 = vmatpush1.msra.mxu0 %v4947
  %5123 = vmatprep.subr.mxu0 0.0
  %5124 = vmatpush1.msra.mxu0 %v4948
  %5125 = vmatprep.subr.mxu0 0.0
  %5126 = vmatpush1.msra.mxu0 %v4949
  %5127 = vmatprep.subr.mxu0 0.0
  %5128 = vmatpush1.msra.mxu0 %v4950
  %5129 = vmatprep.subr.mxu0 0.0
  %5130 = vmatpush1.msra.mxu0 %v4951
  %5131 = vmatprep.subr.mxu0 0.0
  %5132 = vmatpush1.msra.mxu0 %v4952
  %5133 = vmatprep.mubr.f32.mxu0 %v4746
  %5134 = vmatmul.mubr.f32.gmra.mrb[0].mxu0 %v4744
  %v5135 = vpop.f32.mrb[0].mxu0
  %v5136 = vadd.f32 %v5066, %v5135
  %v5137 = vpop.f32.mrb[0].mxu0
  %5138 = vdwg.mxu0
  %5139 = vmatprep.subr.mxu0 0.0
  %5140 = vmatpush1.msra.mxu0 %v4953
  %5141 = vmatprep.subr.mxu0 0.0
  %5142 = vmatpush1.msra.mxu0 %v4954
  %5143 = vmatprep.subr.mxu0 0.0
  %5144 = vmatpush1.msra.mxu0 %v4955
  %5145 = vmatprep.subr.mxu0 0.0
  %5146 = vmatpush1.msra.mxu0 %v4956
  %5147 = vmatprep.subr.mxu0 0.0
  %5148 = vmatpush1.msra.mxu0 %v4957
  %5149 = vmatprep.subr.mxu0 0.0
  %5150 = vmatpush1.msra.mxu0 %v4958
  %5151 = vmatprep.subr.mxu0 0.0
  %5152 = vmatpush1.msra.mxu0 %v4959
  %5153 = vmatprep.subr.mxu0 0.0
  %5154 = vmatpush1.msra.mxu0 %v4960
  %5155 = vmatprep.subr.mxu0 0.0
  %5156 = vmatpush1.msra.mxu0 %v4961
  %5157 = vmatprep.subr.mxu0 0.0
  %5158 = vmatpush1.msra.mxu0 %v4962
  %5159 = vmatprep.subr.mxu0 0.0
  %5160 = vmatpush1.msra.mxu0 %v4963
  %5161 = vmatprep.subr.mxu0 0.0
  %5162 = vmatpush1.msra.mxu0 %v4964
  %5163 = vmatprep.subr.mxu0 0.0
  %5164 = vmatpush1.msra.mxu0 %v4965
  %5165 = vmatprep.subr.mxu0 0.0
  %5166 = vmatpush1.msra.mxu0 %v4966
  %5167 = vmatprep.subr.mxu0 0.0
  %5168 = vmatpush1.msra.mxu0 %v4967
  %5169 = vmatprep.subr.mxu0 0.0
  %5170 = vmatpush1.msra.mxu0 %v4968
  %5171 = vmatprep.subr.mxu0 0.0
  %5172 = vmatpush1.msra.mxu0 %v4969
  %5173 = vmatprep.subr.mxu0 0.0
  %5174 = vmatpush1.msra.mxu0 %v4970
  %5175 = vmatprep.subr.mxu0 0.0
  %5176 = vmatpush1.msra.mxu0 %v4971
  %5177 = vmatprep.subr.mxu0 0.0
  %5178 = vmatpush1.msra.mxu0 %v4972
  %5179 = vmatprep.subr.mxu0 0.0
  %5180 = vmatpush1.msra.mxu0 %v4973
  %5181 = vmatprep.subr.mxu0 0.0
  %5182 = vmatpush1.msra.mxu0 %v4974
  %5183 = vmatprep.subr.mxu0 0.0
  %5184 = vmatpush1.msra.mxu0 %v4975
  %5185 = vmatprep.subr.mxu0 0.0
  %5186 = vmatpush1.msra.mxu0 %v4976
  %5187 = vmatprep.subr.mxu0 0.0
  %5188 = vmatpush1.msra.mxu0 %v4977
  %5189 = vmatprep.subr.mxu0 0.0
  %5190 = vmatpush1.msra.mxu0 %v4978
  %5191 = vmatprep.subr.mxu0 0.0
  %5192 = vmatpush1.msra.mxu0 %v4979
  %5193 = vmatprep.subr.mxu0 0.0
  %5194 = vmatpush1.msra.mxu0 %v4980
  %5195 = vmatprep.subr.mxu0 0.0
  %5196 = vmatpush1.msra.mxu0 %v4981
  %5197 = vmatprep.subr.mxu0 0.0
  %5198 = vmatpush1.msra.mxu0 %v4982
  %5199 = vmatprep.subr.mxu0 0.0
  %5200 = vmatpush1.msra.mxu0 %v4983
  %5201 = vmatprep.subr.mxu0 0.0
  %5202 = vmatpush1.msra.mxu0 %v4984
  %5203 = vmatprep.mubr.f32.mxu0 %v4817
  %5204 = vmatmul.mubr.f32.gmra.mrb[0].mxu0 %v4815
  %v5205 = vpop.f32.mrb[0].mxu0
  %v5206 = vadd.f32 %v5136, %v5205
  %v5207 = vpop.f32.mrb[0].mxu0
  %5208 = vdwg.mxu0
  %5209 = vmatprep.subr.mxu0 0.0
  %5210 = vmatpush1.msra.mxu0 %v4985
  %5211 = vmatprep.subr.mxu0 0.0
  %5212 = vmatpush1.msra.mxu0 %v4986
  %5213 = vmatprep.subr.mxu0 0.0
  %5214 = vmatpush1.msra.mxu0 %v4987
  %5215 = vmatprep.subr.mxu0 0.0
  %5216 = vmatpush1.msra.mxu0 %v4988
  %5217 = vmatprep.subr.mxu0 0.0
  %5218 = vmatpush1.msra.mxu0 0.0
  %5219 = vmatprep.subr.mxu0 0.0
  %5220 = vmatpush1.msra.mxu0 0.0
  %5221 = vmatprep.subr.mxu0 0.0
  %5222 = vmatpush1.msra.mxu0 0.0
  %5223 = vmatprep.subr.mxu0 0.0
  %5224 = vmatpush1.msra.mxu0 0.0
  %5225 = vmatprep.subr.mxu0 0.0
  %5226 = vmatpush1.msra.mxu0 0.0
  %5227 = vmatprep.subr.mxu0 0.0
  %5228 = vmatpush1.msra.mxu0 0.0
  %5229 = vmatprep.subr.mxu0 0.0
  %5230 = vmatpush1.msra.mxu0 0.0
  %5231 = vmatprep.subr.mxu0 0.0
  %5232 = vmatpush1.msra.mxu0 0.0
  %5233 = vmatprep.subr.mxu0 0.0
  %5234 = vmatpush1.msra.mxu0 0.0
  %5235 = vmatprep.subr.mxu0 0.0
  %5236 = vmatpush1.msra.mxu0 0.0
  %5237 = vmatprep.subr.mxu0 0.0
  %5238 = vmatpush1.msra.mxu0 0.0
  %5239 = vmatprep.subr.mxu0 0.0
  %5240 = vmatpush1.msra.mxu0 0.0
  %5241 = vmatprep.subr.mxu0 0.0
  %5242 = vmatpush1.msra.mxu0 0.0
  %5243 = vmatprep.subr.mxu0 0.0
  %5244 = vmatpush1.msra.mxu0 0.0
  %5245 = vmatprep.subr.mxu0 0.0
  %5246 = vmatpush1.msra.mxu0 0.0
  %5247 = vmatprep.subr.mxu0 0.0
  %5248 = vmatpush1.msra.mxu0 0.0
  %5249 = vmatprep.subr.mxu0 0.0
  %5250 = vmatpush1.msra.mxu0 0.0
  %5251 = vmatprep.subr.mxu0 0.0
  %5252 = vmatpush1.msra.mxu0 0.0
  %5253 = vmatprep.subr.mxu0 0.0
  %5254 = vmatpush1.msra.mxu0 0.0
  %5255 = vmatprep.subr.mxu0 0.0
  %5256 = vmatpush1.msra.mxu0 0.0
  %5257 = vmatprep.subr.mxu0 0.0
  %5258 = vmatpush1.msra.mxu0 0.0
  %5259 = vmatprep.subr.mxu0 0.0
  %5260 = vmatpush1.msra.mxu0 0.0
  %5261 = vmatprep.subr.mxu0 0.0
  %5262 = vmatpush1.msra.mxu0 0.0
  %5263 = vmatprep.subr.mxu0 0.0
  %5264 = vmatpush1.msra.mxu0 0.0
  %5265 = vmatprep.subr.mxu0 0.0
  %5266 = vmatpush1.msra.mxu0 0.0
  %5267 = vmatprep.subr.mxu0 0.0
  %5268 = vmatpush1.msra.mxu0 0.0
  %5269 = vmatprep.subr.mxu0 0.0
  %5270 = vmatpush1.msra.mxu0 0.0
  %5271 = vmatprep.subr.mxu0 0.0
  %5272 = vmatpush1.msra.mxu0 0.0
  %5273 = vmatprep.mubr.f32.mxu0 0.0
  %5274 = vmatmul.mubr.f32.gmra.mrb[0].mxu0 %v4997
  %v5275 = vpop.f32.mrb[0].mxu0
  %v5276 = vadd.f32 %v5206, %v5275
  %v5277 = vpop.f32.mrb[0].mxu0
  %5278 = vdwg.mxu0
  %v5279 = vmax.f32 %v5276, 0.0
  %v5280 = vld [vmem:[%s12] sm:$0xff]
  %v5281 = vld [vmem:[%s12 + $0x8] sm:$0xff]
  %v5282 = vld [vmem:[%s12 + $0x10] sm:$0xff]
  %v5283 = vld [vmem:[%s12 + $0x18] sm:$0xff]
  %v5284 = vld [vmem:[%s12 + $0x20] sm:$0xff]
  %v5285 = vld [vmem:[%s12 + $0x28] sm:$0xff]
  %v5286 = vld [vmem:[%s12 + $0x30] sm:$0xff]
  %v5287 = vld [vmem:[%s12 + $0x38] sm:$0xff]
  %v5288 = vld [vmem:[%s12 + $0x40] sm:$0xff]
  %v5289 = vld [vmem:[%s12 + $0x48] sm:$0xff]
  %v5290 = vld [vmem:[%s12 + $0x50] sm:$0xff]
  %v5291 = vld [vmem:[%s12 + $0x58] sm:$0xff]
  %v5292 = vld [vmem:[%s12 + $0x60] sm:$0xff]
  %v5293 = vld [vmem:[%s12 + $0x68] sm:$0xff]
  %v5294 = vld [vmem:[%s12 + $0x70] sm:$0xff]
  %v5295 = vld [vmem:[%s13] sm:$0x1]
  %v5297 = vlaneseq
  %v5298 = vshrl.u32 %v5297, 7
  %v5299 = vsub.s32 0, %v5298
  %v5300 = vrot.slane %v5295, %v5299
  %v5303 = vsel %vm2551, %v5279, 0
  %5305 = vmatprep.subr.mxu0 0.0
  %5306 = vmatpush1.msra.mxu0 %v5280
  %5307 = vmatprep.subr.mxu0 0.0
  %5308 = vmatpush1.msra.mxu0 %v5281
  %5309 = vmatprep.subr.mxu0 0.0
  %5310 = vmatpush1.msra.mxu0 %v5282
  %5311 = vmatprep.subr.mxu0 0.0
  %5312 = vmatpush1.msra.mxu0 %v5283
  %5313 = vmatprep.subr.mxu0 0.0
  %5314 = vmatpush1.msra.mxu0 %v5284
  %5315 = vmatprep.subr.mxu0 0.0
  %5316 = vmatpush1.msra.mxu0 %v5285
  %5317 = vmatprep.subr.mxu0 0.0
  %5318 = vmatpush1.msra.mxu0 %v5286
  %5319 = vmatprep.subr.mxu0 0.0
  %5320 = vmatpush1.msra.mxu0 %v5287
  %5321 = vmatprep.subr.mxu0 0.0
  %5322 = vmatpush1.msra.mxu0 %v5288
  %5323 = vmatprep.subr.mxu0 0.0
  %5324 = vmatpush1.msra.mxu0 %v5289
  %5325 = vmatprep.subr.mxu0 0.0
  %5326 = vmatpush1.msra.mxu0 %v5290
  %5327 = vmatprep.subr.mxu0 0.0
  %5328 = vmatpush1.msra.mxu0 %v5291
  %5329 = vmatprep.subr.mxu0 0.0
  %5330 = vmatpush1.msra.mxu0 %v5292
  %5331 = vmatprep.subr.mxu0 0.0
  %5332 = vmatpush1.msra.mxu0 %v5293
  %5333 = vmatprep.subr.mxu0 0.0
  %5334 = vmatpush1.msra.mxu0 %v5294
  %5335 = vmatprep.subr.mxu0 0.0
  %5336 = vmatpush1.msra.mxu0 0.0
  %5337 = vmatprep.subr.mxu0 0.0
  %5338 = vmatpush1.msra.mxu0 0.0
  %5339 = vmatprep.subr.mxu0 0.0
  %5340 = vmatpush1.msra.mxu0 0.0
  %5341 = vmatprep.subr.mxu0 0.0
  %5342 = vmatpush1.msra.mxu0 0.0
  %5343 = vmatprep.subr.mxu0 0.0
  %5344 = vmatpush1.msra.mxu0 0.0
  %5345 = vmatprep.subr.mxu0 0.0
  %5346 = vmatpush1.msra.mxu0 0.0
  %5347 = vmatprep.subr.mxu0 0.0
  %5348 = vmatpush1.msra.mxu0 0.0
  %5349 = vmatprep.subr.mxu0 0.0
  %5350 = vmatpush1.msra.mxu0 0.0
  %5351 = vmatprep.subr.mxu0 0.0
  %5352 = vmatpush1.msra.mxu0 0.0
  %5353 = vmatprep.subr.mxu0 0.0
  %5354 = vmatpush1.msra.mxu0 0.0
  %5355 = vmatprep.subr.mxu0 0.0
  %5356 = vmatpush1.msra.mxu0 0.0
  %5357 = vmatprep.subr.mxu0 0.0
  %5358 = vmatpush1.msra.mxu0 0.0
  %5359 = vmatprep.subr.mxu0 0.0
  %5360 = vmatpush1.msra.mxu0 0.0
  %5361 = vmatprep.subr.mxu0 0.0
  %5362 = vmatpush1.msra.mxu0 0.0
  %5363 = vmatprep.subr.mxu0 0.0
  %5364 = vmatpush1.msra.mxu0 0.0
  %5365 = vmatprep.subr.mxu0 0.0
  %5366 = vmatpush1.msra.mxu0 0.0
  %5367 = vmatprep.subr.mxu0 0.0
  %5368 = vmatpush1.msra.mxu0 0.0
  %5369 = vmatprep.mubr.f32.mxu0 0.0
  %5370 = vmatmul.mubr.f32.gmra.mrb[0].mxu0 %v5303
  %v5371 = vpop.f32.mrb[0].mxu0
  %v5372 = vadd.f32 %v5300, %v5371
  %v5373 = vpop.f32.mrb[0].mxu0
  %5374 = vdwg.mxu0
  %v5375 = vmax.f32 %v5372, 0.0
  %v5376 = vld [vmem:[%s14] sm:$0xff]
  %v5377 = vld [vmem:[%s14 + $0x8] sm:$0xff]
  %v5378 = vld [vmem:[%s14 + $0x10] sm:$0xff]
  %v5379 = vld [vmem:[%s14 + $0x18] sm:$0xff]
  %v5380 = vld [vmem:[%s14 + $0x20] sm:$0xff]
  %v5381 = vld [vmem:[%s14 + $0x28] sm:$0xff]
  %v5382 = vld [vmem:[%s14 + $0x30] sm:$0xff]
  %v5383 = vld [vmem:[%s14 + $0x38] sm:$0xff]
  %v5384 = vld [vmem:[%s14 + $0x40] sm:$0xff]
  %v5385 = vld [vmem:[%s14 + $0x48] sm:$0xff]
  %v5386 = vld [vmem:[%s14 + $0x50] sm:$0xf]
  %v5387 = vld [vmem:[%s15] sm:$0x1]
  %v5389 = vlaneseq
  %v5390 = vshrl.u32 %v5389, 7
  %v5391 = vsub.s32 0, %v5390
  %v5392 = vrot.slane %v5387, %v5391
  %vm5394 = vcmask 687104
  %v5396 = vsel %vm5394, %v5375, 0
  %v5399 = vsel %vm605, %v5386, 0
  %5401 = vmatprep.subr.mxu0 0.0
  %5402 = vmatpush1.msra.mxu0 %v5376
  %5403 = vmatprep.subr.mxu0 0.0
  %5404 = vmatpush1.msra.mxu0 %v5377
  %5405 = vmatprep.subr.mxu0 0.0
  %5406 = vmatpush1.msra.mxu0 %v5378
  %5407 = vmatprep.subr.mxu0 0.0
  %5408 = vmatpush1.msra.mxu0 %v5379
  %5409 = vmatprep.subr.mxu0 0.0
  %5410 = vmatpush1.msra.mxu0 %v5380
  %5411 = vmatprep.subr.mxu0 0.0
  %5412 = vmatpush1.msra.mxu0 %v5381
  %5413 = vmatprep.subr.mxu0 0.0
  %5414 = vmatpush1.msra.mxu0 %v5382
  %5415 = vmatprep.subr.mxu0 0.0
  %5416 = vmatpush1.msra.mxu0 %v5383
  %5417 = vmatprep.subr.mxu0 0.0
  %5418 = vmatpush1.msra.mxu0 %v5384
  %5419 = vmatprep.subr.mxu0 0.0
  %5420 = vmatpush1.msra.mxu0 %v5385
  %5421 = vmatprep.subr.mxu0 0.0
  %5422 = vmatpush1.msra.mxu0 %v5399
  %5423 = vmatprep.subr.mxu0 0.0
  %5424 = vmatpush1.msra.mxu0 0.0
  %5425 = vmatprep.subr.mxu0 0.0
  %5426 = vmatpush1.msra.mxu0 0.0
  %5427 = vmatprep.subr.mxu0 0.0
  %5428 = vmatpush1.msra.mxu0 0.0
  %5429 = vmatprep.subr.mxu0 0.0
  %5430 = vmatpush1.msra.mxu0 0.0
  %5431 = vmatprep.subr.mxu0 0.0
  %5432 = vmatpush1.msra.mxu0 0.0
  %5433 = vmatprep.subr.mxu0 0.0
  %5434 = vmatpush1.msra.mxu0 0.0
  %5435 = vmatprep.subr.mxu0 0.0
  %5436 = vmatpush1.msra.mxu0 0.0
  %5437 = vmatprep.subr.mxu0 0.0
  %5438 = vmatpush1.msra.mxu0 0.0
  %5439 = vmatprep.subr.mxu0 0.0
  %5440 = vmatpush1.msra.mxu0 0.0
  %5441 = vmatprep.subr.mxu0 0.0
  %5442 = vmatpush1.msra.mxu0 0.0
  %5443 = vmatprep.subr.mxu0 0.0
  %5444 = vmatpush1.msra.mxu0 0.0
  %5445 = vmatprep.subr.mxu0 0.0
  %5446 = vmatpush1.msra.mxu0 0.0
  %5447 = vmatprep.subr.mxu0 0.0
  %5448 = vmatpush1.msra.mxu0 0.0
  %5449 = vmatprep.subr.mxu0 0.0
  %5450 = vmatpush1.msra.mxu0 0.0
  %5451 = vmatprep.subr.mxu0 0.0
  %5452 = vmatpush1.msra.mxu0 0.0
  %5453 = vmatprep.subr.mxu0 0.0
  %5454 = vmatpush1.msra.mxu0 0.0
  %5455 = vmatprep.subr.mxu0 0.0
  %5456 = vmatpush1.msra.mxu0 0.0
  %5457 = vmatprep.subr.mxu0 0.0
  %5458 = vmatpush1.msra.mxu0 0.0
  %5459 = vmatprep.subr.mxu0 0.0
  %5460 = vmatpush1.msra.mxu0 0.0
  %5461 = vmatprep.subr.mxu0 0.0
  %5462 = vmatpush1.msra.mxu0 0.0
  %5463 = vmatprep.subr.mxu0 0.0
  %5464 = vmatpush1.msra.mxu0 0.0
  %5465 = vmatprep.mubr.f32.mxu0 0.0
  %5466 = vmatmul.mubr.f32.gmra.mrb[0].mxu0 %v5396
  %v5467 = vpop.f32.mrb[0].mxu0
  %v5468 = vadd.f32 %v5392, %v5467
  %v5469 = vpop.f32.mrb[0].mxu0
  %5470 = vdwg.mxu0
  %vm5471 = vcmask 80896
  %v5472 = vsel %vm5471, %v5468, -inf
  %5473 = vmax.xlane.f32.xlu0 %v5472
  %v5474 = vpop.xlane.xlu0 %5473
  %v5475 = vsub.f32 %v5468, %v5474
  %v5476 = vmul.f32 %v5475, 1.442695
  %v5477 = vpow.pop %v5476
  %v5478 = vsel %vm5471, %v5477, 0.0
  %5479 = vadd.xlane.f32.xlu0 %v5478
  %v5480 = vpop.xlane.xlu0 %5479
  %v5481 = vlog2.pop %v5480
  %v5482 = vmul.f32 %v5481, 0.6931472
  %v5483 = vsub.f32 %v5475, %v5482
  %5484 = vst.msk [vmem:[%s16] sm:$0xff] %vm5471, %v5483
  // Predicated region
  $region66: #{classifier_forward.1} parent=0 // pred_check
    _
  $region67: #{classifier_forward.1} parent=0 // pred_check_branch
    %5486 = sbr.rel (0) target = $region69
  $region68: #{classifier_forward.1} parent=0 // pred_region
    _
  $region69: #{classifier_forward.1} parent=0 // pred_fallthru
    _
  // Predicated region
  $region70: #{classifier_forward.1} parent=0 // pred_check
    _
  $region71: #{classifier_forward.1} parent=0 // pred_check_branch
    %5488 = sbr.rel (0) target = $region73
  $region72: #{classifier_forward.1} parent=0 // pred_region
    _
  $region73: #{classifier_forward.1} parent=0 // pred_fallthru
    _

</llo_original>
